<compile_context>
chip_gen: v5e
topology: v5e:2x2
jax: 0.10.0
libtpu: 0.0.40
codegen_flags: <defaults>
</compile_context>

<pallas_src>
import math

import jax
import jax.numpy as jnp
from jax import lax
from jax.experimental import pallas as pl
from jax.experimental.pallas import tpu as pltpu

# ----------------------------- config ---------------------------------------
B, C, H, W = 2, 4, 16, 16
PATCH = 4
N_PATCH = (H // PATCH) * (W // PATCH)            # 16
PATCH_DIM = C * PATCH * PATCH                    # 64
EMBED_DIM = 32
NUM_HEADS = 4
HEAD_DIM = EMBED_DIM // NUM_HEADS                # 8
DEPTH = 2
MLP_HIDDEN = 64
NUM_CLASSES = 10
NUM_PERSIST = 4
NUM_LONGTERM = 4
LN_EPS = 1e-6

S_REAL = 1 + NUM_PERSIST + NUM_LONGTERM + N_PATCH   # 25 real tokens
S_PAD = 32                                           # padded seq length (mult of 8)
ATTN_SCALE = 1.0 / math.sqrt(HEAD_DIM)
NEG_INF = -1e30
_INV_SQRT2 = 1.0 / math.sqrt(2.0)


# ------------------------ in-kernel helper math ------------------------------
def _ln(x, g, b):
    """LayerNorm over last axis, f32 math."""
    mu = jnp.mean(x, axis=-1, keepdims=True)
    xc = x - mu
    var = jnp.mean(xc * xc, axis=-1, keepdims=True)
    return xc * lax.rsqrt(var + LN_EPS) * g + b


def _gelu(y):
    # exact-erf GELU (PyTorch nn.GELU default), f32
    return 0.5 * y * (1.0 + lax.erf(y * _INV_SQRT2))


def _mm(x_f32, w_bf16, bias_f32=None):
    """bf16 MXU matmul with f32 accumulation (+ optional f32 bias)."""
    y = jnp.dot(x_f32.astype(jnp.bfloat16), w_bf16,
                preferred_element_type=jnp.float32)
    if bias_f32 is not None:
        y = y + bias_f32
    return y


# ----------------------------- fused kernel ----------------------------------
def _fused_vit_mac_kernel(
    patches_ref, pe_w_ref, pe_b_ref, cls_ref, persist_ref,
    mq_w_ref, mq_b_ref, mem_w_ref, mem_b_ref, pos_ref,
    ln1_g_ref, ln1_b_ref, qkv_w_ref, qkv_b_ref, proj_w_ref, proj_b_ref,
    ln2_g_ref, ln2_b_ref, fc1_w_ref, fc1_b_ref, fc2_w_ref, fc2_b_ref,
    norm_g_ref, norm_b_ref, head_w_ref, head_b_ref,
    out_ref, scr,
):
    D = EMBED_DIM

    # ---- patch embedding: [B*N_PATCH, C*p*p] @ [C*p*p, D] + b -> [32, 32] ----
    xp = _mm(patches_ref[...], pe_w_ref[...], pe_b_ref[...])

    # ---- memory query / memory tokens + token assembly into VMEM scratch ----
    cls_tok = cls_ref[...]                      # [1, D]
    persist = persist_ref[...]                  # [NUM_PERSIST, D]
    mq_w = mq_w_ref[...]
    mq_bias = mq_b_ref[...]
    mem_w = mem_w_ref[...]
    mem_bias = mem_b_ref[...]
    pad_zeros = jnp.zeros((S_PAD - S_REAL, D), jnp.float32)

    for b in range(B):
        base = b * S_PAD
        xp_b = xp[b * N_PATCH:(b + 1) * N_PATCH, :]                  # [16, D]
        mean_b = jnp.mean(xp_b, axis=0, keepdims=True)               # [1, D]
        query_b = _mm(mean_b, mq_w, mq_bias)                         # [1, D]
        mem_tok = _mm(query_b, mem_w, mem_bias)                      # [1, D]
        scr[base + 0:base + 1, :] = cls_tok
        scr[base + 1:base + 1 + NUM_PERSIST, :] = persist
        scr[base + 1 + NUM_PERSIST:base + 1 + NUM_PERSIST + NUM_LONGTERM, :] = (
            jnp.broadcast_to(mem_tok, (NUM_LONGTERM, D)))
        scr[base + S_REAL - N_PATCH:base + S_REAL, :] = xp_b
        scr[base + S_REAL:base + S_PAD, :] = pad_zeros

    # ---- add positional embedding (pre-tiled over batch, zero on mem/pad) ----
    x = scr[...] + pos_ref[...]                                      # [B*S_PAD, D]

    # key-padding bias (loop invariant): 0 for real keys, -inf for pad keys
    key_ids = lax.broadcasted_iota(jnp.int32, (1, S_PAD), 1)
    key_bias = jnp.where(key_ids < S_REAL, 0.0, NEG_INF).astype(jnp.float32)

    # ---- transformer blocks (unrolled over DEPTH) ----
    for d in range(DEPTH):
        ln1_g = ln1_g_ref[d]
        ln1_b = ln1_b_ref[d]
        qkv_w = qkv_w_ref[d]
        qkv_b = qkv_b_ref[d]
        proj_w = proj_w_ref[d]
        proj_b = proj_b_ref[d]
        ln2_g = ln2_g_ref[d]
        ln2_b = ln2_b_ref[d]
        fc1_w = fc1_w_ref[d]
        fc1_b = fc1_b_ref[d]
        fc2_w = fc2_w_ref[d]
        fc2_b = fc2_b_ref[d]

        # ----- multi-head self-attention -----
        h = _ln(x, ln1_g, ln1_b)
        qkv = _mm(h, qkv_w, qkv_b)                                   # [B*S_PAD, 3D]
        for b in range(B):
            r0 = b * S_PAD
            for hd in range(NUM_HEADS):
                c0 = hd * HEAD_DIM
                qh = qkv[r0:r0 + S_PAD, c0:c0 + HEAD_DIM]            # [S_PAD, dh]
                kh = qkv[r0:r0 + S_PAD, D + c0:D + c0 + HEAD_DIM]
                vh = qkv[r0:r0 + S_PAD, 2 * D + c0:2 * D + c0 + HEAD_DIM]
                s = lax.dot_general(
                    qh.astype(jnp.bfloat16), kh.astype(jnp.bfloat16),
                    (((1,), (1,)), ((), ())),
                    preferred_element_type=jnp.float32) * ATTN_SCALE  # [S_PAD, S_PAD]
                s = s + key_bias
                m = jnp.max(s, axis=-1, keepdims=True)
                p = jnp.exp(s - m)
                p = p * pl.reciprocal(jnp.sum(p, axis=-1, keepdims=True), approx=True)
                oh = jnp.dot(p.astype(jnp.bfloat16), vh.astype(jnp.bfloat16),
                             preferred_element_type=jnp.float32)      # [S_PAD, dh]
                # merge heads back into a lane-dense [B*S_PAD, D] slab
                scr[r0:r0 + S_PAD, c0:c0 + HEAD_DIM] = oh
        a = _mm(scr[...], proj_w, proj_b)                            # [B*S_PAD, D]
        x = x + a

        # ----- MLP -----
        h2 = _ln(x, ln2_g, ln2_b)
        h2 = _mm(h2, fc1_w, fc1_b)
        h2 = _gelu(h2)
        h2 = _mm(h2, fc2_w, fc2_b)
        x = x + h2

    # ---- final norm on cls token + classification head ----
    norm_g = norm_g_ref[...]
    norm_bias = norm_b_ref[...]
    head_w = head_w_ref[...]
    head_bias = head_b_ref[...]
    for b in range(B):
        cls_b = x[b * S_PAD:b * S_PAD + 1, :]                        # [1, D]
        cls_b = _ln(cls_b, norm_g, norm_bias)
        out_ref[b:b + 1, :] = _mm(cls_b, head_w, head_bias)          # [1, NUM_CLASSES]

    # TODO(synk): trailing memory_module(x.detach().mean(0).unsqueeze(1)) probe in
    # PyTorch is pure and its result is discarded -> intentionally skipped.


# ----------------------------- params ---------------------------------------
def init_params(key):
    ks = iter(jax.random.split(key, 64))
    nrm = lambda shape, s=0.02: (s * jax.random.normal(next(ks), shape)).astype(jnp.float32)
    zeros = lambda shape: jnp.zeros(shape, jnp.float32)
    ones = lambda shape: jnp.ones(shape, jnp.float32)

    params = {
        "pe_w": nrm((PATCH_DIM, EMBED_DIM)),
        "pe_b": zeros((1, EMBED_DIM)),
        "cls": nrm((1, 1, EMBED_DIM)),
        "pos": nrm((1, 1 + N_PATCH, EMBED_DIM)),
        "persist": nrm((NUM_PERSIST, EMBED_DIM)),
        "mq_w": nrm((EMBED_DIM, EMBED_DIM)),
        "mq_b": zeros((1, EMBED_DIM)),
        "mem_w": nrm((EMBED_DIM, EMBED_DIM)),
        "mem_b": zeros((1, EMBED_DIM)),
        "norm_g": ones((1, EMBED_DIM)),
        "norm_b": zeros((1, EMBED_DIM)),
        "head_w": nrm((EMBED_DIM, NUM_CLASSES)),
        "head_b": zeros((1, NUM_CLASSES)),
        "blocks": [],
    }
    for _ in range(DEPTH):
        params["blocks"].append({
            "ln1_g": ones((1, EMBED_DIM)),
            "ln1_b": zeros((1, EMBED_DIM)),
            "qkv_w": nrm((EMBED_DIM, 3 * EMBED_DIM)),
            "qkv_b": zeros((1, 3 * EMBED_DIM)),
            "proj_w": nrm((EMBED_DIM, EMBED_DIM)),
            "proj_b": zeros((1, EMBED_DIM)),
            "ln2_g": ones((1, EMBED_DIM)),
            "ln2_b": zeros((1, EMBED_DIM)),
            "fc1_w": nrm((EMBED_DIM, MLP_HIDDEN)),
            "fc1_b": zeros((1, MLP_HIDDEN)),
            "fc2_w": nrm((MLP_HIDDEN, EMBED_DIM)),
            "fc2_b": zeros((1, EMBED_DIM)),
        })
    return params


# ----------------------------- forward wrapper --------------------------------
def _prep_kernel_args(params, x_nchw):
    """Tiny JAX glue: NCHW -> patch unfold, param stacking/casting, pos padding."""
    p = PATCH
    Bx = x_nchw.shape[0]
    xh = x_nchw.reshape(Bx, C, H // p, p, W // p, p)
    patches = xh.transpose(0, 2, 4, 1, 3, 5).reshape(Bx * N_PATCH, PATCH_DIM)

    bf = lambda a: a.astype(jnp.bfloat16)
    stack = lambda name: jnp.stack([blk[name] for blk in params["blocks"]], axis=0)

    # interpolate_pos_encoding: patch count matches -> identity.
    # TODO(synk): bicubic F.interpolate path (mismatched patch count) not implemented.
    pos = params["pos"]                                              # [1, 1+N, D]
    pos_seq = jnp.concatenate(
        [pos[:, 0:1, :],
         jnp.zeros((1, NUM_PERSIST + NUM_LONGTERM, EMBED_DIM), jnp.float32),
         pos[:, 1:, :],
         jnp.zeros((1, S_PAD - S_REAL, EMBED_DIM), jnp.float32)],
        axis=1)                                                      # [1, S_PAD, D]
    pos_tiled = jnp.broadcast_to(pos_seq, (Bx, S_PAD, EMBED_DIM)).reshape(
        Bx * S_PAD, EMBED_DIM)

    return (
        patches,
        bf(params["pe_w"]), params["pe_b"],
        params["cls"].reshape(1, EMBED_DIM),
        params["persist"],
        bf(params["mq_w"]), params["mq_b"],
        bf(params["mem_w"]), params["mem_b"],
        pos_tiled,
        stack("ln1_g"), stack("ln1_b"),
        bf(stack("qkv_w")), stack("qkv_b"),
        bf(stack("proj_w")), stack("proj_b"),
        stack("ln2_g"), stack("ln2_b"),
        bf(stack("fc1_w")), stack("fc1_b"),
        bf(stack("fc2_w")), stack("fc2_b"),
        params["norm_g"], params["norm_b"],
        bf(params["head_w"]), params["head_b"],
    )


@jax.jit
def vit_with_mac_forward(params, x_nchw):
    args = _prep_kernel_args(params, x_nchw)
    return pl.pallas_call(
        _fused_vit_mac_kernel,
        out_shape=jax.ShapeDtypeStruct((B, NUM_CLASSES), jnp.float32),
        scratch_shapes=[pltpu.VMEM((B * S_PAD, EMBED_DIM), jnp.float32)],
    )(*args)


# ----------------------------- main ------------------------------------------
if __name__ == "__main__":
    key = jax.random.PRNGKey(0)
    k_param, k_x = jax.random.split(key)
    params = init_params(k_param)
    x = jax.random.normal(k_x, (B, C, H, W), dtype=jnp.float32)

    logits = vit_with_mac_forward(params, x)
    logits = jax.block_until_ready(logits)
    assert logits.shape == (B, NUM_CLASSES), logits.shape
    assert jnp.all(jnp.isfinite(logits))
    print("KERNEL_OK")
</pallas_src>

<mosaic_0001>
module attributes {stable_mosaic.version = 11 : i64} {
  func.func @_fused_vit_mac_kernel(%arg0: memref<32x64xf32, #tpu.memory_space<vmem>>, %arg1: memref<64x32xbf16, #tpu.memory_space<vmem>>, %arg2: memref<1x32xf32, #tpu.memory_space<vmem>>, %arg3: memref<1x32xf32, #tpu.memory_space<vmem>>, %arg4: memref<4x32xf32, #tpu.memory_space<vmem>>, %arg5: memref<32x32xbf16, #tpu.memory_space<vmem>>, %arg6: memref<1x32xf32, #tpu.memory_space<vmem>>, %arg7: memref<32x32xbf16, #tpu.memory_space<vmem>>, %arg8: memref<1x32xf32, #tpu.memory_space<vmem>>, %arg9: memref<64x32xf32, #tpu.memory_space<vmem>>, %arg10: memref<2x1x32xf32, #tpu.memory_space<vmem>>, %arg11: memref<2x1x32xf32, #tpu.memory_space<vmem>>, %arg12: memref<2x32x96xbf16, #tpu.memory_space<vmem>>, %arg13: memref<2x1x96xf32, #tpu.memory_space<vmem>>, %arg14: memref<2x32x32xbf16, #tpu.memory_space<vmem>>, %arg15: memref<2x1x32xf32, #tpu.memory_space<vmem>>, %arg16: memref<2x1x32xf32, #tpu.memory_space<vmem>>, %arg17: memref<2x1x32xf32, #tpu.memory_space<vmem>>, %arg18: memref<2x32x64xbf16, #tpu.memory_space<vmem>>, %arg19: memref<2x1x64xf32, #tpu.memory_space<vmem>>, %arg20: memref<2x64x32xbf16, #tpu.memory_space<vmem>>, %arg21: memref<2x1x32xf32, #tpu.memory_space<vmem>>, %arg22: memref<1x32xf32, #tpu.memory_space<vmem>>, %arg23: memref<1x32xf32, #tpu.memory_space<vmem>>, %arg24: memref<32x10xbf16, #tpu.memory_space<vmem>>, %arg25: memref<1x10xf32, #tpu.memory_space<vmem>>, %arg26: memref<2x10xf32, #tpu.memory_space<vmem>>, %arg27: memref<64x32xf32, #tpu.memory_space<vmem>>) attributes {dimension_semantics = [], scalar_prefetch = 0 : i64, scratch_operands = 1 : i64, tpu.core_type = #tpu.core_type<tc>} {
    %c0 = arith.constant 0 : index
    %c0_0 = arith.constant 0 : index
    %0 = vector.load %arg0[%c0, %c0_0] : memref<32x64xf32, #tpu.memory_space<vmem>>, vector<32x64xf32>
    %c0_1 = arith.constant 0 : index
    %c0_2 = arith.constant 0 : index
    %1 = vector.load %arg1[%c0_1, %c0_2] : memref<64x32xbf16, #tpu.memory_space<vmem>>, vector<64x32xbf16>
    %c0_3 = arith.constant 0 : index
    %c0_4 = arith.constant 0 : index
    %2 = vector.load %arg2[%c0_3, %c0_4] : memref<1x32xf32, #tpu.memory_space<vmem>>, vector<1x32xf32>
    %3 = arith.truncf %0 : vector<32x64xf32> to vector<32x64xbf16>
    %cst = arith.constant dense<0.000000e+00> : vector<32x32xf32>
    %4 = tpu.matmul %3, %1, %cst {dimension_numbers = #tpu.dot_dimension_numbers<[1], [0], [0], [1], [0, 0, 1, 1], [], []>} : vector<32x64xbf16>, vector<64x32xbf16>, vector<32x32xf32> -> vector<32x32xf32>
    %5 = vector.broadcast %2 : vector<1x32xf32> to vector<32x32xf32>
    %6 = arith.addf %4, %5 : vector<32x32xf32>
    %c0_5 = arith.constant 0 : index
    %c0_6 = arith.constant 0 : index
    %7 = vector.load %arg3[%c0_5, %c0_6] : memref<1x32xf32, #tpu.memory_space<vmem>>, vector<1x32xf32>
    %c0_7 = arith.constant 0 : index
    %c0_8 = arith.constant 0 : index
    %8 = vector.load %arg4[%c0_7, %c0_8] : memref<4x32xf32, #tpu.memory_space<vmem>>, vector<4x32xf32>
    %c0_9 = arith.constant 0 : index
    %c0_10 = arith.constant 0 : index
    %9 = vector.load %arg5[%c0_9, %c0_10] : memref<32x32xbf16, #tpu.memory_space<vmem>>, vector<32x32xbf16>
    %c0_11 = arith.constant 0 : index
    %c0_12 = arith.constant 0 : index
    %10 = vector.load %arg6[%c0_11, %c0_12] : memref<1x32xf32, #tpu.memory_space<vmem>>, vector<1x32xf32>
    %c0_13 = arith.constant 0 : index
    %c0_14 = arith.constant 0 : index
    %11 = vector.load %arg7[%c0_13, %c0_14] : memref<32x32xbf16, #tpu.memory_space<vmem>>, vector<32x32xbf16>
    %c0_15 = arith.constant 0 : index
    %c0_16 = arith.constant 0 : index
    %12 = vector.load %arg8[%c0_15, %c0_16] : memref<1x32xf32, #tpu.memory_space<vmem>>, vector<1x32xf32>
    %cst_17 = arith.constant 0.000000e+00 : f32
    %13 = vector.broadcast %cst_17 : f32 to vector<7x32xf32>
    %14 = vector.extract_strided_slice %6 {offsets = [0, 0], sizes = [16, 32], strides = [1, 1]} : vector<32x32xf32> to vector<16x32xf32>
    %cst_18 = arith.constant dense<0.000000e+00> : vector<32xf32>
    %15 = vector.multi_reduction <add>, %14, %cst_18 [0] : vector<16x32xf32> to vector<32xf32>
    %16 = vector.shape_cast %15 : vector<32xf32> to vector<1x32xf32>
    %cst_19 = arith.constant 1.600000e+01 : f32
    %17 = vector.broadcast %cst_19 : f32 to vector<1x32xf32>
    %18 = arith.divf %16, %17 : vector<1x32xf32>
    %19 = arith.truncf %18 : vector<1x32xf32> to vector<1x32xbf16>
    %cst_20 = arith.constant dense<0.000000e+00> : vector<1x32xf32>
    %20 = tpu.matmul %19, %9, %cst_20 {dimension_numbers = #tpu.dot_dimension_numbers<[1], [0], [0], [1], [0, 0, 1, 1], [], []>} : vector<1x32xbf16>, vector<32x32xbf16>, vector<1x32xf32> -> vector<1x32xf32>
    %21 = arith.addf %20, %10 : vector<1x32xf32>
    %22 = arith.truncf %21 : vector<1x32xf32> to vector<1x32xbf16>
    %cst_21 = arith.constant dense<0.000000e+00> : vector<1x32xf32>
    %23 = tpu.matmul %22, %11, %cst_21 {dimension_numbers = #tpu.dot_dimension_numbers<[1], [0], [0], [1], [0, 0, 1, 1], [], []>} : vector<1x32xbf16>, vector<32x32xbf16>, vector<1x32xf32> -> vector<1x32xf32>
    %24 = arith.addf %23, %12 : vector<1x32xf32>
    %c0_22 = arith.constant 0 : index
    %c0_23 = arith.constant 0 : index
    %25 = vector.load %arg27[%c0_22, %c0_23] : memref<64x32xf32, #tpu.memory_space<vmem>>, vector<1x32xf32>
    tpu.vector_store %arg27[%c0_22, %c0_23], %7 {strides = array<i32>} : memref<64x32xf32, #tpu.memory_space<vmem>>, vector<1x32xf32>,
    %c1 = arith.constant 1 : index
    %c0_24 = arith.constant 0 : index
    %26 = vector.load %arg27[%c1, %c0_24] : memref<64x32xf32, #tpu.memory_space<vmem>>, vector<4x32xf32>
    tpu.vector_store %arg27[%c1, %c0_24], %8 {strides = array<i32>} : memref<64x32xf32, #tpu.memory_space<vmem>>, vector<4x32xf32>,
    %27 = vector.shape_cast %24 : vector<1x32xf32> to vector<1x32xf32>
    %28 = vector.broadcast %27 : vector<1x32xf32> to vector<4x32xf32>
    %c5 = arith.constant 5 : index
    %c0_25 = arith.constant 0 : index
    %29 = vector.load %arg27[%c5, %c0_25] : memref<64x32xf32, #tpu.memory_space<vmem>>, vector<4x32xf32>
    tpu.vector_store %arg27[%c5, %c0_25], %28 {strides = array<i32>} : memref<64x32xf32, #tpu.memory_space<vmem>>, vector<4x32xf32>,
    %c9 = arith.constant 9 : index
    %c0_26 = arith.constant 0 : index
    %30 = vector.load %arg27[%c9, %c0_26] : memref<64x32xf32, #tpu.memory_space<vmem>>, vector<16x32xf32>
    tpu.vector_store %arg27[%c9, %c0_26], %14 {strides = array<i32>} : memref<64x32xf32, #tpu.memory_space<vmem>>, vector<16x32xf32>,
    %c25 = arith.constant 25 : index
    %c0_27 = arith.constant 0 : index
    %31 = vector.load %arg27[%c25, %c0_27] : memref<64x32xf32, #tpu.memory_space<vmem>>, vector<7x32xf32>
    tpu.vector_store %arg27[%c25, %c0_27], %13 {strides = array<i32>} : memref<64x32xf32, #tpu.memory_space<vmem>>, vector<7x32xf32>,
    %32 = vector.extract_strided_slice %6 {offsets = [16, 0], sizes = [16, 32], strides = [1, 1]} : vector<32x32xf32> to vector<16x32xf32>
    %cst_28 = arith.constant dense<0.000000e+00> : vector<32xf32>
    %33 = vector.multi_reduction <add>, %32, %cst_28 [0] : vector<16x32xf32> to vector<32xf32>
    %34 = vector.shape_cast %33 : vector<32xf32> to vector<1x32xf32>
    %cst_29 = arith.constant 1.600000e+01 : f32
    %35 = vector.broadcast %cst_29 : f32 to vector<1x32xf32>
    %36 = arith.divf %34, %35 : vector<1x32xf32>
    %37 = arith.truncf %36 : vector<1x32xf32> to vector<1x32xbf16>
    %cst_30 = arith.constant dense<0.000000e+00> : vector<1x32xf32>
    %38 = tpu.matmul %37, %9, %cst_30 {dimension_numbers = #tpu.dot_dimension_numbers<[1], [0], [0], [1], [0, 0, 1, 1], [], []>} : vector<1x32xbf16>, vector<32x32xbf16>, vector<1x32xf32> -> vector<1x32xf32>
    %39 = arith.addf %38, %10 : vector<1x32xf32>
    %40 = arith.truncf %39 : vector<1x32xf32> to vector<1x32xbf16>
    %cst_31 = arith.constant dense<0.000000e+00> : vector<1x32xf32>
    %41 = tpu.matmul %40, %11, %cst_31 {dimension_numbers = #tpu.dot_dimension_numbers<[1], [0], [0], [1], [0, 0, 1, 1], [], []>} : vector<1x32xbf16>, vector<32x32xbf16>, vector<1x32xf32> -> vector<1x32xf32>
    %42 = arith.addf %41, %12 : vector<1x32xf32>
    %c32 = arith.constant 32 : index
    %c0_32 = arith.constant 0 : index
    %43 = vector.load %arg27[%c32, %c0_32] : memref<64x32xf32, #tpu.memory_space<vmem>>, vector<1x32xf32>
    tpu.vector_store %arg27[%c32, %c0_32], %7 {strides = array<i32>} : memref<64x32xf32, #tpu.memory_space<vmem>>, vector<1x32xf32>,
    %c33 = arith.constant 33 : index
    %c0_33 = arith.constant 0 : index
    %44 = vector.load %arg27[%c33, %c0_33] : memref<64x32xf32, #tpu.memory_space<vmem>>, vector<4x32xf32>
    tpu.vector_store %arg27[%c33, %c0_33], %8 {strides = array<i32>} : memref<64x32xf32, #tpu.memory_space<vmem>>, vector<4x32xf32>,
    %45 = vector.shape_cast %42 : vector<1x32xf32> to vector<1x32xf32>
    %46 = vector.broadcast %45 : vector<1x32xf32> to vector<4x32xf32>
    %c37 = arith.constant 37 : index
    %c0_34 = arith.constant 0 : index
    %47 = vector.load %arg27[%c37, %c0_34] : memref<64x32xf32, #tpu.memory_space<vmem>>, vector<4x32xf32>
    tpu.vector_store %arg27[%c37, %c0_34], %46 {strides = array<i32>} : memref<64x32xf32, #tpu.memory_space<vmem>>, vector<4x32xf32>,
    %c41 = arith.constant 41 : index
    %c0_35 = arith.constant 0 : index
    %48 = vector.load %arg27[%c41, %c0_35] : memref<64x32xf32, #tpu.memory_space<vmem>>, vector<16x32xf32>
    tpu.vector_store %arg27[%c41, %c0_35], %32 {strides = array<i32>} : memref<64x32xf32, #tpu.memory_space<vmem>>, vector<16x32xf32>,
    %c57 = arith.constant 57 : index
    %c0_36 = arith.constant 0 : index
    %49 = vector.load %arg27[%c57, %c0_36] : memref<64x32xf32, #tpu.memory_space<vmem>>, vector<7x32xf32>
    tpu.vector_store %arg27[%c57, %c0_36], %13 {strides = array<i32>} : memref<64x32xf32, #tpu.memory_space<vmem>>, vector<7x32xf32>,
    %c0_37 = arith.constant 0 : index
    %c0_38 = arith.constant 0 : index
    %50 = vector.load %arg27[%c0_37, %c0_38] : memref<64x32xf32, #tpu.memory_space<vmem>>, vector<64x32xf32>
    %c0_39 = arith.constant 0 : index
    %c0_40 = arith.constant 0 : index
    %51 = vector.load %arg9[%c0_39, %c0_40] : memref<64x32xf32, #tpu.memory_space<vmem>>, vector<64x32xf32>
    %52 = arith.addf %50, %51 : vector<64x32xf32>
    %53 = tpu.iota {dimensions = array<i32: 1>} : vector<1x32xi32>
    %c25_i32 = arith.constant 25 : i32
    %54 = vector.broadcast %c25_i32 : i32 to vector<1x32xi32>
    %55 = arith.cmpi slt, %53, %54 : vector<1x32xi32>
    %cst_41 = arith.constant 0.000000e+00 : f32
    %cst_42 = arith.constant -1.000000e+30 : f32
    %56 = vector.broadcast %cst_41 : f32 to vector<1x32xf32>
    %57 = vector.broadcast %cst_42 : f32 to vector<1x32xf32>
    %58 = arith.select %55, %56, %57 : vector<1x32xi1>, vector<1x32xf32>
    %c0_43 = arith.constant 0 : index
    %c0_44 = arith.constant 0 : index
    %c0_45 = arith.constant 0 : index
    %59 = vector.load %arg10[%c0_43, %c0_44, %c0_45] : memref<2x1x32xf32, #tpu.memory_space<vmem>>, vector<1x1x32xf32>
    %60 = vector.shape_cast %59 : vector<1x1x32xf32> to vector<1x32xf32>
    %c0_46 = arith.constant 0 : index
    %c0_47 = arith.constant 0 : index
    %c0_48 = arith.constant 0 : index
    %61 = vector.load %arg11[%c0_46, %c0_47, %c0_48] : memref<2x1x32xf32, #tpu.memory_space<vmem>>, vector<1x1x32xf32>
    %62 = vector.shape_cast %61 : vector<1x1x32xf32> to vector<1x32xf32>
    %c0_49 = arith.constant 0 : index
    %c0_50 = arith.constant 0 : index
    %c0_51 = arith.constant 0 : index
    %63 = vector.load %arg12[%c0_49, %c0_50, %c0_51] : memref<2x32x96xbf16, #tpu.memory_space<vmem>>, vector<1x32x96xbf16>
    %64 = vector.shape_cast %63 : vector<1x32x96xbf16> to vector<32x96xbf16>
    %c0_52 = arith.constant 0 : index
    %c0_53 = arith.constant 0 : index
    %c0_54 = arith.constant 0 : index
    %65 = vector.load %arg13[%c0_52, %c0_53, %c0_54] : memref<2x1x96xf32, #tpu.memory_space<vmem>>, vector<1x1x96xf32>
    %66 = vector.shape_cast %65 : vector<1x1x96xf32> to vector<1x96xf32>
    %c0_55 = arith.constant 0 : index
    %c0_56 = arith.constant 0 : index
    %c0_57 = arith.constant 0 : index
    %67 = vector.load %arg14[%c0_55, %c0_56, %c0_57] : memref<2x32x32xbf16, #tpu.memory_space<vmem>>, vector<1x32x32xbf16>
    %68 = vector.shape_cast %67 : vector<1x32x32xbf16> to vector<32x32xbf16>
    %c0_58 = arith.constant 0 : index
    %c0_59 = arith.constant 0 : index
    %c0_60 = arith.constant 0 : index
    %69 = vector.load %arg15[%c0_58, %c0_59, %c0_60] : memref<2x1x32xf32, #tpu.memory_space<vmem>>, vector<1x1x32xf32>
    %70 = vector.shape_cast %69 : vector<1x1x32xf32> to vector<1x32xf32>
    %c0_61 = arith.constant 0 : index
    %c0_62 = arith.constant 0 : index
    %c0_63 = arith.constant 0 : index
    %71 = vector.load %arg16[%c0_61, %c0_62, %c0_63] : memref<2x1x32xf32, #tpu.memory_space<vmem>>, vector<1x1x32xf32>
    %72 = vector.shape_cast %71 : vector<1x1x32xf32> to vector<1x32xf32>
    %c0_64 = arith.constant 0 : index
    %c0_65 = arith.constant 0 : index
    %c0_66 = arith.constant 0 : index
    %73 = vector.load %arg17[%c0_64, %c0_65, %c0_66] : memref<2x1x32xf32, #tpu.memory_space<vmem>>, vector<1x1x32xf32>
    %74 = vector.shape_cast %73 : vector<1x1x32xf32> to vector<1x32xf32>
    %c0_67 = arith.constant 0 : index
    %c0_68 = arith.constant 0 : index
    %c0_69 = arith.constant 0 : index
    %75 = vector.load %arg18[%c0_67, %c0_68, %c0_69] : memref<2x32x64xbf16, #tpu.memory_space<vmem>>, vector<1x32x64xbf16>
    %76 = vector.shape_cast %75 : vector<1x32x64xbf16> to vector<32x64xbf16>
    %c0_70 = arith.constant 0 : index
    %c0_71 = arith.constant 0 : index
    %c0_72 = arith.constant 0 : index
    %77 = vector.load %arg19[%c0_70, %c0_71, %c0_72] : memref<2x1x64xf32, #tpu.memory_space<vmem>>, vector<1x1x64xf32>
    %78 = vector.shape_cast %77 : vector<1x1x64xf32> to vector<1x64xf32>
    %c0_73 = arith.constant 0 : index
    %c0_74 = arith.constant 0 : index
    %c0_75 = arith.constant 0 : index
    %79 = vector.load %arg20[%c0_73, %c0_74, %c0_75] : memref<2x64x32xbf16, #tpu.memory_space<vmem>>, vector<1x64x32xbf16>
    %80 = vector.shape_cast %79 : vector<1x64x32xbf16> to vector<64x32xbf16>
    %c0_76 = arith.constant 0 : index
    %c0_77 = arith.constant 0 : index
    %c0_78 = arith.constant 0 : index
    %81 = vector.load %arg21[%c0_76, %c0_77, %c0_78] : memref<2x1x32xf32, #tpu.memory_space<vmem>>, vector<1x1x32xf32>
    %82 = vector.shape_cast %81 : vector<1x1x32xf32> to vector<1x32xf32>
    %cst_79 = arith.constant dense<0.000000e+00> : vector<64xf32>
    %83 = vector.multi_reduction <add>, %52, %cst_79 [1] : vector<64x32xf32> to vector<64xf32>
    %84 = vector.shape_cast %83 : vector<64xf32> to vector<64x1xf32>
    %cst_80 = arith.constant 3.200000e+01 : f32
    %85 = vector.broadcast %cst_80 : f32 to vector<64x1xf32>
    %86 = arith.divf %84, %85 : vector<64x1xf32>
    %87 = vector.broadcast %86 : vector<64x1xf32> to vector<64x32xf32>
    %88 = arith.subf %52, %87 : vector<64x32xf32>
    %89 = arith.mulf %88, %88 : vector<64x32xf32>
    %cst_81 = arith.constant dense<0.000000e+00> : vector<64xf32>
    %90 = vector.multi_reduction <add>, %89, %cst_81 [1] : vector<64x32xf32> to vector<64xf32>
    %91 = vector.shape_cast %90 : vector<64xf32> to vector<64x1xf32>
    %cst_82 = arith.constant 3.200000e+01 : f32
    %92 = vector.broadcast %cst_82 : f32 to vector<64x1xf32>
    %93 = arith.divf %91, %92 : vector<64x1xf32>
    %cst_83 = arith.constant 9.99999997E-7 : f32
    %94 = vector.broadcast %cst_83 : f32 to vector<64x1xf32>
    %95 = arith.addf %93, %94 : vector<64x1xf32>
    %96 = math.rsqrt %95 : vector<64x1xf32>
    %97 = vector.broadcast %96 : vector<64x1xf32> to vector<64x32xf32>
    %98 = arith.mulf %88, %97 : vector<64x32xf32>
    %99 = vector.broadcast %60 : vector<1x32xf32> to vector<64x32xf32>
    %100 = arith.mulf %98, %99 : vector<64x32xf32>
    %101 = vector.broadcast %62 : vector<1x32xf32> to vector<64x32xf32>
    %102 = arith.addf %100, %101 : vector<64x32xf32>
    %103 = arith.truncf %102 : vector<64x32xf32> to vector<64x32xbf16>
    %cst_84 = arith.constant dense<0.000000e+00> : vector<64x96xf32>
    %104 = tpu.matmul %103, %64, %cst_84 {dimension_numbers = #tpu.dot_dimension_numbers<[1], [0], [0], [1], [0, 0, 1, 1], [], []>} : vector<64x32xbf16>, vector<32x96xbf16>, vector<64x96xf32> -> vector<64x96xf32>
    %105 = vector.broadcast %66 : vector<1x96xf32> to vector<64x96xf32>
    %106 = arith.addf %104, %105 : vector<64x96xf32>
    %107 = vector.extract_strided_slice %106 {offsets = [0, 0], sizes = [32, 8], strides = [1, 1]} : vector<64x96xf32> to vector<32x8xf32>
    %108 = vector.extract_strided_slice %106 {offsets = [0, 32], sizes = [32, 8], strides = [1, 1]} : vector<64x96xf32> to vector<32x8xf32>
    %109 = vector.extract_strided_slice %106 {offsets = [0, 64], sizes = [32, 8], strides = [1, 1]} : vector<64x96xf32> to vector<32x8xf32>
    %110 = arith.truncf %107 : vector<32x8xf32> to vector<32x8xbf16>
    %111 = arith.truncf %108 : vector<32x8xf32> to vector<32x8xbf16>
    %cst_85 = arith.constant dense<0.000000e+00> : vector<32x32xf32>
    %112 = tpu.matmul %110, %111, %cst_85 {dimension_numbers = #tpu.dot_dimension_numbers<[1], [1], [0], [0], [0, 0, 1, 0], [], []>} : vector<32x8xbf16>, vector<32x8xbf16>, vector<32x32xf32> -> vector<32x32xf32>
    %cst_86 = arith.constant 0.353553385 : f32
    %113 = vector.broadcast %cst_86 : f32 to vector<32x32xf32>
    %114 = arith.mulf %112, %113 : vector<32x32xf32>
    %115 = vector.broadcast %58 : vector<1x32xf32> to vector<32x32xf32>
    %116 = arith.addf %114, %115 : vector<32x32xf32>
    %cst_87 = arith.constant dense<0xFF800000> : vector<32xf32>
    %117 = vector.multi_reduction <maximumf>, %116, %cst_87 [1] : vector<32x32xf32> to vector<32xf32>
    %118 = vector.shape_cast %117 : vector<32xf32> to vector<32x1xf32>
    %119 = vector.broadcast %118 : vector<32x1xf32> to vector<32x32xf32>
    %120 = arith.subf %116, %119 : vector<32x32xf32>
    %121 = math.exp %120 : vector<32x32xf32>
    %cst_88 = arith.constant dense<0.000000e+00> : vector<32xf32>
    %122 = vector.multi_reduction <add>, %121, %cst_88 [1] : vector<32x32xf32> to vector<32xf32>
    %123 = vector.shape_cast %122 : vector<32xf32> to vector<32x1xf32>
    %124 = tpu.reciprocal %123 {approx = true} : vector<32x1xf32> -> vector<32x1xf32>
    %125 = vector.broadcast %124 : vector<32x1xf32> to vector<32x32xf32>
    %126 = arith.mulf %121, %125 : vector<32x32xf32>
    %127 = arith.truncf %126 : vector<32x32xf32> to vector<32x32xbf16>
    %128 = arith.truncf %109 : vector<32x8xf32> to vector<32x8xbf16>
    %cst_89 = arith.constant dense<0.000000e+00> : vector<32x8xf32>
    %129 = tpu.matmul %127, %128, %cst_89 {dimension_numbers = #tpu.dot_dimension_numbers<[1], [0], [0], [1], [0, 0, 1, 1], [], []>} : vector<32x32xbf16>, vector<32x8xbf16>, vector<32x8xf32> -> vector<32x8xf32>
    %c0_90 = arith.constant 0 : index
    %c0_91 = arith.constant 0 : index
    %130 = vector.load %arg27[%c0_90, %c0_91] : memref<64x32xf32, #tpu.memory_space<vmem>>, vector<32x8xf32>
    tpu.vector_store %arg27[%c0_90, %c0_91], %129 {strides = array<i32>} : memref<64x32xf32, #tpu.memory_space<vmem>>, vector<32x8xf32>,
    %131 = vector.extract_strided_slice %106 {offsets = [0, 8], sizes = [32, 8], strides = [1, 1]} : vector<64x96xf32> to vector<32x8xf32>
    %132 = vector.extract_strided_slice %106 {offsets = [0, 40], sizes = [32, 8], strides = [1, 1]} : vector<64x96xf32> to vector<32x8xf32>
    %133 = vector.extract_strided_slice %106 {offsets = [0, 72], sizes = [32, 8], strides = [1, 1]} : vector<64x96xf32> to vector<32x8xf32>
    %134 = arith.truncf %131 : vector<32x8xf32> to vector<32x8xbf16>
    %135 = arith.truncf %132 : vector<32x8xf32> to vector<32x8xbf16>
    %cst_92 = arith.constant dense<0.000000e+00> : vector<32x32xf32>
    %136 = tpu.matmul %134, %135, %cst_92 {dimension_numbers = #tpu.dot_dimension_numbers<[1], [1], [0], [0], [0, 0, 1, 0], [], []>} : vector<32x8xbf16>, vector<32x8xbf16>, vector<32x32xf32> -> vector<32x32xf32>
    %cst_93 = arith.constant 0.353553385 : f32
    %137 = vector.broadcast %cst_93 : f32 to vector<32x32xf32>
    %138 = arith.mulf %136, %137 : vector<32x32xf32>
    %139 = vector.broadcast %58 : vector<1x32xf32> to vector<32x32xf32>
    %140 = arith.addf %138, %139 : vector<32x32xf32>
    %cst_94 = arith.constant dense<0xFF800000> : vector<32xf32>
    %141 = vector.multi_reduction <maximumf>, %140, %cst_94 [1] : vector<32x32xf32> to vector<32xf32>
    %142 = vector.shape_cast %141 : vector<32xf32> to vector<32x1xf32>
    %143 = vector.broadcast %142 : vector<32x1xf32> to vector<32x32xf32>
    %144 = arith.subf %140, %143 : vector<32x32xf32>
    %145 = math.exp %144 : vector<32x32xf32>
    %cst_95 = arith.constant dense<0.000000e+00> : vector<32xf32>
    %146 = vector.multi_reduction <add>, %145, %cst_95 [1] : vector<32x32xf32> to vector<32xf32>
    %147 = vector.shape_cast %146 : vector<32xf32> to vector<32x1xf32>
    %148 = tpu.reciprocal %147 {approx = true} : vector<32x1xf32> -> vector<32x1xf32>
    %149 = vector.broadcast %148 : vector<32x1xf32> to vector<32x32xf32>
    %150 = arith.mulf %145, %149 : vector<32x32xf32>
    %151 = arith.truncf %150 : vector<32x32xf32> to vector<32x32xbf16>
    %152 = arith.truncf %133 : vector<32x8xf32> to vector<32x8xbf16>
    %cst_96 = arith.constant dense<0.000000e+00> : vector<32x8xf32>
    %153 = tpu.matmul %151, %152, %cst_96 {dimension_numbers = #tpu.dot_dimension_numbers<[1], [0], [0], [1], [0, 0, 1, 1], [], []>} : vector<32x32xbf16>, vector<32x8xbf16>, vector<32x8xf32> -> vector<32x8xf32>
    %c0_97 = arith.constant 0 : index
    %c8 = arith.constant 8 : index
    %154 = vector.load %arg27[%c0_97, %c8] : memref<64x32xf32, #tpu.memory_space<vmem>>, vector<32x8xf32>
    tpu.vector_store %arg27[%c0_97, %c8], %153 {strides = array<i32>} : memref<64x32xf32, #tpu.memory_space<vmem>>, vector<32x8xf32>,
    %155 = vector.extract_strided_slice %106 {offsets = [0, 16], sizes = [32, 8], strides = [1, 1]} : vector<64x96xf32> to vector<32x8xf32>
    %156 = vector.extract_strided_slice %106 {offsets = [0, 48], sizes = [32, 8], strides = [1, 1]} : vector<64x96xf32> to vector<32x8xf32>
    %157 = vector.extract_strided_slice %106 {offsets = [0, 80], sizes = [32, 8], strides = [1, 1]} : vector<64x96xf32> to vector<32x8xf32>
    %158 = arith.truncf %155 : vector<32x8xf32> to vector<32x8xbf16>
    %159 = arith.truncf %156 : vector<32x8xf32> to vector<32x8xbf16>
    %cst_98 = arith.constant dense<0.000000e+00> : vector<32x32xf32>
    %160 = tpu.matmul %158, %159, %cst_98 {dimension_numbers = #tpu.dot_dimension_numbers<[1], [1], [0], [0], [0, 0, 1, 0], [], []>} : vector<32x8xbf16>, vector<32x8xbf16>, vector<32x32xf32> -> vector<32x32xf32>
    %cst_99 = arith.constant 0.353553385 : f32
    %161 = vector.broadcast %cst_99 : f32 to vector<32x32xf32>
    %162 = arith.mulf %160, %161 : vector<32x32xf32>
    %163 = vector.broadcast %58 : vector<1x32xf32> to vector<32x32xf32>
    %164 = arith.addf %162, %163 : vector<32x32xf32>
    %cst_100 = arith.constant dense<0xFF800000> : vector<32xf32>
    %165 = vector.multi_reduction <maximumf>, %164, %cst_100 [1] : vector<32x32xf32> to vector<32xf32>
    %166 = vector.shape_cast %165 : vector<32xf32> to vector<32x1xf32>
    %167 = vector.broadcast %166 : vector<32x1xf32> to vector<32x32xf32>
    %168 = arith.subf %164, %167 : vector<32x32xf32>
    %169 = math.exp %168 : vector<32x32xf32>
    %cst_101 = arith.constant dense<0.000000e+00> : vector<32xf32>
    %170 = vector.multi_reduction <add>, %169, %cst_101 [1] : vector<32x32xf32> to vector<32xf32>
    %171 = vector.shape_cast %170 : vector<32xf32> to vector<32x1xf32>
    %172 = tpu.reciprocal %171 {approx = true} : vector<32x1xf32> -> vector<32x1xf32>
    %173 = vector.broadcast %172 : vector<32x1xf32> to vector<32x32xf32>
    %174 = arith.mulf %169, %173 : vector<32x32xf32>
    %175 = arith.truncf %174 : vector<32x32xf32> to vector<32x32xbf16>
    %176 = arith.truncf %157 : vector<32x8xf32> to vector<32x8xbf16>
    %cst_102 = arith.constant dense<0.000000e+00> : vector<32x8xf32>
    %177 = tpu.matmul %175, %176, %cst_102 {dimension_numbers = #tpu.dot_dimension_numbers<[1], [0], [0], [1], [0, 0, 1, 1], [], []>} : vector<32x32xbf16>, vector<32x8xbf16>, vector<32x8xf32> -> vector<32x8xf32>
    %c0_103 = arith.constant 0 : index
    %c16 = arith.constant 16 : index
    %178 = vector.load %arg27[%c0_103, %c16] : memref<64x32xf32, #tpu.memory_space<vmem>>, vector<32x8xf32>
    tpu.vector_store %arg27[%c0_103, %c16], %177 {strides = array<i32>} : memref<64x32xf32, #tpu.memory_space<vmem>>, vector<32x8xf32>,
    %179 = vector.extract_strided_slice %106 {offsets = [0, 24], sizes = [32, 8], strides = [1, 1]} : vector<64x96xf32> to vector<32x8xf32>
    %180 = vector.extract_strided_slice %106 {offsets = [0, 56], sizes = [32, 8], strides = [1, 1]} : vector<64x96xf32> to vector<32x8xf32>
    %181 = vector.extract_strided_slice %106 {offsets = [0, 88], sizes = [32, 8], strides = [1, 1]} : vector<64x96xf32> to vector<32x8xf32>
    %182 = arith.truncf %179 : vector<32x8xf32> to vector<32x8xbf16>
    %183 = arith.truncf %180 : vector<32x8xf32> to vector<32x8xbf16>
    %cst_104 = arith.constant dense<0.000000e+00> : vector<32x32xf32>
    %184 = tpu.matmul %182, %183, %cst_104 {dimension_numbers = #tpu.dot_dimension_numbers<[1], [1], [0], [0], [0, 0, 1, 0], [], []>} : vector<32x8xbf16>, vector<32x8xbf16>, vector<32x32xf32> -> vector<32x32xf32>
    %cst_105 = arith.constant 0.353553385 : f32
    %185 = vector.broadcast %cst_105 : f32 to vector<32x32xf32>
    %186 = arith.mulf %184, %185 : vector<32x32xf32>
    %187 = vector.broadcast %58 : vector<1x32xf32> to vector<32x32xf32>
    %188 = arith.addf %186, %187 : vector<32x32xf32>
    %cst_106 = arith.constant dense<0xFF800000> : vector<32xf32>
    %189 = vector.multi_reduction <maximumf>, %188, %cst_106 [1] : vector<32x32xf32> to vector<32xf32>
    %190 = vector.shape_cast %189 : vector<32xf32> to vector<32x1xf32>
    %191 = vector.broadcast %190 : vector<32x1xf32> to vector<32x32xf32>
    %192 = arith.subf %188, %191 : vector<32x32xf32>
    %193 = math.exp %192 : vector<32x32xf32>
    %cst_107 = arith.constant dense<0.000000e+00> : vector<32xf32>
    %194 = vector.multi_reduction <add>, %193, %cst_107 [1] : vector<32x32xf32> to vector<32xf32>
    %195 = vector.shape_cast %194 : vector<32xf32> to vector<32x1xf32>
    %196 = tpu.reciprocal %195 {approx = true} : vector<32x1xf32> -> vector<32x1xf32>
    %197 = vector.broadcast %196 : vector<32x1xf32> to vector<32x32xf32>
    %198 = arith.mulf %193, %197 : vector<32x32xf32>
    %199 = arith.truncf %198 : vector<32x32xf32> to vector<32x32xbf16>
    %200 = arith.truncf %181 : vector<32x8xf32> to vector<32x8xbf16>
    %cst_108 = arith.constant dense<0.000000e+00> : vector<32x8xf32>
    %201 = tpu.matmul %199, %200, %cst_108 {dimension_numbers = #tpu.dot_dimension_numbers<[1], [0], [0], [1], [0, 0, 1, 1], [], []>} : vector<32x32xbf16>, vector<32x8xbf16>, vector<32x8xf32> -> vector<32x8xf32>
    %c0_109 = arith.constant 0 : index
    %c24 = arith.constant 24 : index
    %202 = vector.load %arg27[%c0_109, %c24] : memref<64x32xf32, #tpu.memory_space<vmem>>, vector<32x8xf32>
    tpu.vector_store %arg27[%c0_109, %c24], %201 {strides = array<i32>} : memref<64x32xf32, #tpu.memory_space<vmem>>, vector<32x8xf32>,
    %203 = vector.extract_strided_slice %106 {offsets = [32, 0], sizes = [32, 8], strides = [1, 1]} : vector<64x96xf32> to vector<32x8xf32>
    %204 = vector.extract_strided_slice %106 {offsets = [32, 32], sizes = [32, 8], strides = [1, 1]} : vector<64x96xf32> to vector<32x8xf32>
    %205 = vector.extract_strided_slice %106 {offsets = [32, 64], sizes = [32, 8], strides = [1, 1]} : vector<64x96xf32> to vector<32x8xf32>
    %206 = arith.truncf %203 : vector<32x8xf32> to vector<32x8xbf16>
    %207 = arith.truncf %204 : vector<32x8xf32> to vector<32x8xbf16>
    %cst_110 = arith.constant dense<0.000000e+00> : vector<32x32xf32>
    %208 = tpu.matmul %206, %207, %cst_110 {dimension_numbers = #tpu.dot_dimension_numbers<[1], [1], [0], [0], [0, 0, 1, 0], [], []>} : vector<32x8xbf16>, vector<32x8xbf16>, vector<32x32xf32> -> vector<32x32xf32>
    %cst_111 = arith.constant 0.353553385 : f32
    %209 = vector.broadcast %cst_111 : f32 to vector<32x32xf32>
    %210 = arith.mulf %208, %209 : vector<32x32xf32>
    %211 = vector.broadcast %58 : vector<1x32xf32> to vector<32x32xf32>
    %212 = arith.addf %210, %211 : vector<32x32xf32>
    %cst_112 = arith.constant dense<0xFF800000> : vector<32xf32>
    %213 = vector.multi_reduction <maximumf>, %212, %cst_112 [1] : vector<32x32xf32> to vector<32xf32>
    %214 = vector.shape_cast %213 : vector<32xf32> to vector<32x1xf32>
    %215 = vector.broadcast %214 : vector<32x1xf32> to vector<32x32xf32>
    %216 = arith.subf %212, %215 : vector<32x32xf32>
    %217 = math.exp %216 : vector<32x32xf32>
    %cst_113 = arith.constant dense<0.000000e+00> : vector<32xf32>
    %218 = vector.multi_reduction <add>, %217, %cst_113 [1] : vector<32x32xf32> to vector<32xf32>
    %219 = vector.shape_cast %218 : vector<32xf32> to vector<32x1xf32>
    %220 = tpu.reciprocal %219 {approx = true} : vector<32x1xf32> -> vector<32x1xf32>
    %221 = vector.broadcast %220 : vector<32x1xf32> to vector<32x32xf32>
    %222 = arith.mulf %217, %221 : vector<32x32xf32>
    %223 = arith.truncf %222 : vector<32x32xf32> to vector<32x32xbf16>
    %224 = arith.truncf %205 : vector<32x8xf32> to vector<32x8xbf16>
    %cst_114 = arith.constant dense<0.000000e+00> : vector<32x8xf32>
    %225 = tpu.matmul %223, %224, %cst_114 {dimension_numbers = #tpu.dot_dimension_numbers<[1], [0], [0], [1], [0, 0, 1, 1], [], []>} : vector<32x32xbf16>, vector<32x8xbf16>, vector<32x8xf32> -> vector<32x8xf32>
    %c32_115 = arith.constant 32 : index
    %c0_116 = arith.constant 0 : index
    %226 = vector.load %arg27[%c32_115, %c0_116] : memref<64x32xf32, #tpu.memory_space<vmem>>, vector<32x8xf32>
    tpu.vector_store %arg27[%c32_115, %c0_116], %225 {strides = array<i32>} : memref<64x32xf32, #tpu.memory_space<vmem>>, vector<32x8xf32>,
    %227 = vector.extract_strided_slice %106 {offsets = [32, 8], sizes = [32, 8], strides = [1, 1]} : vector<64x96xf32> to vector<32x8xf32>
    %228 = vector.extract_strided_slice %106 {offsets = [32, 40], sizes = [32, 8], strides = [1, 1]} : vector<64x96xf32> to vector<32x8xf32>
    %229 = vector.extract_strided_slice %106 {offsets = [32, 72], sizes = [32, 8], strides = [1, 1]} : vector<64x96xf32> to vector<32x8xf32>
    %230 = arith.truncf %227 : vector<32x8xf32> to vector<32x8xbf16>
    %231 = arith.truncf %228 : vector<32x8xf32> to vector<32x8xbf16>
    %cst_117 = arith.constant dense<0.000000e+00> : vector<32x32xf32>
    %232 = tpu.matmul %230, %231, %cst_117 {dimension_numbers = #tpu.dot_dimension_numbers<[1], [1], [0], [0], [0, 0, 1, 0], [], []>} : vector<32x8xbf16>, vector<32x8xbf16>, vector<32x32xf32> -> vector<32x32xf32>
    %cst_118 = arith.constant 0.353553385 : f32
    %233 = vector.broadcast %cst_118 : f32 to vector<32x32xf32>
    %234 = arith.mulf %232, %233 : vector<32x32xf32>
    %235 = vector.broadcast %58 : vector<1x32xf32> to vector<32x32xf32>
    %236 = arith.addf %234, %235 : vector<32x32xf32>
    %cst_119 = arith.constant dense<0xFF800000> : vector<32xf32>
    %237 = vector.multi_reduction <maximumf>, %236, %cst_119 [1] : vector<32x32xf32> to vector<32xf32>
    %238 = vector.shape_cast %237 : vector<32xf32> to vector<32x1xf32>
    %239 = vector.broadcast %238 : vector<32x1xf32> to vector<32x32xf32>
    %240 = arith.subf %236, %239 : vector<32x32xf32>
    %241 = math.exp %240 : vector<32x32xf32>
    %cst_120 = arith.constant dense<0.000000e+00> : vector<32xf32>
    %242 = vector.multi_reduction <add>, %241, %cst_120 [1] : vector<32x32xf32> to vector<32xf32>
    %243 = vector.shape_cast %242 : vector<32xf32> to vector<32x1xf32>
    %244 = tpu.reciprocal %243 {approx = true} : vector<32x1xf32> -> vector<32x1xf32>
    %245 = vector.broadcast %244 : vector<32x1xf32> to vector<32x32xf32>
    %246 = arith.mulf %241, %245 : vector<32x32xf32>
    %247 = arith.truncf %246 : vector<32x32xf32> to vector<32x32xbf16>
    %248 = arith.truncf %229 : vector<32x8xf32> to vector<32x8xbf16>
    %cst_121 = arith.constant dense<0.000000e+00> : vector<32x8xf32>
    %249 = tpu.matmul %247, %248, %cst_121 {dimension_numbers = #tpu.dot_dimension_numbers<[1], [0], [0], [1], [0, 0, 1, 1], [], []>} : vector<32x32xbf16>, vector<32x8xbf16>, vector<32x8xf32> -> vector<32x8xf32>
    %c32_122 = arith.constant 32 : index
    %c8_123 = arith.constant 8 : index
    %250 = vector.load %arg27[%c32_122, %c8_123] : memref<64x32xf32, #tpu.memory_space<vmem>>, vector<32x8xf32>
    tpu.vector_store %arg27[%c32_122, %c8_123], %249 {strides = array<i32>} : memref<64x32xf32, #tpu.memory_space<vmem>>, vector<32x8xf32>,
    %251 = vector.extract_strided_slice %106 {offsets = [32, 16], sizes = [32, 8], strides = [1, 1]} : vector<64x96xf32> to vector<32x8xf32>
    %252 = vector.extract_strided_slice %106 {offsets = [32, 48], sizes = [32, 8], strides = [1, 1]} : vector<64x96xf32> to vector<32x8xf32>
    %253 = vector.extract_strided_slice %106 {offsets = [32, 80], sizes = [32, 8], strides = [1, 1]} : vector<64x96xf32> to vector<32x8xf32>
    %254 = arith.truncf %251 : vector<32x8xf32> to vector<32x8xbf16>
    %255 = arith.truncf %252 : vector<32x8xf32> to vector<32x8xbf16>
    %cst_124 = arith.constant dense<0.000000e+00> : vector<32x32xf32>
    %256 = tpu.matmul %254, %255, %cst_124 {dimension_numbers = #tpu.dot_dimension_numbers<[1], [1], [0], [0], [0, 0, 1, 0], [], []>} : vector<32x8xbf16>, vector<32x8xbf16>, vector<32x32xf32> -> vector<32x32xf32>
    %cst_125 = arith.constant 0.353553385 : f32
    %257 = vector.broadcast %cst_125 : f32 to vector<32x32xf32>
    %258 = arith.mulf %256, %257 : vector<32x32xf32>
    %259 = vector.broadcast %58 : vector<1x32xf32> to vector<32x32xf32>
    %260 = arith.addf %258, %259 : vector<32x32xf32>
    %cst_126 = arith.constant dense<0xFF800000> : vector<32xf32>
    %261 = vector.multi_reduction <maximumf>, %260, %cst_126 [1] : vector<32x32xf32> to vector<32xf32>
    %262 = vector.shape_cast %261 : vector<32xf32> to vector<32x1xf32>
    %263 = vector.broadcast %262 : vector<32x1xf32> to vector<32x32xf32>
    %264 = arith.subf %260, %263 : vector<32x32xf32>
    %265 = math.exp %264 : vector<32x32xf32>
    %cst_127 = arith.constant dense<0.000000e+00> : vector<32xf32>
    %266 = vector.multi_reduction <add>, %265, %cst_127 [1] : vector<32x32xf32> to vector<32xf32>
    %267 = vector.shape_cast %266 : vector<32xf32> to vector<32x1xf32>
    %268 = tpu.reciprocal %267 {approx = true} : vector<32x1xf32> -> vector<32x1xf32>
    %269 = vector.broadcast %268 : vector<32x1xf32> to vector<32x32xf32>
    %270 = arith.mulf %265, %269 : vector<32x32xf32>
    %271 = arith.truncf %270 : vector<32x32xf32> to vector<32x32xbf16>
    %272 = arith.truncf %253 : vector<32x8xf32> to vector<32x8xbf16>
    %cst_128 = arith.constant dense<0.000000e+00> : vector<32x8xf32>
    %273 = tpu.matmul %271, %272, %cst_128 {dimension_numbers = #tpu.dot_dimension_numbers<[1], [0], [0], [1], [0, 0, 1, 1], [], []>} : vector<32x32xbf16>, vector<32x8xbf16>, vector<32x8xf32> -> vector<32x8xf32>
    %c32_129 = arith.constant 32 : index
    %c16_130 = arith.constant 16 : index
    %274 = vector.load %arg27[%c32_129, %c16_130] : memref<64x32xf32, #tpu.memory_space<vmem>>, vector<32x8xf32>
    tpu.vector_store %arg27[%c32_129, %c16_130], %273 {strides = array<i32>} : memref<64x32xf32, #tpu.memory_space<vmem>>, vector<32x8xf32>,
    %275 = vector.extract_strided_slice %106 {offsets = [32, 24], sizes = [32, 8], strides = [1, 1]} : vector<64x96xf32> to vector<32x8xf32>
    %276 = vector.extract_strided_slice %106 {offsets = [32, 56], sizes = [32, 8], strides = [1, 1]} : vector<64x96xf32> to vector<32x8xf32>
    %277 = vector.extract_strided_slice %106 {offsets = [32, 88], sizes = [32, 8], strides = [1, 1]} : vector<64x96xf32> to vector<32x8xf32>
    %278 = arith.truncf %275 : vector<32x8xf32> to vector<32x8xbf16>
    %279 = arith.truncf %276 : vector<32x8xf32> to vector<32x8xbf16>
    %cst_131 = arith.constant dense<0.000000e+00> : vector<32x32xf32>
    %280 = tpu.matmul %278, %279, %cst_131 {dimension_numbers = #tpu.dot_dimension_numbers<[1], [1], [0], [0], [0, 0, 1, 0], [], []>} : vector<32x8xbf16>, vector<32x8xbf16>, vector<32x32xf32> -> vector<32x32xf32>
    %cst_132 = arith.constant 0.353553385 : f32
    %281 = vector.broadcast %cst_132 : f32 to vector<32x32xf32>
    %282 = arith.mulf %280, %281 : vector<32x32xf32>
    %283 = vector.broadcast %58 : vector<1x32xf32> to vector<32x32xf32>
    %284 = arith.addf %282, %283 : vector<32x32xf32>
    %cst_133 = arith.constant dense<0xFF800000> : vector<32xf32>
    %285 = vector.multi_reduction <maximumf>, %284, %cst_133 [1] : vector<32x32xf32> to vector<32xf32>
    %286 = vector.shape_cast %285 : vector<32xf32> to vector<32x1xf32>
    %287 = vector.broadcast %286 : vector<32x1xf32> to vector<32x32xf32>
    %288 = arith.subf %284, %287 : vector<32x32xf32>
    %289 = math.exp %288 : vector<32x32xf32>
    %cst_134 = arith.constant dense<0.000000e+00> : vector<32xf32>
    %290 = vector.multi_reduction <add>, %289, %cst_134 [1] : vector<32x32xf32> to vector<32xf32>
    %291 = vector.shape_cast %290 : vector<32xf32> to vector<32x1xf32>
    %292 = tpu.reciprocal %291 {approx = true} : vector<32x1xf32> -> vector<32x1xf32>
    %293 = vector.broadcast %292 : vector<32x1xf32> to vector<32x32xf32>
    %294 = arith.mulf %289, %293 : vector<32x32xf32>
    %295 = arith.truncf %294 : vector<32x32xf32> to vector<32x32xbf16>
    %296 = arith.truncf %277 : vector<32x8xf32> to vector<32x8xbf16>
    %cst_135 = arith.constant dense<0.000000e+00> : vector<32x8xf32>
    %297 = tpu.matmul %295, %296, %cst_135 {dimension_numbers = #tpu.dot_dimension_numbers<[1], [0], [0], [1], [0, 0, 1, 1], [], []>} : vector<32x32xbf16>, vector<32x8xbf16>, vector<32x8xf32> -> vector<32x8xf32>
    %c32_136 = arith.constant 32 : index
    %c24_137 = arith.constant 24 : index
    %298 = vector.load %arg27[%c32_136, %c24_137] : memref<64x32xf32, #tpu.memory_space<vmem>>, vector<32x8xf32>
    tpu.vector_store %arg27[%c32_136, %c24_137], %297 {strides = array<i32>} : memref<64x32xf32, #tpu.memory_space<vmem>>, vector<32x8xf32>,
    %c0_138 = arith.constant 0 : index
    %c0_139 = arith.constant 0 : index
    %299 = vector.load %arg27[%c0_138, %c0_139] : memref<64x32xf32, #tpu.memory_space<vmem>>, vector<64x32xf32>
    %300 = arith.truncf %299 : vector<64x32xf32> to vector<64x32xbf16>
    %cst_140 = arith.constant dense<0.000000e+00> : vector<64x32xf32>
    %301 = tpu.matmul %300, %68, %cst_140 {dimension_numbers = #tpu.dot_dimension_numbers<[1], [0], [0], [1], [0, 0, 1, 1], [], []>} : vector<64x32xbf16>, vector<32x32xbf16>, vector<64x32xf32> -> vector<64x32xf32>
    %302 = vector.broadcast %70 : vector<1x32xf32> to vector<64x32xf32>
    %303 = arith.addf %301, %302 : vector<64x32xf32>
    %304 = arith.addf %52, %303 : vector<64x32xf32>
    %cst_141 = arith.constant dense<0.000000e+00> : vector<64xf32>
    %305 = vector.multi_reduction <add>, %304, %cst_141 [1] : vector<64x32xf32> to vector<64xf32>
    %306 = vector.shape_cast %305 : vector<64xf32> to vector<64x1xf32>
    %cst_142 = arith.constant 3.200000e+01 : f32
    %307 = vector.broadcast %cst_142 : f32 to vector<64x1xf32>
    %308 = arith.divf %306, %307 : vector<64x1xf32>
    %309 = vector.broadcast %308 : vector<64x1xf32> to vector<64x32xf32>
    %310 = arith.subf %304, %309 : vector<64x32xf32>
    %311 = arith.mulf %310, %310 : vector<64x32xf32>
    %cst_143 = arith.constant dense<0.000000e+00> : vector<64xf32>
    %312 = vector.multi_reduction <add>, %311, %cst_143 [1] : vector<64x32xf32> to vector<64xf32>
    %313 = vector.shape_cast %312 : vector<64xf32> to vector<64x1xf32>
    %cst_144 = arith.constant 3.200000e+01 : f32
    %314 = vector.broadcast %cst_144 : f32 to vector<64x1xf32>
    %315 = arith.divf %313, %314 : vector<64x1xf32>
    %cst_145 = arith.constant 9.99999997E-7 : f32
    %316 = vector.broadcast %cst_145 : f32 to vector<64x1xf32>
    %317 = arith.addf %315, %316 : vector<64x1xf32>
    %318 = math.rsqrt %317 : vector<64x1xf32>
    %319 = vector.broadcast %318 : vector<64x1xf32> to vector<64x32xf32>
    %320 = arith.mulf %310, %319 : vector<64x32xf32>
    %321 = vector.broadcast %72 : vector<1x32xf32> to vector<64x32xf32>
    %322 = arith.mulf %320, %321 : vector<64x32xf32>
    %323 = vector.broadcast %74 : vector<1x32xf32> to vector<64x32xf32>
    %324 = arith.addf %322, %323 : vector<64x32xf32>
    %325 = arith.truncf %324 : vector<64x32xf32> to vector<64x32xbf16>
    %cst_146 = arith.constant dense<0.000000e+00> : vector<64x64xf32>
    %326 = tpu.matmul %325, %76, %cst_146 {dimension_numbers = #tpu.dot_dimension_numbers<[1], [0], [0], [1], [0, 0, 1, 1], [], []>} : vector<64x32xbf16>, vector<32x64xbf16>, vector<64x64xf32> -> vector<64x64xf32>
    %327 = vector.broadcast %78 : vector<1x64xf32> to vector<64x64xf32>
    %328 = arith.addf %326, %327 : vector<64x64xf32>
    %cst_147 = arith.constant 5.000000e-01 : f32
    %329 = vector.broadcast %cst_147 : f32 to vector<64x64xf32>
    %330 = arith.mulf %329, %328 : vector<64x64xf32>
    %cst_148 = arith.constant 0.707106769 : f32
    %331 = vector.broadcast %cst_148 : f32 to vector<64x64xf32>
    %332 = arith.mulf %328, %331 : vector<64x64xf32>
    %333 = math.erf %332 : vector<64x64xf32>
    %cst_149 = arith.constant 1.000000e+00 : f32
    %334 = vector.broadcast %cst_149 : f32 to vector<64x64xf32>
    %335 = arith.addf %334, %333 : vector<64x64xf32>
    %336 = arith.mulf %330, %335 : vector<64x64xf32>
    %337 = arith.truncf %336 : vector<64x64xf32> to vector<64x64xbf16>
    %cst_150 = arith.constant dense<0.000000e+00> : vector<64x32xf32>
    %338 = tpu.matmul %337, %80, %cst_150 {dimension_numbers = #tpu.dot_dimension_numbers<[1], [0], [0], [1], [0, 0, 1, 1], [], []>} : vector<64x64xbf16>, vector<64x32xbf16>, vector<64x32xf32> -> vector<64x32xf32>
    %339 = vector.broadcast %82 : vector<1x32xf32> to vector<64x32xf32>
    %340 = arith.addf %338, %339 : vector<64x32xf32>
    %341 = arith.addf %304, %340 : vector<64x32xf32>
    %c1_151 = arith.constant 1 : index
    %c0_152 = arith.constant 0 : index
    %c0_153 = arith.constant 0 : index
    %342 = vector.load %arg10[%c1_151, %c0_152, %c0_153] : memref<2x1x32xf32, #tpu.memory_space<vmem>>, vector<1x1x32xf32>
    %343 = vector.shape_cast %342 : vector<1x1x32xf32> to vector<1x32xf32>
    %c1_154 = arith.constant 1 : index
    %c0_155 = arith.constant 0 : index
    %c0_156 = arith.constant 0 : index
    %344 = vector.load %arg11[%c1_154, %c0_155, %c0_156] : memref<2x1x32xf32, #tpu.memory_space<vmem>>, vector<1x1x32xf32>
    %345 = vector.shape_cast %344 : vector<1x1x32xf32> to vector<1x32xf32>
    %c1_157 = arith.constant 1 : index
    %c0_158 = arith.constant 0 : index
    %c0_159 = arith.constant 0 : index
    %346 = vector.load %arg12[%c1_157, %c0_158, %c0_159] : memref<2x32x96xbf16, #tpu.memory_space<vmem>>, vector<1x32x96xbf16>
    %347 = vector.shape_cast %346 : vector<1x32x96xbf16> to vector<32x96xbf16>
    %c1_160 = arith.constant 1 : index
    %c0_161 = arith.constant 0 : index
    %c0_162 = arith.constant 0 : index
    %348 = vector.load %arg13[%c1_160, %c0_161, %c0_162] : memref<2x1x96xf32, #tpu.memory_space<vmem>>, vector<1x1x96xf32>
    %349 = vector.shape_cast %348 : vector<1x1x96xf32> to vector<1x96xf32>
    %c1_163 = arith.constant 1 : index
    %c0_164 = arith.constant 0 : index
    %c0_165 = arith.constant 0 : index
    %350 = vector.load %arg14[%c1_163, %c0_164, %c0_165] : memref<2x32x32xbf16, #tpu.memory_space<vmem>>, vector<1x32x32xbf16>
    %351 = vector.shape_cast %350 : vector<1x32x32xbf16> to vector<32x32xbf16>
    %c1_166 = arith.constant 1 : index
    %c0_167 = arith.constant 0 : index
    %c0_168 = arith.constant 0 : index
    %352 = vector.load %arg15[%c1_166, %c0_167, %c0_168] : memref<2x1x32xf32, #tpu.memory_space<vmem>>, vector<1x1x32xf32>
    %353 = vector.shape_cast %352 : vector<1x1x32xf32> to vector<1x32xf32>
    %c1_169 = arith.constant 1 : index
    %c0_170 = arith.constant 0 : index
    %c0_171 = arith.constant 0 : index
    %354 = vector.load %arg16[%c1_169, %c0_170, %c0_171] : memref<2x1x32xf32, #tpu.memory_space<vmem>>, vector<1x1x32xf32>
    %355 = vector.shape_cast %354 : vector<1x1x32xf32> to vector<1x32xf32>
    %c1_172 = arith.constant 1 : index
    %c0_173 = arith.constant 0 : index
    %c0_174 = arith.constant 0 : index
    %356 = vector.load %arg17[%c1_172, %c0_173, %c0_174] : memref<2x1x32xf32, #tpu.memory_space<vmem>>, vector<1x1x32xf32>
    %357 = vector.shape_cast %356 : vector<1x1x32xf32> to vector<1x32xf32>
    %c1_175 = arith.constant 1 : index
    %c0_176 = arith.constant 0 : index
    %c0_177 = arith.constant 0 : index
    %358 = vector.load %arg18[%c1_175, %c0_176, %c0_177] : memref<2x32x64xbf16, #tpu.memory_space<vmem>>, vector<1x32x64xbf16>
    %359 = vector.shape_cast %358 : vector<1x32x64xbf16> to vector<32x64xbf16>
    %c1_178 = arith.constant 1 : index
    %c0_179 = arith.constant 0 : index
    %c0_180 = arith.constant 0 : index
    %360 = vector.load %arg19[%c1_178, %c0_179, %c0_180] : memref<2x1x64xf32, #tpu.memory_space<vmem>>, vector<1x1x64xf32>
    %361 = vector.shape_cast %360 : vector<1x1x64xf32> to vector<1x64xf32>
    %c1_181 = arith.constant 1 : index
    %c0_182 = arith.constant 0 : index
    %c0_183 = arith.constant 0 : index
    %362 = vector.load %arg20[%c1_181, %c0_182, %c0_183] : memref<2x64x32xbf16, #tpu.memory_space<vmem>>, vector<1x64x32xbf16>
    %363 = vector.shape_cast %362 : vector<1x64x32xbf16> to vector<64x32xbf16>
    %c1_184 = arith.constant 1 : index
    %c0_185 = arith.constant 0 : index
    %c0_186 = arith.constant 0 : index
    %364 = vector.load %arg21[%c1_184, %c0_185, %c0_186] : memref<2x1x32xf32, #tpu.memory_space<vmem>>, vector<1x1x32xf32>
    %365 = vector.shape_cast %364 : vector<1x1x32xf32> to vector<1x32xf32>
    %cst_187 = arith.constant dense<0.000000e+00> : vector<64xf32>
    %366 = vector.multi_reduction <add>, %341, %cst_187 [1] : vector<64x32xf32> to vector<64xf32>
    %367 = vector.shape_cast %366 : vector<64xf32> to vector<64x1xf32>
    %cst_188 = arith.constant 3.200000e+01 : f32
    %368 = vector.broadcast %cst_188 : f32 to vector<64x1xf32>
    %369 = arith.divf %367, %368 : vector<64x1xf32>
    %370 = vector.broadcast %369 : vector<64x1xf32> to vector<64x32xf32>
    %371 = arith.subf %341, %370 : vector<64x32xf32>
    %372 = arith.mulf %371, %371 : vector<64x32xf32>
    %cst_189 = arith.constant dense<0.000000e+00> : vector<64xf32>
    %373 = vector.multi_reduction <add>, %372, %cst_189 [1] : vector<64x32xf32> to vector<64xf32>
    %374 = vector.shape_cast %373 : vector<64xf32> to vector<64x1xf32>
    %cst_190 = arith.constant 3.200000e+01 : f32
    %375 = vector.broadcast %cst_190 : f32 to vector<64x1xf32>
    %376 = arith.divf %374, %375 : vector<64x1xf32>
    %cst_191 = arith.constant 9.99999997E-7 : f32
    %377 = vector.broadcast %cst_191 : f32 to vector<64x1xf32>
    %378 = arith.addf %376, %377 : vector<64x1xf32>
    %379 = math.rsqrt %378 : vector<64x1xf32>
    %380 = vector.broadcast %379 : vector<64x1xf32> to vector<64x32xf32>
    %381 = arith.mulf %371, %380 : vector<64x32xf32>
    %382 = vector.broadcast %343 : vector<1x32xf32> to vector<64x32xf32>
    %383 = arith.mulf %381, %382 : vector<64x32xf32>
    %384 = vector.broadcast %345 : vector<1x32xf32> to vector<64x32xf32>
    %385 = arith.addf %383, %384 : vector<64x32xf32>
    %386 = arith.truncf %385 : vector<64x32xf32> to vector<64x32xbf16>
    %cst_192 = arith.constant dense<0.000000e+00> : vector<64x96xf32>
    %387 = tpu.matmul %386, %347, %cst_192 {dimension_numbers = #tpu.dot_dimension_numbers<[1], [0], [0], [1], [0, 0, 1, 1], [], []>} : vector<64x32xbf16>, vector<32x96xbf16>, vector<64x96xf32> -> vector<64x96xf32>
    %388 = vector.broadcast %349 : vector<1x96xf32> to vector<64x96xf32>
    %389 = arith.addf %387, %388 : vector<64x96xf32>
    %390 = vector.extract_strided_slice %389 {offsets = [0, 0], sizes = [32, 8], strides = [1, 1]} : vector<64x96xf32> to vector<32x8xf32>
    %391 = vector.extract_strided_slice %389 {offsets = [0, 32], sizes = [32, 8], strides = [1, 1]} : vector<64x96xf32> to vector<32x8xf32>
    %392 = vector.extract_strided_slice %389 {offsets = [0, 64], sizes = [32, 8], strides = [1, 1]} : vector<64x96xf32> to vector<32x8xf32>
    %393 = arith.truncf %390 : vector<32x8xf32> to vector<32x8xbf16>
    %394 = arith.truncf %391 : vector<32x8xf32> to vector<32x8xbf16>
    %cst_193 = arith.constant dense<0.000000e+00> : vector<32x32xf32>
    %395 = tpu.matmul %393, %394, %cst_193 {dimension_numbers = #tpu.dot_dimension_numbers<[1], [1], [0], [0], [0, 0, 1, 0], [], []>} : vector<32x8xbf16>, vector<32x8xbf16>, vector<32x32xf32> -> vector<32x32xf32>
    %cst_194 = arith.constant 0.353553385 : f32
    %396 = vector.broadcast %cst_194 : f32 to vector<32x32xf32>
    %397 = arith.mulf %395, %396 : vector<32x32xf32>
    %398 = vector.broadcast %58 : vector<1x32xf32> to vector<32x32xf32>
    %399 = arith.addf %397, %398 : vector<32x32xf32>
    %cst_195 = arith.constant dense<0xFF800000> : vector<32xf32>
    %400 = vector.multi_reduction <maximumf>, %399, %cst_195 [1] : vector<32x32xf32> to vector<32xf32>
    %401 = vector.shape_cast %400 : vector<32xf32> to vector<32x1xf32>
    %402 = vector.broadcast %401 : vector<32x1xf32> to vector<32x32xf32>
    %403 = arith.subf %399, %402 : vector<32x32xf32>
    %404 = math.exp %403 : vector<32x32xf32>
    %cst_196 = arith.constant dense<0.000000e+00> : vector<32xf32>
    %405 = vector.multi_reduction <add>, %404, %cst_196 [1] : vector<32x32xf32> to vector<32xf32>
    %406 = vector.shape_cast %405 : vector<32xf32> to vector<32x1xf32>
    %407 = tpu.reciprocal %406 {approx = true} : vector<32x1xf32> -> vector<32x1xf32>
    %408 = vector.broadcast %407 : vector<32x1xf32> to vector<32x32xf32>
    %409 = arith.mulf %404, %408 : vector<32x32xf32>
    %410 = arith.truncf %409 : vector<32x32xf32> to vector<32x32xbf16>
    %411 = arith.truncf %392 : vector<32x8xf32> to vector<32x8xbf16>
    %cst_197 = arith.constant dense<0.000000e+00> : vector<32x8xf32>
    %412 = tpu.matmul %410, %411, %cst_197 {dimension_numbers = #tpu.dot_dimension_numbers<[1], [0], [0], [1], [0, 0, 1, 1], [], []>} : vector<32x32xbf16>, vector<32x8xbf16>, vector<32x8xf32> -> vector<32x8xf32>
    %c0_198 = arith.constant 0 : index
    %c0_199 = arith.constant 0 : index
    %413 = vector.load %arg27[%c0_198, %c0_199] : memref<64x32xf32, #tpu.memory_space<vmem>>, vector<32x8xf32>
    tpu.vector_store %arg27[%c0_198, %c0_199], %412 {strides = array<i32>} : memref<64x32xf32, #tpu.memory_space<vmem>>, vector<32x8xf32>,
    %414 = vector.extract_strided_slice %389 {offsets = [0, 8], sizes = [32, 8], strides = [1, 1]} : vector<64x96xf32> to vector<32x8xf32>
    %415 = vector.extract_strided_slice %389 {offsets = [0, 40], sizes = [32, 8], strides = [1, 1]} : vector<64x96xf32> to vector<32x8xf32>
    %416 = vector.extract_strided_slice %389 {offsets = [0, 72], sizes = [32, 8], strides = [1, 1]} : vector<64x96xf32> to vector<32x8xf32>
    %417 = arith.truncf %414 : vector<32x8xf32> to vector<32x8xbf16>
    %418 = arith.truncf %415 : vector<32x8xf32> to vector<32x8xbf16>
    %cst_200 = arith.constant dense<0.000000e+00> : vector<32x32xf32>
    %419 = tpu.matmul %417, %418, %cst_200 {dimension_numbers = #tpu.dot_dimension_numbers<[1], [1], [0], [0], [0, 0, 1, 0], [], []>} : vector<32x8xbf16>, vector<32x8xbf16>, vector<32x32xf32> -> vector<32x32xf32>
    %cst_201 = arith.constant 0.353553385 : f32
    %420 = vector.broadcast %cst_201 : f32 to vector<32x32xf32>
    %421 = arith.mulf %419, %420 : vector<32x32xf32>
    %422 = vector.broadcast %58 : vector<1x32xf32> to vector<32x32xf32>
    %423 = arith.addf %421, %422 : vector<32x32xf32>
    %cst_202 = arith.constant dense<0xFF800000> : vector<32xf32>
    %424 = vector.multi_reduction <maximumf>, %423, %cst_202 [1] : vector<32x32xf32> to vector<32xf32>
    %425 = vector.shape_cast %424 : vector<32xf32> to vector<32x1xf32>
    %426 = vector.broadcast %425 : vector<32x1xf32> to vector<32x32xf32>
    %427 = arith.subf %423, %426 : vector<32x32xf32>
    %428 = math.exp %427 : vector<32x32xf32>
    %cst_203 = arith.constant dense<0.000000e+00> : vector<32xf32>
    %429 = vector.multi_reduction <add>, %428, %cst_203 [1] : vector<32x32xf32> to vector<32xf32>
    %430 = vector.shape_cast %429 : vector<32xf32> to vector<32x1xf32>
    %431 = tpu.reciprocal %430 {approx = true} : vector<32x1xf32> -> vector<32x1xf32>
    %432 = vector.broadcast %431 : vector<32x1xf32> to vector<32x32xf32>
    %433 = arith.mulf %428, %432 : vector<32x32xf32>
    %434 = arith.truncf %433 : vector<32x32xf32> to vector<32x32xbf16>
    %435 = arith.truncf %416 : vector<32x8xf32> to vector<32x8xbf16>
    %cst_204 = arith.constant dense<0.000000e+00> : vector<32x8xf32>
    %436 = tpu.matmul %434, %435, %cst_204 {dimension_numbers = #tpu.dot_dimension_numbers<[1], [0], [0], [1], [0, 0, 1, 1], [], []>} : vector<32x32xbf16>, vector<32x8xbf16>, vector<32x8xf32> -> vector<32x8xf32>
    %c0_205 = arith.constant 0 : index
    %c8_206 = arith.constant 8 : index
    %437 = vector.load %arg27[%c0_205, %c8_206] : memref<64x32xf32, #tpu.memory_space<vmem>>, vector<32x8xf32>
    tpu.vector_store %arg27[%c0_205, %c8_206], %436 {strides = array<i32>} : memref<64x32xf32, #tpu.memory_space<vmem>>, vector<32x8xf32>,
    %438 = vector.extract_strided_slice %389 {offsets = [0, 16], sizes = [32, 8], strides = [1, 1]} : vector<64x96xf32> to vector<32x8xf32>
    %439 = vector.extract_strided_slice %389 {offsets = [0, 48], sizes = [32, 8], strides = [1, 1]} : vector<64x96xf32> to vector<32x8xf32>
    %440 = vector.extract_strided_slice %389 {offsets = [0, 80], sizes = [32, 8], strides = [1, 1]} : vector<64x96xf32> to vector<32x8xf32>
    %441 = arith.truncf %438 : vector<32x8xf32> to vector<32x8xbf16>
    %442 = arith.truncf %439 : vector<32x8xf32> to vector<32x8xbf16>
    %cst_207 = arith.constant dense<0.000000e+00> : vector<32x32xf32>
    %443 = tpu.matmul %441, %442, %cst_207 {dimension_numbers = #tpu.dot_dimension_numbers<[1], [1], [0], [0], [0, 0, 1, 0], [], []>} : vector<32x8xbf16>, vector<32x8xbf16>, vector<32x32xf32> -> vector<32x32xf32>
    %cst_208 = arith.constant 0.353553385 : f32
    %444 = vector.broadcast %cst_208 : f32 to vector<32x32xf32>
    %445 = arith.mulf %443, %444 : vector<32x32xf32>
    %446 = vector.broadcast %58 : vector<1x32xf32> to vector<32x32xf32>
    %447 = arith.addf %445, %446 : vector<32x32xf32>
    %cst_209 = arith.constant dense<0xFF800000> : vector<32xf32>
    %448 = vector.multi_reduction <maximumf>, %447, %cst_209 [1] : vector<32x32xf32> to vector<32xf32>
    %449 = vector.shape_cast %448 : vector<32xf32> to vector<32x1xf32>
    %450 = vector.broadcast %449 : vector<32x1xf32> to vector<32x32xf32>
    %451 = arith.subf %447, %450 : vector<32x32xf32>
    %452 = math.exp %451 : vector<32x32xf32>
    %cst_210 = arith.constant dense<0.000000e+00> : vector<32xf32>
    %453 = vector.multi_reduction <add>, %452, %cst_210 [1] : vector<32x32xf32> to vector<32xf32>
    %454 = vector.shape_cast %453 : vector<32xf32> to vector<32x1xf32>
    %455 = tpu.reciprocal %454 {approx = true} : vector<32x1xf32> -> vector<32x1xf32>
    %456 = vector.broadcast %455 : vector<32x1xf32> to vector<32x32xf32>
    %457 = arith.mulf %452, %456 : vector<32x32xf32>
    %458 = arith.truncf %457 : vector<32x32xf32> to vector<32x32xbf16>
    %459 = arith.truncf %440 : vector<32x8xf32> to vector<32x8xbf16>
    %cst_211 = arith.constant dense<0.000000e+00> : vector<32x8xf32>
    %460 = tpu.matmul %458, %459, %cst_211 {dimension_numbers = #tpu.dot_dimension_numbers<[1], [0], [0], [1], [0, 0, 1, 1], [], []>} : vector<32x32xbf16>, vector<32x8xbf16>, vector<32x8xf32> -> vector<32x8xf32>
    %c0_212 = arith.constant 0 : index
    %c16_213 = arith.constant 16 : index
    %461 = vector.load %arg27[%c0_212, %c16_213] : memref<64x32xf32, #tpu.memory_space<vmem>>, vector<32x8xf32>
    tpu.vector_store %arg27[%c0_212, %c16_213], %460 {strides = array<i32>} : memref<64x32xf32, #tpu.memory_space<vmem>>, vector<32x8xf32>,
    %462 = vector.extract_strided_slice %389 {offsets = [0, 24], sizes = [32, 8], strides = [1, 1]} : vector<64x96xf32> to vector<32x8xf32>
    %463 = vector.extract_strided_slice %389 {offsets = [0, 56], sizes = [32, 8], strides = [1, 1]} : vector<64x96xf32> to vector<32x8xf32>
    %464 = vector.extract_strided_slice %389 {offsets = [0, 88], sizes = [32, 8], strides = [1, 1]} : vector<64x96xf32> to vector<32x8xf32>
    %465 = arith.truncf %462 : vector<32x8xf32> to vector<32x8xbf16>
    %466 = arith.truncf %463 : vector<32x8xf32> to vector<32x8xbf16>
    %cst_214 = arith.constant dense<0.000000e+00> : vector<32x32xf32>
    %467 = tpu.matmul %465, %466, %cst_214 {dimension_numbers = #tpu.dot_dimension_numbers<[1], [1], [0], [0], [0, 0, 1, 0], [], []>} : vector<32x8xbf16>, vector<32x8xbf16>, vector<32x32xf32> -> vector<32x32xf32>
    %cst_215 = arith.constant 0.353553385 : f32
    %468 = vector.broadcast %cst_215 : f32 to vector<32x32xf32>
    %469 = arith.mulf %467, %468 : vector<32x32xf32>
    %470 = vector.broadcast %58 : vector<1x32xf32> to vector<32x32xf32>
    %471 = arith.addf %469, %470 : vector<32x32xf32>
    %cst_216 = arith.constant dense<0xFF800000> : vector<32xf32>
    %472 = vector.multi_reduction <maximumf>, %471, %cst_216 [1] : vector<32x32xf32> to vector<32xf32>
    %473 = vector.shape_cast %472 : vector<32xf32> to vector<32x1xf32>
    %474 = vector.broadcast %473 : vector<32x1xf32> to vector<32x32xf32>
    %475 = arith.subf %471, %474 : vector<32x32xf32>
    %476 = math.exp %475 : vector<32x32xf32>
    %cst_217 = arith.constant dense<0.000000e+00> : vector<32xf32>
    %477 = vector.multi_reduction <add>, %476, %cst_217 [1] : vector<32x32xf32> to vector<32xf32>
    %478 = vector.shape_cast %477 : vector<32xf32> to vector<32x1xf32>
    %479 = tpu.reciprocal %478 {approx = true} : vector<32x1xf32> -> vector<32x1xf32>
    %480 = vector.broadcast %479 : vector<32x1xf32> to vector<32x32xf32>
    %481 = arith.mulf %476, %480 : vector<32x32xf32>
    %482 = arith.truncf %481 : vector<32x32xf32> to vector<32x32xbf16>
    %483 = arith.truncf %464 : vector<32x8xf32> to vector<32x8xbf16>
    %cst_218 = arith.constant dense<0.000000e+00> : vector<32x8xf32>
    %484 = tpu.matmul %482, %483, %cst_218 {dimension_numbers = #tpu.dot_dimension_numbers<[1], [0], [0], [1], [0, 0, 1, 1], [], []>} : vector<32x32xbf16>, vector<32x8xbf16>, vector<32x8xf32> -> vector<32x8xf32>
    %c0_219 = arith.constant 0 : index
    %c24_220 = arith.constant 24 : index
    %485 = vector.load %arg27[%c0_219, %c24_220] : memref<64x32xf32, #tpu.memory_space<vmem>>, vector<32x8xf32>
    tpu.vector_store %arg27[%c0_219, %c24_220], %484 {strides = array<i32>} : memref<64x32xf32, #tpu.memory_space<vmem>>, vector<32x8xf32>,
    %486 = vector.extract_strided_slice %389 {offsets = [32, 0], sizes = [32, 8], strides = [1, 1]} : vector<64x96xf32> to vector<32x8xf32>
    %487 = vector.extract_strided_slice %389 {offsets = [32, 32], sizes = [32, 8], strides = [1, 1]} : vector<64x96xf32> to vector<32x8xf32>
    %488 = vector.extract_strided_slice %389 {offsets = [32, 64], sizes = [32, 8], strides = [1, 1]} : vector<64x96xf32> to vector<32x8xf32>
    %489 = arith.truncf %486 : vector<32x8xf32> to vector<32x8xbf16>
    %490 = arith.truncf %487 : vector<32x8xf32> to vector<32x8xbf16>
    %cst_221 = arith.constant dense<0.000000e+00> : vector<32x32xf32>
    %491 = tpu.matmul %489, %490, %cst_221 {dimension_numbers = #tpu.dot_dimension_numbers<[1], [1], [0], [0], [0, 0, 1, 0], [], []>} : vector<32x8xbf16>, vector<32x8xbf16>, vector<32x32xf32> -> vector<32x32xf32>
    %cst_222 = arith.constant 0.353553385 : f32
    %492 = vector.broadcast %cst_222 : f32 to vector<32x32xf32>
    %493 = arith.mulf %491, %492 : vector<32x32xf32>
    %494 = vector.broadcast %58 : vector<1x32xf32> to vector<32x32xf32>
    %495 = arith.addf %493, %494 : vector<32x32xf32>
    %cst_223 = arith.constant dense<0xFF800000> : vector<32xf32>
    %496 = vector.multi_reduction <maximumf>, %495, %cst_223 [1] : vector<32x32xf32> to vector<32xf32>
    %497 = vector.shape_cast %496 : vector<32xf32> to vector<32x1xf32>
    %498 = vector.broadcast %497 : vector<32x1xf32> to vector<32x32xf32>
    %499 = arith.subf %495, %498 : vector<32x32xf32>
    %500 = math.exp %499 : vector<32x32xf32>
    %cst_224 = arith.constant dense<0.000000e+00> : vector<32xf32>
    %501 = vector.multi_reduction <add>, %500, %cst_224 [1] : vector<32x32xf32> to vector<32xf32>
    %502 = vector.shape_cast %501 : vector<32xf32> to vector<32x1xf32>
    %503 = tpu.reciprocal %502 {approx = true} : vector<32x1xf32> -> vector<32x1xf32>
    %504 = vector.broadcast %503 : vector<32x1xf32> to vector<32x32xf32>
    %505 = arith.mulf %500, %504 : vector<32x32xf32>
    %506 = arith.truncf %505 : vector<32x32xf32> to vector<32x32xbf16>
    %507 = arith.truncf %488 : vector<32x8xf32> to vector<32x8xbf16>
    %cst_225 = arith.constant dense<0.000000e+00> : vector<32x8xf32>
    %508 = tpu.matmul %506, %507, %cst_225 {dimension_numbers = #tpu.dot_dimension_numbers<[1], [0], [0], [1], [0, 0, 1, 1], [], []>} : vector<32x32xbf16>, vector<32x8xbf16>, vector<32x8xf32> -> vector<32x8xf32>
    %c32_226 = arith.constant 32 : index
    %c0_227 = arith.constant 0 : index
    %509 = vector.load %arg27[%c32_226, %c0_227] : memref<64x32xf32, #tpu.memory_space<vmem>>, vector<32x8xf32>
    tpu.vector_store %arg27[%c32_226, %c0_227], %508 {strides = array<i32>} : memref<64x32xf32, #tpu.memory_space<vmem>>, vector<32x8xf32>,
    %510 = vector.extract_strided_slice %389 {offsets = [32, 8], sizes = [32, 8], strides = [1, 1]} : vector<64x96xf32> to vector<32x8xf32>
    %511 = vector.extract_strided_slice %389 {offsets = [32, 40], sizes = [32, 8], strides = [1, 1]} : vector<64x96xf32> to vector<32x8xf32>
    %512 = vector.extract_strided_slice %389 {offsets = [32, 72], sizes = [32, 8], strides = [1, 1]} : vector<64x96xf32> to vector<32x8xf32>
    %513 = arith.truncf %510 : vector<32x8xf32> to vector<32x8xbf16>
    %514 = arith.truncf %511 : vector<32x8xf32> to vector<32x8xbf16>
    %cst_228 = arith.constant dense<0.000000e+00> : vector<32x32xf32>
    %515 = tpu.matmul %513, %514, %cst_228 {dimension_numbers = #tpu.dot_dimension_numbers<[1], [1], [0], [0], [0, 0, 1, 0], [], []>} : vector<32x8xbf16>, vector<32x8xbf16>, vector<32x32xf32> -> vector<32x32xf32>
    %cst_229 = arith.constant 0.353553385 : f32
    %516 = vector.broadcast %cst_229 : f32 to vector<32x32xf32>
    %517 = arith.mulf %515, %516 : vector<32x32xf32>
    %518 = vector.broadcast %58 : vector<1x32xf32> to vector<32x32xf32>
    %519 = arith.addf %517, %518 : vector<32x32xf32>
    %cst_230 = arith.constant dense<0xFF800000> : vector<32xf32>
    %520 = vector.multi_reduction <maximumf>, %519, %cst_230 [1] : vector<32x32xf32> to vector<32xf32>
    %521 = vector.shape_cast %520 : vector<32xf32> to vector<32x1xf32>
    %522 = vector.broadcast %521 : vector<32x1xf32> to vector<32x32xf32>
    %523 = arith.subf %519, %522 : vector<32x32xf32>
    %524 = math.exp %523 : vector<32x32xf32>
    %cst_231 = arith.constant dense<0.000000e+00> : vector<32xf32>
    %525 = vector.multi_reduction <add>, %524, %cst_231 [1] : vector<32x32xf32> to vector<32xf32>
    %526 = vector.shape_cast %525 : vector<32xf32> to vector<32x1xf32>
    %527 = tpu.reciprocal %526 {approx = true} : vector<32x1xf32> -> vector<32x1xf32>
    %528 = vector.broadcast %527 : vector<32x1xf32> to vector<32x32xf32>
    %529 = arith.mulf %524, %528 : vector<32x32xf32>
    %530 = arith.truncf %529 : vector<32x32xf32> to vector<32x32xbf16>
    %531 = arith.truncf %512 : vector<32x8xf32> to vector<32x8xbf16>
    %cst_232 = arith.constant dense<0.000000e+00> : vector<32x8xf32>
    %532 = tpu.matmul %530, %531, %cst_232 {dimension_numbers = #tpu.dot_dimension_numbers<[1], [0], [0], [1], [0, 0, 1, 1], [], []>} : vector<32x32xbf16>, vector<32x8xbf16>, vector<32x8xf32> -> vector<32x8xf32>
    %c32_233 = arith.constant 32 : index
    %c8_234 = arith.constant 8 : index
    %533 = vector.load %arg27[%c32_233, %c8_234] : memref<64x32xf32, #tpu.memory_space<vmem>>, vector<32x8xf32>
    tpu.vector_store %arg27[%c32_233, %c8_234], %532 {strides = array<i32>} : memref<64x32xf32, #tpu.memory_space<vmem>>, vector<32x8xf32>,
    %534 = vector.extract_strided_slice %389 {offsets = [32, 16], sizes = [32, 8], strides = [1, 1]} : vector<64x96xf32> to vector<32x8xf32>
    %535 = vector.extract_strided_slice %389 {offsets = [32, 48], sizes = [32, 8], strides = [1, 1]} : vector<64x96xf32> to vector<32x8xf32>
    %536 = vector.extract_strided_slice %389 {offsets = [32, 80], sizes = [32, 8], strides = [1, 1]} : vector<64x96xf32> to vector<32x8xf32>
    %537 = arith.truncf %534 : vector<32x8xf32> to vector<32x8xbf16>
    %538 = arith.truncf %535 : vector<32x8xf32> to vector<32x8xbf16>
    %cst_235 = arith.constant dense<0.000000e+00> : vector<32x32xf32>
    %539 = tpu.matmul %537, %538, %cst_235 {dimension_numbers = #tpu.dot_dimension_numbers<[1], [1], [0], [0], [0, 0, 1, 0], [], []>} : vector<32x8xbf16>, vector<32x8xbf16>, vector<32x32xf32> -> vector<32x32xf32>
    %cst_236 = arith.constant 0.353553385 : f32
    %540 = vector.broadcast %cst_236 : f32 to vector<32x32xf32>
    %541 = arith.mulf %539, %540 : vector<32x32xf32>
    %542 = vector.broadcast %58 : vector<1x32xf32> to vector<32x32xf32>
    %543 = arith.addf %541, %542 : vector<32x32xf32>
    %cst_237 = arith.constant dense<0xFF800000> : vector<32xf32>
    %544 = vector.multi_reduction <maximumf>, %543, %cst_237 [1] : vector<32x32xf32> to vector<32xf32>
    %545 = vector.shape_cast %544 : vector<32xf32> to vector<32x1xf32>
    %546 = vector.broadcast %545 : vector<32x1xf32> to vector<32x32xf32>
    %547 = arith.subf %543, %546 : vector<32x32xf32>
    %548 = math.exp %547 : vector<32x32xf32>
    %cst_238 = arith.constant dense<0.000000e+00> : vector<32xf32>
    %549 = vector.multi_reduction <add>, %548, %cst_238 [1] : vector<32x32xf32> to vector<32xf32>
    %550 = vector.shape_cast %549 : vector<32xf32> to vector<32x1xf32>
    %551 = tpu.reciprocal %550 {approx = true} : vector<32x1xf32> -> vector<32x1xf32>
    %552 = vector.broadcast %551 : vector<32x1xf32> to vector<32x32xf32>
    %553 = arith.mulf %548, %552 : vector<32x32xf32>
    %554 = arith.truncf %553 : vector<32x32xf32> to vector<32x32xbf16>
    %555 = arith.truncf %536 : vector<32x8xf32> to vector<32x8xbf16>
    %cst_239 = arith.constant dense<0.000000e+00> : vector<32x8xf32>
    %556 = tpu.matmul %554, %555, %cst_239 {dimension_numbers = #tpu.dot_dimension_numbers<[1], [0], [0], [1], [0, 0, 1, 1], [], []>} : vector<32x32xbf16>, vector<32x8xbf16>, vector<32x8xf32> -> vector<32x8xf32>
    %c32_240 = arith.constant 32 : index
    %c16_241 = arith.constant 16 : index
    %557 = vector.load %arg27[%c32_240, %c16_241] : memref<64x32xf32, #tpu.memory_space<vmem>>, vector<32x8xf32>
    tpu.vector_store %arg27[%c32_240, %c16_241], %556 {strides = array<i32>} : memref<64x32xf32, #tpu.memory_space<vmem>>, vector<32x8xf32>,
    %558 = vector.extract_strided_slice %389 {offsets = [32, 24], sizes = [32, 8], strides = [1, 1]} : vector<64x96xf32> to vector<32x8xf32>
    %559 = vector.extract_strided_slice %389 {offsets = [32, 56], sizes = [32, 8], strides = [1, 1]} : vector<64x96xf32> to vector<32x8xf32>
    %560 = vector.extract_strided_slice %389 {offsets = [32, 88], sizes = [32, 8], strides = [1, 1]} : vector<64x96xf32> to vector<32x8xf32>
    %561 = arith.truncf %558 : vector<32x8xf32> to vector<32x8xbf16>
    %562 = arith.truncf %559 : vector<32x8xf32> to vector<32x8xbf16>
    %cst_242 = arith.constant dense<0.000000e+00> : vector<32x32xf32>
    %563 = tpu.matmul %561, %562, %cst_242 {dimension_numbers = #tpu.dot_dimension_numbers<[1], [1], [0], [0], [0, 0, 1, 0], [], []>} : vector<32x8xbf16>, vector<32x8xbf16>, vector<32x32xf32> -> vector<32x32xf32>
    %cst_243 = arith.constant 0.353553385 : f32
    %564 = vector.broadcast %cst_243 : f32 to vector<32x32xf32>
    %565 = arith.mulf %563, %564 : vector<32x32xf32>
    %566 = vector.broadcast %58 : vector<1x32xf32> to vector<32x32xf32>
    %567 = arith.addf %565, %566 : vector<32x32xf32>
    %cst_244 = arith.constant dense<0xFF800000> : vector<32xf32>
    %568 = vector.multi_reduction <maximumf>, %567, %cst_244 [1] : vector<32x32xf32> to vector<32xf32>
    %569 = vector.shape_cast %568 : vector<32xf32> to vector<32x1xf32>
    %570 = vector.broadcast %569 : vector<32x1xf32> to vector<32x32xf32>
    %571 = arith.subf %567, %570 : vector<32x32xf32>
    %572 = math.exp %571 : vector<32x32xf32>
    %cst_245 = arith.constant dense<0.000000e+00> : vector<32xf32>
    %573 = vector.multi_reduction <add>, %572, %cst_245 [1] : vector<32x32xf32> to vector<32xf32>
    %574 = vector.shape_cast %573 : vector<32xf32> to vector<32x1xf32>
    %575 = tpu.reciprocal %574 {approx = true} : vector<32x1xf32> -> vector<32x1xf32>
    %576 = vector.broadcast %575 : vector<32x1xf32> to vector<32x32xf32>
    %577 = arith.mulf %572, %576 : vector<32x32xf32>
    %578 = arith.truncf %577 : vector<32x32xf32> to vector<32x32xbf16>
    %579 = arith.truncf %560 : vector<32x8xf32> to vector<32x8xbf16>
    %cst_246 = arith.constant dense<0.000000e+00> : vector<32x8xf32>
    %580 = tpu.matmul %578, %579, %cst_246 {dimension_numbers = #tpu.dot_dimension_numbers<[1], [0], [0], [1], [0, 0, 1, 1], [], []>} : vector<32x32xbf16>, vector<32x8xbf16>, vector<32x8xf32> -> vector<32x8xf32>
    %c32_247 = arith.constant 32 : index
    %c24_248 = arith.constant 24 : index
    %581 = vector.load %arg27[%c32_247, %c24_248] : memref<64x32xf32, #tpu.memory_space<vmem>>, vector<32x8xf32>
    tpu.vector_store %arg27[%c32_247, %c24_248], %580 {strides = array<i32>} : memref<64x32xf32, #tpu.memory_space<vmem>>, vector<32x8xf32>,
    %c0_249 = arith.constant 0 : index
    %c0_250 = arith.constant 0 : index
    %582 = vector.load %arg27[%c0_249, %c0_250] : memref<64x32xf32, #tpu.memory_space<vmem>>, vector<64x32xf32>
    %583 = arith.truncf %582 : vector<64x32xf32> to vector<64x32xbf16>
    %cst_251 = arith.constant dense<0.000000e+00> : vector<64x32xf32>
    %584 = tpu.matmul %583, %351, %cst_251 {dimension_numbers = #tpu.dot_dimension_numbers<[1], [0], [0], [1], [0, 0, 1, 1], [], []>} : vector<64x32xbf16>, vector<32x32xbf16>, vector<64x32xf32> -> vector<64x32xf32>
    %585 = vector.broadcast %353 : vector<1x32xf32> to vector<64x32xf32>
    %586 = arith.addf %584, %585 : vector<64x32xf32>
    %587 = arith.addf %341, %586 : vector<64x32xf32>
    %cst_252 = arith.constant dense<0.000000e+00> : vector<64xf32>
    %588 = vector.multi_reduction <add>, %587, %cst_252 [1] : vector<64x32xf32> to vector<64xf32>
    %589 = vector.shape_cast %588 : vector<64xf32> to vector<64x1xf32>
    %cst_253 = arith.constant 3.200000e+01 : f32
    %590 = vector.broadcast %cst_253 : f32 to vector<64x1xf32>
    %591 = arith.divf %589, %590 : vector<64x1xf32>
    %592 = vector.broadcast %591 : vector<64x1xf32> to vector<64x32xf32>
    %593 = arith.subf %587, %592 : vector<64x32xf32>
    %594 = arith.mulf %593, %593 : vector<64x32xf32>
    %cst_254 = arith.constant dense<0.000000e+00> : vector<64xf32>
    %595 = vector.multi_reduction <add>, %594, %cst_254 [1] : vector<64x32xf32> to vector<64xf32>
    %596 = vector.shape_cast %595 : vector<64xf32> to vector<64x1xf32>
    %cst_255 = arith.constant 3.200000e+01 : f32
    %597 = vector.broadcast %cst_255 : f32 to vector<64x1xf32>
    %598 = arith.divf %596, %597 : vector<64x1xf32>
    %cst_256 = arith.constant 9.99999997E-7 : f32
    %599 = vector.broadcast %cst_256 : f32 to vector<64x1xf32>
    %600 = arith.addf %598, %599 : vector<64x1xf32>
    %601 = math.rsqrt %600 : vector<64x1xf32>
    %602 = vector.broadcast %601 : vector<64x1xf32> to vector<64x32xf32>
    %603 = arith.mulf %593, %602 : vector<64x32xf32>
    %604 = vector.broadcast %355 : vector<1x32xf32> to vector<64x32xf32>
    %605 = arith.mulf %603, %604 : vector<64x32xf32>
    %606 = vector.broadcast %357 : vector<1x32xf32> to vector<64x32xf32>
    %607 = arith.addf %605, %606 : vector<64x32xf32>
    %608 = arith.truncf %607 : vector<64x32xf32> to vector<64x32xbf16>
    %cst_257 = arith.constant dense<0.000000e+00> : vector<64x64xf32>
    %609 = tpu.matmul %608, %359, %cst_257 {dimension_numbers = #tpu.dot_dimension_numbers<[1], [0], [0], [1], [0, 0, 1, 1], [], []>} : vector<64x32xbf16>, vector<32x64xbf16>, vector<64x64xf32> -> vector<64x64xf32>
    %610 = vector.broadcast %361 : vector<1x64xf32> to vector<64x64xf32>
    %611 = arith.addf %609, %610 : vector<64x64xf32>
    %cst_258 = arith.constant 5.000000e-01 : f32
    %612 = vector.broadcast %cst_258 : f32 to vector<64x64xf32>
    %613 = arith.mulf %612, %611 : vector<64x64xf32>
    %cst_259 = arith.constant 0.707106769 : f32
    %614 = vector.broadcast %cst_259 : f32 to vector<64x64xf32>
    %615 = arith.mulf %611, %614 : vector<64x64xf32>
    %616 = math.erf %615 : vector<64x64xf32>
    %cst_260 = arith.constant 1.000000e+00 : f32
    %617 = vector.broadcast %cst_260 : f32 to vector<64x64xf32>
    %618 = arith.addf %617, %616 : vector<64x64xf32>
    %619 = arith.mulf %613, %618 : vector<64x64xf32>
    %620 = arith.truncf %619 : vector<64x64xf32> to vector<64x64xbf16>
    %cst_261 = arith.constant dense<0.000000e+00> : vector<64x32xf32>
    %621 = tpu.matmul %620, %363, %cst_261 {dimension_numbers = #tpu.dot_dimension_numbers<[1], [0], [0], [1], [0, 0, 1, 1], [], []>} : vector<64x64xbf16>, vector<64x32xbf16>, vector<64x32xf32> -> vector<64x32xf32>
    %622 = vector.broadcast %365 : vector<1x32xf32> to vector<64x32xf32>
    %623 = arith.addf %621, %622 : vector<64x32xf32>
    %624 = arith.addf %587, %623 : vector<64x32xf32>
    %c0_262 = arith.constant 0 : index
    %c0_263 = arith.constant 0 : index
    %625 = vector.load %arg22[%c0_262, %c0_263] : memref<1x32xf32, #tpu.memory_space<vmem>>, vector<1x32xf32>
    %c0_264 = arith.constant 0 : index
    %c0_265 = arith.constant 0 : index
    %626 = vector.load %arg23[%c0_264, %c0_265] : memref<1x32xf32, #tpu.memory_space<vmem>>, vector<1x32xf32>
    %c0_266 = arith.constant 0 : index
    %c0_267 = arith.constant 0 : index
    %627 = vector.load %arg24[%c0_266, %c0_267] : memref<32x10xbf16, #tpu.memory_space<vmem>>, vector<32x10xbf16>
    %c0_268 = arith.constant 0 : index
    %c0_269 = arith.constant 0 : index
    %628 = vector.load %arg25[%c0_268, %c0_269] : memref<1x10xf32, #tpu.memory_space<vmem>>, vector<1x10xf32>
    %629 = vector.extract_strided_slice %624 {offsets = [0, 0], sizes = [1, 32], strides = [1, 1]} : vector<64x32xf32> to vector<1x32xf32>
    %cst_270 = arith.constant dense<0.000000e+00> : vector<1xf32>
    %630 = vector.multi_reduction <add>, %629, %cst_270 [1] : vector<1x32xf32> to vector<1xf32>
    %631 = vector.shape_cast %630 : vector<1xf32> to vector<1x1xf32>
    %cst_271 = arith.constant 3.200000e+01 : f32
    %632 = vector.broadcast %cst_271 : f32 to vector<1x1xf32>
    %633 = arith.divf %631, %632 : vector<1x1xf32>
    %634 = vector.broadcast %633 : vector<1x1xf32> to vector<1x32xf32>
    %635 = arith.subf %629, %634 : vector<1x32xf32>
    %636 = arith.mulf %635, %635 : vector<1x32xf32>
    %cst_272 = arith.constant dense<0.000000e+00> : vector<1xf32>
    %637 = vector.multi_reduction <add>, %636, %cst_272 [1] : vector<1x32xf32> to vector<1xf32>
    %638 = vector.shape_cast %637 : vector<1xf32> to vector<1x1xf32>
    %cst_273 = arith.constant 3.200000e+01 : f32
    %639 = vector.broadcast %cst_273 : f32 to vector<1x1xf32>
    %640 = arith.divf %638, %639 : vector<1x1xf32>
    %cst_274 = arith.constant 9.99999997E-7 : f32
    %641 = vector.broadcast %cst_274 : f32 to vector<1x1xf32>
    %642 = arith.addf %640, %641 : vector<1x1xf32>
    %643 = math.rsqrt %642 : vector<1x1xf32>
    %644 = vector.broadcast %643 : vector<1x1xf32> to vector<1x32xf32>
    %645 = arith.mulf %635, %644 : vector<1x32xf32>
    %646 = arith.mulf %645, %625 : vector<1x32xf32>
    %647 = arith.addf %646, %626 : vector<1x32xf32>
    %648 = arith.truncf %647 : vector<1x32xf32> to vector<1x32xbf16>
    %cst_275 = arith.constant dense<0.000000e+00> : vector<1x10xf32>
    %649 = tpu.matmul %648, %627, %cst_275 {dimension_numbers = #tpu.dot_dimension_numbers<[1], [0], [0], [1], [0, 0, 1, 1], [], []>} : vector<1x32xbf16>, vector<32x10xbf16>, vector<1x10xf32> -> vector<1x10xf32>
    %650 = arith.addf %649, %628 : vector<1x10xf32>
    %c0_276 = arith.constant 0 : index
    %c0_277 = arith.constant 0 : index
    %651 = vector.load %arg26[%c0_276, %c0_277] : memref<2x10xf32, #tpu.memory_space<vmem>>, vector<1x10xf32>
    tpu.vector_store %arg26[%c0_276, %c0_277], %650 {strides = array<i32>} : memref<2x10xf32, #tpu.memory_space<vmem>>, vector<1x10xf32>,
    %652 = vector.extract_strided_slice %624 {offsets = [32, 0], sizes = [1, 32], strides = [1, 1]} : vector<64x32xf32> to vector<1x32xf32>
    %cst_278 = arith.constant dense<0.000000e+00> : vector<1xf32>
    %653 = vector.multi_reduction <add>, %652, %cst_278 [1] : vector<1x32xf32> to vector<1xf32>
    %654 = vector.shape_cast %653 : vector<1xf32> to vector<1x1xf32>
    %cst_279 = arith.constant 3.200000e+01 : f32
    %655 = vector.broadcast %cst_279 : f32 to vector<1x1xf32>
    %656 = arith.divf %654, %655 : vector<1x1xf32>
    %657 = vector.broadcast %656 : vector<1x1xf32> to vector<1x32xf32>
    %658 = arith.subf %652, %657 : vector<1x32xf32>
    %659 = arith.mulf %658, %658 : vector<1x32xf32>
    %cst_280 = arith.constant dense<0.000000e+00> : vector<1xf32>
    %660 = vector.multi_reduction <add>, %659, %cst_280 [1] : vector<1x32xf32> to vector<1xf32>
    %661 = vector.shape_cast %660 : vector<1xf32> to vector<1x1xf32>
    %cst_281 = arith.constant 3.200000e+01 : f32
    %662 = vector.broadcast %cst_281 : f32 to vector<1x1xf32>
    %663 = arith.divf %661, %662 : vector<1x1xf32>
    %cst_282 = arith.constant 9.99999997E-7 : f32
    %664 = vector.broadcast %cst_282 : f32 to vector<1x1xf32>
    %665 = arith.addf %663, %664 : vector<1x1xf32>
    %666 = math.rsqrt %665 : vector<1x1xf32>
    %667 = vector.broadcast %666 : vector<1x1xf32> to vector<1x32xf32>
    %668 = arith.mulf %658, %667 : vector<1x32xf32>
    %669 = arith.mulf %668, %625 : vector<1x32xf32>
    %670 = arith.addf %669, %626 : vector<1x32xf32>
    %671 = arith.truncf %670 : vector<1x32xf32> to vector<1x32xbf16>
    %cst_283 = arith.constant dense<0.000000e+00> : vector<1x10xf32>
    %672 = tpu.matmul %671, %627, %cst_283 {dimension_numbers = #tpu.dot_dimension_numbers<[1], [0], [0], [1], [0, 0, 1, 1], [], []>} : vector<1x32xbf16>, vector<32x10xbf16>, vector<1x10xf32> -> vector<1x10xf32>
    %673 = arith.addf %672, %628 : vector<1x10xf32>
    %c1_284 = arith.constant 1 : index
    %c0_285 = arith.constant 0 : index
    %674 = vector.load %arg26[%c1_284, %c0_285] : memref<2x10xf32, #tpu.memory_space<vmem>>, vector<1x10xf32>
    tpu.vector_store %arg26[%c1_284, %c0_285], %673 {strides = array<i32>} : memref<2x10xf32, #tpu.memory_space<vmem>>, vector<1x10xf32>,
    return
  }
}

</mosaic_0001>

<llo_original>
// kernel: vit_with_mac_forward.1
$region0: #{vit_with_mac_forward.1}
  #allocation0 [shape = 'u32[]', space=smem, size = 0x4, offset = 0x4, fixed_abs, tag = 'smem constant byte address 0x4 - core index']
  #allocation1 [shape = 'u32[72,128]{1,0:T(1,128)}', space=vmem, size = 0x9000, scoped, tag = 'internal scratch']
  #allocation2 [shape = 'f32[64,32]{1,0:T(8,128)}', space=vmem, size = 0x8000, scoped, tag = 'scratch operand']
  %s0 = inlined_call_operand.vmem [shape: f32[32,64], index: 0, kind: input, shape index: {}]
  %s1 = inlined_call_operand.vmem [shape: bf16[64,32], index: 1, kind: input, shape index: {}]
  %s2 = inlined_call_operand.vmem [shape: f32[1,32], index: 2, kind: input, shape index: {}]
  %s3 = inlined_call_operand.vmem [shape: f32[1,32], index: 3, kind: input, shape index: {}]
  %s4 = inlined_call_operand.vmem [shape: f32[4,32], index: 4, kind: input, shape index: {}]
  %s5 = inlined_call_operand.vmem [shape: bf16[32,32], index: 5, kind: input, shape index: {}]
  %s6 = inlined_call_operand.vmem [shape: f32[1,32], index: 6, kind: input, shape index: {}]
  %s7 = inlined_call_operand.vmem [shape: bf16[32,32], index: 7, kind: input, shape index: {}]
  %s8 = inlined_call_operand.vmem [shape: f32[1,32], index: 8, kind: input, shape index: {}]
  %s9 = inlined_call_operand.vmem [shape: f32[64,32], index: 9, kind: input, shape index: {}]
  %s10 = inlined_call_operand.vmem [shape: f32[2,1,32], index: 10, kind: input, shape index: {}]
  %s11 = inlined_call_operand.vmem [shape: f32[2,1,32], index: 11, kind: input, shape index: {}]
  %s12 = inlined_call_operand.vmem [shape: bf16[2,32,96], index: 12, kind: input, shape index: {}]
  %s13 = inlined_call_operand.vmem [shape: f32[2,1,96], index: 13, kind: input, shape index: {}]
  %s14 = inlined_call_operand.vmem [shape: bf16[2,32,32], index: 14, kind: input, shape index: {}]
  %s15 = inlined_call_operand.vmem [shape: f32[2,1,32], index: 15, kind: input, shape index: {}]
  %s16 = inlined_call_operand.vmem [shape: f32[2,1,32], index: 16, kind: input, shape index: {}]
  %s17 = inlined_call_operand.vmem [shape: f32[2,1,32], index: 17, kind: input, shape index: {}]
  %s18 = inlined_call_operand.vmem [shape: bf16[2,32,64], index: 18, kind: input, shape index: {}]
  %s19 = inlined_call_operand.vmem [shape: f32[2,1,64], index: 19, kind: input, shape index: {}]
  %s20 = inlined_call_operand.vmem [shape: bf16[2,64,32], index: 20, kind: input, shape index: {}]
  %s21 = inlined_call_operand.vmem [shape: f32[2,1,32], index: 21, kind: input, shape index: {}]
  %s22 = inlined_call_operand.vmem [shape: f32[1,32], index: 22, kind: input, shape index: {}]
  %s23 = inlined_call_operand.vmem [shape: f32[1,32], index: 23, kind: input, shape index: {}]
  %s24 = inlined_call_operand.vmem [shape: bf16[32,10], index: 24, kind: input, shape index: {}]
  %s25 = inlined_call_operand.vmem [shape: f32[1,10], index: 25, kind: input, shape index: {}]
  %s26 = inlined_call_operand.hbm [shape: f32[2,10], index: 26, kind: output, shape index: {}]
  %s27 = sld [smem:[#allocation0]]
  $region114: #{vit_with_mac_forward.1} parent=0
    _
  %s29 = ssub.s32 1, %s27
  %s30 = scalar_select 0, %s29, %s27
  $region1: #{vit_with_mac_forward.1} parent=0
    #allocation3 [shape = 'u8[1024]{0}', space=vmem, size = 0x400, scoped, tag = 'output window, operand 0, single buffered']
    #allocation4 [shape = 's32[1]{0}', space=sflag, size = 0x4, scoped, tag = 'scoped memory for vit_with_mac_forward.1']
    %31 = vsyncpa [#allocation4], 0
    // Predicated region
    $region2: #{vit_with_mac_forward.1} parent=1 // pred_check
      _
    $region3: #{vit_with_mac_forward.1} parent=1 // pred_check_branch
      %33 = sbr.rel (0) target = $region5
    $region4: #{vit_with_mac_forward.1} parent=1 // pred_region
      _
    $region5: #{vit_with_mac_forward.1} parent=1 // pred_fallthru
      _
    // Predicated region
    $region6: #{vit_with_mac_forward.1} parent=1 // pred_check
      _
    $region7: #{vit_with_mac_forward.1} parent=1 // pred_check_branch
      %35 = sbr.rel (0) target = $region9
    $region8: #{vit_with_mac_forward.1} parent=1 // pred_region
      _
    $region9: #{vit_with_mac_forward.1} parent=1 // pred_fallthru
      _
    // Predicated region
    $region10: #{vit_with_mac_forward.1} parent=1 // pred_check
      _
    $region11: #{vit_with_mac_forward.1} parent=1 // pred_check_branch
      %37 = sbr.rel (0) target = $region13
    $region12: #{vit_with_mac_forward.1} parent=1 // pred_region
      _
    $region13: #{vit_with_mac_forward.1} parent=1 // pred_fallthru
      _
    // Predicated region
    $region14: #{vit_with_mac_forward.1} parent=1 // pred_check
      _
    $region15: #{vit_with_mac_forward.1} parent=1 // pred_check_branch
      %39 = sbr.rel (0) target = $region17
    $region16: #{vit_with_mac_forward.1} parent=1 // pred_region
      _
    $region17: #{vit_with_mac_forward.1} parent=1 // pred_fallthru
      _
    // Predicated region
    $region18: #{vit_with_mac_forward.1} parent=1 // pred_check
      _
    $region19: #{vit_with_mac_forward.1} parent=1 // pred_check_branch
      %41 = sbr.rel (0) target = $region21
    $region20: #{vit_with_mac_forward.1} parent=1 // pred_region
      _
    $region21: #{vit_with_mac_forward.1} parent=1 // pred_fallthru
      _
    // Predicated region
    $region22: #{vit_with_mac_forward.1} parent=1 // pred_check
      _
    $region23: #{vit_with_mac_forward.1} parent=1 // pred_check_branch
      %43 = sbr.rel (0) target = $region25
    $region24: #{vit_with_mac_forward.1} parent=1 // pred_region
      _
    $region25: #{vit_with_mac_forward.1} parent=1 // pred_fallthru
      _
    // Predicated region
    $region26: #{vit_with_mac_forward.1} parent=1 // pred_check
      _
    $region27: #{vit_with_mac_forward.1} parent=1 // pred_check_branch
      %45 = sbr.rel (0) target = $region29
    $region28: #{vit_with_mac_forward.1} parent=1 // pred_region
      _
    $region29: #{vit_with_mac_forward.1} parent=1 // pred_fallthru
      _
    // Predicated region
    $region30: #{vit_with_mac_forward.1} parent=1 // pred_check
      _
    $region31: #{vit_with_mac_forward.1} parent=1 // pred_check_branch
      %47 = sbr.rel (0) target = $region33
    $region32: #{vit_with_mac_forward.1} parent=1 // pred_region
      _
    $region33: #{vit_with_mac_forward.1} parent=1 // pred_fallthru
      _
    // Predicated region
    $region34: #{vit_with_mac_forward.1} parent=1 // pred_check
      _
    $region35: #{vit_with_mac_forward.1} parent=1 // pred_check_branch
      %49 = sbr.rel (0) target = $region37
    $region36: #{vit_with_mac_forward.1} parent=1 // pred_region
      _
    $region37: #{vit_with_mac_forward.1} parent=1 // pred_fallthru
      _
    // Predicated region
    $region38: #{vit_with_mac_forward.1} parent=1 // pred_check
      _
    $region39: #{vit_with_mac_forward.1} parent=1 // pred_check_branch
      %51 = sbr.rel (0) target = $region41
    $region40: #{vit_with_mac_forward.1} parent=1 // pred_region
      _
    $region41: #{vit_with_mac_forward.1} parent=1 // pred_fallthru
      _
    // Predicated region
    $region42: #{vit_with_mac_forward.1} parent=1 // pred_check
      _
    $region43: #{vit_with_mac_forward.1} parent=1 // pred_check_branch
      %53 = sbr.rel (0) target = $region45
    $region44: #{vit_with_mac_forward.1} parent=1 // pred_region
      _
    $region45: #{vit_with_mac_forward.1} parent=1 // pred_fallthru
      _
    // Predicated region
    $region46: #{vit_with_mac_forward.1} parent=1 // pred_check
      _
    $region47: #{vit_with_mac_forward.1} parent=1 // pred_check_branch
      %55 = sbr.rel (0) target = $region49
    $region48: #{vit_with_mac_forward.1} parent=1 // pred_region
      _
    $region49: #{vit_with_mac_forward.1} parent=1 // pred_fallthru
      _
    // Predicated region
    $region50: #{vit_with_mac_forward.1} parent=1 // pred_check
      _
    $region51: #{vit_with_mac_forward.1} parent=1 // pred_check_branch
      %57 = sbr.rel (0) target = $region53
    $region52: #{vit_with_mac_forward.1} parent=1 // pred_region
      _
    $region53: #{vit_with_mac_forward.1} parent=1 // pred_fallthru
      _
    // Predicated region
    $region54: #{vit_with_mac_forward.1} parent=1 // pred_check
      _
    $region55: #{vit_with_mac_forward.1} parent=1 // pred_check_branch
      %59 = sbr.rel (0) target = $region57
    $region56: #{vit_with_mac_forward.1} parent=1 // pred_region
      _
    $region57: #{vit_with_mac_forward.1} parent=1 // pred_fallthru
      _
    // Predicated region
    $region58: #{vit_with_mac_forward.1} parent=1 // pred_check
      _
    $region59: #{vit_with_mac_forward.1} parent=1 // pred_check_branch
      %61 = sbr.rel (0) target = $region61
    $region60: #{vit_with_mac_forward.1} parent=1 // pred_region
      _
    $region61: #{vit_with_mac_forward.1} parent=1 // pred_fallthru
      _
    // Predicated region
    $region62: #{vit_with_mac_forward.1} parent=1 // pred_check
      _
    $region63: #{vit_with_mac_forward.1} parent=1 // pred_check_branch
      %63 = sbr.rel (0) target = $region65
    $region64: #{vit_with_mac_forward.1} parent=1 // pred_region
      _
    $region65: #{vit_with_mac_forward.1} parent=1 // pred_fallthru
      _
    // Predicated region
    $region66: #{vit_with_mac_forward.1} parent=1 // pred_check
      _
    $region67: #{vit_with_mac_forward.1} parent=1 // pred_check_branch
      %65 = sbr.rel (0) target = $region69
    $region68: #{vit_with_mac_forward.1} parent=1 // pred_region
      _
    $region69: #{vit_with_mac_forward.1} parent=1 // pred_fallthru
      _
    // Predicated region
    $region70: #{vit_with_mac_forward.1} parent=1 // pred_check
      _
    $region71: #{vit_with_mac_forward.1} parent=1 // pred_check_branch
      %67 = sbr.rel (0) target = $region73
    $region72: #{vit_with_mac_forward.1} parent=1 // pred_region
      _
    $region73: #{vit_with_mac_forward.1} parent=1 // pred_fallthru
      _
    // Predicated region
    $region74: #{vit_with_mac_forward.1} parent=1 // pred_check
      _
    $region75: #{vit_with_mac_forward.1} parent=1 // pred_check_branch
      %69 = sbr.rel (0) target = $region77
    $region76: #{vit_with_mac_forward.1} parent=1 // pred_region
      _
    $region77: #{vit_with_mac_forward.1} parent=1 // pred_fallthru
      _
    // Predicated region
    $region78: #{vit_with_mac_forward.1} parent=1 // pred_check
      _
    $region79: #{vit_with_mac_forward.1} parent=1 // pred_check_branch
      %71 = sbr.rel (0) target = $region81
    $region80: #{vit_with_mac_forward.1} parent=1 // pred_region
      _
    $region81: #{vit_with_mac_forward.1} parent=1 // pred_fallthru
      _
    // Predicated region
    $region82: #{vit_with_mac_forward.1} parent=1 // pred_check
      _
    $region83: #{vit_with_mac_forward.1} parent=1 // pred_check_branch
      %73 = sbr.rel (0) target = $region85
    $region84: #{vit_with_mac_forward.1} parent=1 // pred_region
      _
    $region85: #{vit_with_mac_forward.1} parent=1 // pred_fallthru
      _
    // Predicated region
    $region86: #{vit_with_mac_forward.1} parent=1 // pred_check
      _
    $region87: #{vit_with_mac_forward.1} parent=1 // pred_check_branch
      %75 = sbr.rel (0) target = $region89
    $region88: #{vit_with_mac_forward.1} parent=1 // pred_region
      _
    $region89: #{vit_with_mac_forward.1} parent=1 // pred_fallthru
      _
    // Predicated region
    $region90: #{vit_with_mac_forward.1} parent=1 // pred_check
      _
    $region91: #{vit_with_mac_forward.1} parent=1 // pred_check_branch
      %77 = sbr.rel (0) target = $region93
    $region92: #{vit_with_mac_forward.1} parent=1 // pred_region
      _
    $region93: #{vit_with_mac_forward.1} parent=1 // pred_fallthru
      _
    // Predicated region
    $region94: #{vit_with_mac_forward.1} parent=1 // pred_check
      _
    $region95: #{vit_with_mac_forward.1} parent=1 // pred_check_branch
      %79 = sbr.rel (0) target = $region97
    $region96: #{vit_with_mac_forward.1} parent=1 // pred_region
      _
    $region97: #{vit_with_mac_forward.1} parent=1 // pred_fallthru
      _
    // Predicated region
    $region98: #{vit_with_mac_forward.1} parent=1 // pred_check
      _
    $region99: #{vit_with_mac_forward.1} parent=1 // pred_check_branch
      %81 = sbr.rel (0) target = $region101
    $region100: #{vit_with_mac_forward.1} parent=1 // pred_region
      _
    $region101: #{vit_with_mac_forward.1} parent=1 // pred_fallthru
      _
    // Predicated region
    $region102: #{vit_with_mac_forward.1} parent=1 // pred_check
      _
    $region103: #{vit_with_mac_forward.1} parent=1 // pred_check_branch
      %83 = sbr.rel (0) target = $region105
    $region104: #{vit_with_mac_forward.1} parent=1 // pred_region
      _
    $region105: #{vit_with_mac_forward.1} parent=1 // pred_fallthru
      _
    %v85 = vld [vmem:[%s0] sm:$0xff]
    %v86 = vld [vmem:[%s0 + $0x8] sm:$0xff]
    %v87 = vld [vmem:[%s0 + $0x10] sm:$0xff]
    %v88 = vld [vmem:[%s0 + $0x18] sm:$0xff]
    %v89 = vld [vmem:[%s1] sm:$0xf]
    %v90 = vld [vmem:[%s1 + $0x4] sm:$0xf]
    %v91 = vld [vmem:[%s1 + $0x8] sm:$0xf]
    %v92 = vld [vmem:[%s1 + $0xc] sm:$0xf]
    %v93 = vld [vmem:[%s1 + $0x10] sm:$0xf]
    %v94 = vld [vmem:[%s1 + $0x14] sm:$0xf]
    %v95 = vld [vmem:[%s1 + $0x18] sm:$0xf]
    %v96 = vld [vmem:[%s1 + $0x1c] sm:$0xf]
    %v97 = vld [vmem:[%s2] sm:$0x1]
    %v98 = vpack.c.bf16 %v86, %v85
    %v99 = vpack.c.bf16 %v88, %v87
    %v101 = vperm.slane %v97, 0
    %v111 = vunpack.c.l.b16 %v89
    %v112 = vunpack.c.l.b16 %v90
    %v113 = vunpack.c.l.b16 %v91
    %v114 = vunpack.c.l.b16 %v92
    %v115 = vunpack.c.l.b16 %v93
    %v116 = vunpack.c.l.b16 %v94
    %v117 = vunpack.c.l.b16 %v95
    %v118 = vunpack.c.l.b16 %v96
    %v119 = vpack.c.b16 %v112, %v111
    %v120 = vpack.c.b16 %v114, %v113
    %v121 = vpack.c.b16 %v116, %v115
    %v122 = vpack.c.b16 %v118, %v117
    %vm127 = vcmask 523264
    %v129 = vsel %vm127, %v98, 0
    %v132 = vsel %vm127, %v99, 0
    %134 = vmatpush.bf16.msra.mxu0 0
    %135 = vmatpush.bf16.msra.mxu0 0
    %136 = vmatpush.bf16.msra.mxu0 0
    %137 = vmatpush.bf16.msra.mxu0 0
    %138 = vmatpush.bf16.msra.mxu0 %v122
    %139 = vmatpush.bf16.msra.mxu0 %v121
    %140 = vmatpush.bf16.msra.mxu0 %v120
    %141 = vmatpush.bf16.msra.mxu0 %v119
    %142 = vmatmul.bf16.gmra.mxu0 %v129
    %v143 = vpop.f32.mrf.mxu0
    %v144 = vadd.f32 %v101, %v143
    %v145 = vpop.f32.mrf.mxu0
    %v146 = vadd.f32 %v101, %v145
    %147 = vmatmul.bf16.gmra.mxu0 %v132
    %v148 = vpop.f32.mrf.mxu0
    %v149 = vadd.f32 %v101, %v148
    %v150 = vpop.f32.mrf.mxu0
    %v151 = vadd.f32 %v101, %v150
    %152 = vdwg.mxu0
    %v153 = vld [vmem:[%s3] sm:$0x1]
    %v154 = vld [vmem:[%s4] sm:$0xf]
    %v155 = vld [vmem:[%s5] sm:$0xf]
    %v156 = vld [vmem:[%s5 + $0x4] sm:$0xf]
    %v157 = vld [vmem:[%s5 + $0x8] sm:$0xf]
    %v158 = vld [vmem:[%s5 + $0xc] sm:$0xf]
    %v159 = vld [vmem:[%s6] sm:$0x1]
    %v160 = vld [vmem:[%s7] sm:$0xf]
    %v161 = vld [vmem:[%s7 + $0x4] sm:$0xf]
    %v162 = vld [vmem:[%s7 + $0x8] sm:$0xf]
    %v163 = vld [vmem:[%s7 + $0xc] sm:$0xf]
    %v164 = vld [vmem:[%s8] sm:$0x1]
    %vm165 = vcmask 261120
    %v166 = vsel %vm165, %v144, 0.0
    %v167 = vsel %vm165, %v146, 0.0
    %v168 = vadd.f32 %v166, %v167
    %v169 = vrot.slane %v168, 4
    %v170 = vadd.f32 %v168, %v169
    %v171 = vrot.slane %v170, 2
    %v172 = vadd.f32 %v170, %v171
    %v173 = vrot.slane %v172, 1
    %v174 = vadd.f32 %v172, %v173
    %v175 = vrcp.pop 16.0
    %v176 = vmul.f32 16.0, %v175
    %v177 = vsub.f32 1.0, %v176
    %v178 = vmul.f32 %v175, %v177
    %v179 = vadd.f32 %v175, %v178
    %vm180 = vweird.f32 %v175
    %v181 = vsel %vm180, %v175, %v179
    %v182 = vmul.f32 %v174, %v181
    %v183 = vpack.c.bf16 %v182, %v182
    %v188 = vunpack.c.l.b16 %v155
    %v189 = vunpack.c.l.b16 %v156
    %v190 = vunpack.c.l.b16 %v157
    %v191 = vunpack.c.l.b16 %v158
    %v192 = vpack.c.b16 %v189, %v188
    %v193 = vpack.c.b16 %v191, %v190
    %v197 = vsel %vm165, %v183, 0
    %199 = vmatpush.bf16.msra.mxu0 0
    %200 = vmatpush.bf16.msra.mxu0 0
    %201 = vmatpush.bf16.msra.mxu0 0
    %202 = vmatpush.bf16.msra.mxu0 0
    %203 = vmatpush.bf16.msra.mxu0 0
    %204 = vmatpush.bf16.msra.mxu0 0
    %205 = vmatpush.bf16.msra.mxu0 %v193
    %206 = vmatpush.bf16.msra.mxu0 %v192
    %207 = vmatmul.bf16.gmra.mxu0 %v197
    %v208 = vpop.f32.mrf.mxu0
    %v209 = vadd.f32 %v159, %v208
    %v210 = vpop.f32.mrf.mxu0
    %211 = vdwg.mxu0
    %v212 = vpack.c.bf16 %v209, %v209
    %v217 = vunpack.c.l.b16 %v160
    %v218 = vunpack.c.l.b16 %v161
    %v219 = vunpack.c.l.b16 %v162
    %v220 = vunpack.c.l.b16 %v163
    %v221 = vpack.c.b16 %v218, %v217
    %v222 = vpack.c.b16 %v220, %v219
    %v226 = vsel %vm165, %v212, 0
    %228 = vmatpush.bf16.msra.mxu0 0
    %229 = vmatpush.bf16.msra.mxu0 0
    %230 = vmatpush.bf16.msra.mxu0 0
    %231 = vmatpush.bf16.msra.mxu0 0
    %232 = vmatpush.bf16.msra.mxu0 0
    %233 = vmatpush.bf16.msra.mxu0 0
    %234 = vmatpush.bf16.msra.mxu0 %v222
    %235 = vmatpush.bf16.msra.mxu0 %v221
    %236 = vmatmul.bf16.gmra.mxu0 %v226
    %v237 = vpop.f32.mrf.mxu0
    %v238 = vadd.f32 %v164, %v237
    %v239 = vpop.f32.mrf.mxu0
    %240 = vdwg.mxu0
    %vm241 = vcmask 253952
    %242 = vst.msk [vmem:[#allocation2] sm:$0x1] %vm241, %v153
    %vm243 = vcmask 257024
    %244 = vst.msk [vmem:[#allocation2 + $0x1] sm:$0xf] %vm243, %v154
    %v245 = vperm.slane %v238, 0
    %246 = vst.msk [vmem:[#allocation2 + $0x5] sm:$0xf] %vm243, %v245
    %247 = vst.msk [vmem:[#allocation2 + $0x9] sm:$0xff] %vm165, %v144
    %248 = vst.msk [vmem:[#allocation2 + $0x11] sm:$0xff] %vm165, %v146
    %vm249 = vcmask 260096
    %250 = vst.msk [vmem:[#allocation2 + $0x19] sm:$0x7f] %vm249, 0.0
    %v251 = vsel %vm165, %v149, 0.0
    %v252 = vsel %vm165, %v151, 0.0
    %v253 = vadd.f32 %v251, %v252
    %v254 = vrot.slane %v253, 4
    %v255 = vadd.f32 %v253, %v254
    %v256 = vrot.slane %v255, 2
    %v257 = vadd.f32 %v255, %v256
    %v258 = vrot.slane %v257, 1
    %v259 = vadd.f32 %v257, %v258
    %v260 = vmul.f32 %v259, %v181
    %v261 = vpack.c.bf16 %v260, %v260
    %v263 = vsel %vm165, %v261, 0
    %265 = vmatpush.bf16.msra.mxu0 0
    %266 = vmatpush.bf16.msra.mxu0 0
    %267 = vmatpush.bf16.msra.mxu0 0
    %268 = vmatpush.bf16.msra.mxu0 0
    %269 = vmatpush.bf16.msra.mxu0 0
    %270 = vmatpush.bf16.msra.mxu0 0
    %271 = vmatpush.bf16.msra.mxu0 %v193
    %272 = vmatpush.bf16.msra.mxu0 %v192
    %273 = vmatmul.bf16.gmra.mxu0 %v263
    %v274 = vpop.f32.mrf.mxu0
    %v275 = vadd.f32 %v159, %v274
    %v276 = vpop.f32.mrf.mxu0
    %277 = vdwg.mxu0
    %v278 = vpack.c.bf16 %v275, %v275
    %v280 = vsel %vm165, %v278, 0
    %282 = vmatpush.bf16.msra.mxu0 0
    %283 = vmatpush.bf16.msra.mxu0 0
    %284 = vmatpush.bf16.msra.mxu0 0
    %285 = vmatpush.bf16.msra.mxu0 0
    %286 = vmatpush.bf16.msra.mxu0 0
    %287 = vmatpush.bf16.msra.mxu0 0
    %288 = vmatpush.bf16.msra.mxu0 %v222
    %289 = vmatpush.bf16.msra.mxu0 %v221
    %290 = vmatmul.bf16.gmra.mxu0 %v280
    %v291 = vpop.f32.mrf.mxu0
    %v292 = vadd.f32 %v164, %v291
    %v293 = vpop.f32.mrf.mxu0
    %294 = vdwg.mxu0
    %295 = vst.msk [vmem:[#allocation2 + $0x20] sm:$0x1] %vm241, %v153
    %296 = vst.msk [vmem:[#allocation2 + $0x21] sm:$0xf] %vm243, %v154
    %v297 = vperm.slane %v292, 0
    %298 = vst.msk [vmem:[#allocation2 + $0x25] sm:$0xf] %vm243, %v297
    %299 = vst.msk [vmem:[#allocation2 + $0x29] sm:$0xff] %vm165, %v149
    %300 = vst.msk [vmem:[#allocation2 + $0x31] sm:$0xff] %vm165, %v151
    %301 = vst.msk [vmem:[#allocation2 + $0x39] sm:$0x7f] %vm249, 0.0
    %v302 = vld [vmem:[#allocation2] sm:$0xff]
    %v303 = vld [vmem:[#allocation2 + $0x8] sm:$0xff]
    %v304 = vld [vmem:[#allocation2 + $0x10] sm:$0xff]
    %v305 = vld [vmem:[#allocation2 + $0x18] sm:$0xff]
    %v306 = vld [vmem:[#allocation2 + $0x20] sm:$0xff]
    %v307 = vld [vmem:[#allocation2 + $0x28] sm:$0xff]
    %v308 = vld [vmem:[#allocation2 + $0x30] sm:$0xff]
    %v309 = vld [vmem:[#allocation2 + $0x38] sm:$0xff]
    %v310 = vld [vmem:[%s9] sm:$0xff]
    %v311 = vld [vmem:[%s9 + $0x8] sm:$0xff]
    %v312 = vld [vmem:[%s9 + $0x10] sm:$0xff]
    %v313 = vld [vmem:[%s9 + $0x18] sm:$0xff]
    %v314 = vld [vmem:[%s9 + $0x20] sm:$0xff]
    %v315 = vld [vmem:[%s9 + $0x28] sm:$0xff]
    %v316 = vld [vmem:[%s9 + $0x30] sm:$0xff]
    %v317 = vld [vmem:[%s9 + $0x38] sm:$0xff]
    %v318 = vadd.f32 %v302, %v310
    %v319 = vadd.f32 %v303, %v311
    %v320 = vadd.f32 %v304, %v312
    %v321 = vadd.f32 %v305, %v313
    %v322 = vadd.f32 %v306, %v314
    %v323 = vadd.f32 %v307, %v315
    %v324 = vadd.f32 %v308, %v316
    %v325 = vadd.f32 %v309, %v317
    %v326 = vlaneseq
    %v327 = vand.u32 %v326, 127
    %vm328 = vcmp.lt.s32.totalorder %v327, 25
    %v329 = vsel %vm328, 0.0, -1e+30
    %v330 = vld [vmem:[%s10] sm:$0x1]
    %v331 = vld [vmem:[%s11] sm:$0x1]
    %v332 = vld [vmem:[%s12] sm:$0xf]
    %v333 = vld [vmem:[%s12 + $0x4] sm:$0xf]
    %v334 = vld [vmem:[%s12 + $0x8] sm:$0xf]
    %v335 = vld [vmem:[%s12 + $0xc] sm:$0xf]
    %v336 = vld [vmem:[%s13] sm:$0x1]
    %v337 = vld [vmem:[%s14] sm:$0xf]
    %v338 = vld [vmem:[%s14 + $0x4] sm:$0xf]
    %v339 = vld [vmem:[%s14 + $0x8] sm:$0xf]
    %v340 = vld [vmem:[%s14 + $0xc] sm:$0xf]
    %v341 = vld [vmem:[%s15] sm:$0x1]
    %v342 = vld [vmem:[%s16] sm:$0x1]
    %v343 = vld [vmem:[%s17] sm:$0x1]
    %v344 = vld [vmem:[%s18] sm:$0xf]
    %v345 = vld [vmem:[%s18 + $0x4] sm:$0xf]
    %v346 = vld [vmem:[%s18 + $0x8] sm:$0xf]
    %v347 = vld [vmem:[%s18 + $0xc] sm:$0xf]
    %v348 = vld [vmem:[%s19] sm:$0x1]
    %v349 = vld [vmem:[%s20] sm:$0xf]
    %v350 = vld [vmem:[%s20 + $0x4] sm:$0xf]
    %v351 = vld [vmem:[%s20 + $0x8] sm:$0xf]
    %v352 = vld [vmem:[%s20 + $0xc] sm:$0xf]
    %v353 = vld [vmem:[%s20 + $0x10] sm:$0xf]
    %v354 = vld [vmem:[%s20 + $0x14] sm:$0xf]
    %v355 = vld [vmem:[%s20 + $0x18] sm:$0xf]
    %v356 = vld [vmem:[%s20 + $0x1c] sm:$0xf]
    %v357 = vld [vmem:[%s21] sm:$0x1]
    %v358 = vsel %vm165, %v318, 0.0
    %359 = vadd.xlane.f32.xlu0 %v358
    %v360 = vpop.xlane.xlu0 %359
    %v361 = vsel %vm165, %v319, 0.0
    %362 = vadd.xlane.f32.xlu0 %v361
    %v363 = vpop.xlane.xlu0 %362
    %v364 = vsel %vm165, %v320, 0.0
    %365 = vadd.xlane.f32.xlu0 %v364
    %v366 = vpop.xlane.xlu0 %365
    %v367 = vsel %vm165, %v321, 0.0
    %368 = vadd.xlane.f32.xlu0 %v367
    %v369 = vpop.xlane.xlu0 %368
    %v370 = vsel %vm165, %v322, 0.0
    %371 = vadd.xlane.f32.xlu0 %v370
    %v372 = vpop.xlane.xlu0 %371
    %v373 = vsel %vm165, %v323, 0.0
    %374 = vadd.xlane.f32.xlu0 %v373
    %v375 = vpop.xlane.xlu0 %374
    %v376 = vsel %vm165, %v324, 0.0
    %377 = vadd.xlane.f32.xlu0 %v376
    %v378 = vpop.xlane.xlu0 %377
    %v379 = vsel %vm165, %v325, 0.0
    %380 = vadd.xlane.f32.xlu0 %v379
    %v381 = vpop.xlane.xlu0 %380
    %v382 = vrcp.pop 32.0
    %v383 = vmul.f32 32.0, %v382
    %v384 = vsub.f32 1.0, %v383
    %v385 = vmul.f32 %v382, %v384
    %v386 = vadd.f32 %v382, %v385
    %vm387 = vweird.f32 %v382
    %v388 = vsel %vm387, %v382, %v386
    %v389 = vmul.f32 %v360, %v388
    %v390 = vmul.f32 %v363, %v388
    %v391 = vmul.f32 %v366, %v388
    %v392 = vmul.f32 %v369, %v388
    %v393 = vmul.f32 %v372, %v388
    %v394 = vmul.f32 %v375, %v388
    %v395 = vmul.f32 %v378, %v388
    %v396 = vmul.f32 %v381, %v388
    %v397 = vsub.f32 %v318, %v389
    %v398 = vsub.f32 %v319, %v390
    %v399 = vsub.f32 %v320, %v391
    %v400 = vsub.f32 %v321, %v392
    %v401 = vsub.f32 %v322, %v393
    %v402 = vsub.f32 %v323, %v394
    %v403 = vsub.f32 %v324, %v395
    %v404 = vsub.f32 %v325, %v396
    %v405 = vmul.f32 %v397, %v397
    %v406 = vmul.f32 %v398, %v398
    %v407 = vmul.f32 %v399, %v399
    %v408 = vmul.f32 %v400, %v400
    %v409 = vmul.f32 %v401, %v401
    %v410 = vmul.f32 %v402, %v402
    %v411 = vmul.f32 %v403, %v403
    %v412 = vmul.f32 %v404, %v404
    %v413 = vsel %vm165, %v405, 0.0
    %414 = vadd.xlane.f32.xlu0 %v413
    %v415 = vpop.xlane.xlu0 %414
    %v416 = vsel %vm165, %v406, 0.0
    %417 = vadd.xlane.f32.xlu0 %v416
    %v418 = vpop.xlane.xlu0 %417
    %v419 = vsel %vm165, %v407, 0.0
    %420 = vadd.xlane.f32.xlu0 %v419
    %v421 = vpop.xlane.xlu0 %420
    %v422 = vsel %vm165, %v408, 0.0
    %423 = vadd.xlane.f32.xlu0 %v422
    %v424 = vpop.xlane.xlu0 %423
    %v425 = vsel %vm165, %v409, 0.0
    %426 = vadd.xlane.f32.xlu0 %v425
    %v427 = vpop.xlane.xlu0 %426
    %v428 = vsel %vm165, %v410, 0.0
    %429 = vadd.xlane.f32.xlu0 %v428
    %v430 = vpop.xlane.xlu0 %429
    %v431 = vsel %vm165, %v411, 0.0
    %432 = vadd.xlane.f32.xlu0 %v431
    %v433 = vpop.xlane.xlu0 %432
    %v434 = vsel %vm165, %v412, 0.0
    %435 = vadd.xlane.f32.xlu0 %v434
    %v436 = vpop.xlane.xlu0 %435
    %v437 = vmul.f32 %v415, %v388
    %v438 = vmul.f32 %v418, %v388
    %v439 = vmul.f32 %v421, %v388
    %v440 = vmul.f32 %v424, %v388
    %v441 = vmul.f32 %v427, %v388
    %v442 = vmul.f32 %v430, %v388
    %v443 = vmul.f32 %v433, %v388
    %v444 = vmul.f32 %v436, %v388
    %v445 = vadd.f32 %v437, 1e-06
    %v446 = vadd.f32 %v438, 1e-06
    %v447 = vadd.f32 %v439, 1e-06
    %v448 = vadd.f32 %v440, 1e-06
    %v449 = vadd.f32 %v441, 1e-06
    %v450 = vadd.f32 %v442, 1e-06
    %v451 = vadd.f32 %v443, 1e-06
    %v452 = vadd.f32 %v444, 1e-06
    %v453 = vrsqrt.pop %v445
    %v454 = vmul.f32 %v453, %v445
    %v455 = vmul.f32 %v454, %v453
    %v456 = vmul.f32 0.5, %v455
    %v457 = vsub.f32 1.5, %v456
    %v458 = vmul.f32 %v453, %v457
    %vm459 = vweird.f32 %v445
    %vm460 = vweird.f32 %v453
    %vm461 = vmor %vm459, %vm460
    %v462 = vsel %vm461, %v453, %v458
    %v463 = vrsqrt.pop %v446
    %v464 = vmul.f32 %v463, %v446
    %v465 = vmul.f32 %v464, %v463
    %v466 = vmul.f32 0.5, %v465
    %v467 = vsub.f32 1.5, %v466
    %v468 = vmul.f32 %v463, %v467
    %vm469 = vweird.f32 %v446
    %vm470 = vweird.f32 %v463
    %vm471 = vmor %vm469, %vm470
    %v472 = vsel %vm471, %v463, %v468
    %v473 = vrsqrt.pop %v447
    %v474 = vmul.f32 %v473, %v447
    %v475 = vmul.f32 %v474, %v473
    %v476 = vmul.f32 0.5, %v475
    %v477 = vsub.f32 1.5, %v476
    %v478 = vmul.f32 %v473, %v477
    %vm479 = vweird.f32 %v447
    %vm480 = vweird.f32 %v473
    %vm481 = vmor %vm479, %vm480
    %v482 = vsel %vm481, %v473, %v478
    %v483 = vrsqrt.pop %v448
    %v484 = vmul.f32 %v483, %v448
    %v485 = vmul.f32 %v484, %v483
    %v486 = vmul.f32 0.5, %v485
    %v487 = vsub.f32 1.5, %v486
    %v488 = vmul.f32 %v483, %v487
    %vm489 = vweird.f32 %v448
    %vm490 = vweird.f32 %v483
    %vm491 = vmor %vm489, %vm490
    %v492 = vsel %vm491, %v483, %v488
    %v493 = vrsqrt.pop %v449
    %v494 = vmul.f32 %v493, %v449
    %v495 = vmul.f32 %v494, %v493
    %v496 = vmul.f32 0.5, %v495
    %v497 = vsub.f32 1.5, %v496
    %v498 = vmul.f32 %v493, %v497
    %vm499 = vweird.f32 %v449
    %vm500 = vweird.f32 %v493
    %vm501 = vmor %vm499, %vm500
    %v502 = vsel %vm501, %v493, %v498
    %v503 = vrsqrt.pop %v450
    %v504 = vmul.f32 %v503, %v450
    %v505 = vmul.f32 %v504, %v503
    %v506 = vmul.f32 0.5, %v505
    %v507 = vsub.f32 1.5, %v506
    %v508 = vmul.f32 %v503, %v507
    %vm509 = vweird.f32 %v450
    %vm510 = vweird.f32 %v503
    %vm511 = vmor %vm509, %vm510
    %v512 = vsel %vm511, %v503, %v508
    %v513 = vrsqrt.pop %v451
    %v514 = vmul.f32 %v513, %v451
    %v515 = vmul.f32 %v514, %v513
    %v516 = vmul.f32 0.5, %v515
    %v517 = vsub.f32 1.5, %v516
    %v518 = vmul.f32 %v513, %v517
    %vm519 = vweird.f32 %v451
    %vm520 = vweird.f32 %v513
    %vm521 = vmor %vm519, %vm520
    %v522 = vsel %vm521, %v513, %v518
    %v523 = vrsqrt.pop %v452
    %v524 = vmul.f32 %v523, %v452
    %v525 = vmul.f32 %v524, %v523
    %v526 = vmul.f32 0.5, %v525
    %v527 = vsub.f32 1.5, %v526
    %v528 = vmul.f32 %v523, %v527
    %vm529 = vweird.f32 %v452
    %vm530 = vweird.f32 %v523
    %vm531 = vmor %vm529, %vm530
    %v532 = vsel %vm531, %v523, %v528
    %v533 = vmul.f32 %v397, %v462
    %v534 = vmul.f32 %v398, %v472
    %v535 = vmul.f32 %v399, %v482
    %v536 = vmul.f32 %v400, %v492
    %v537 = vmul.f32 %v401, %v502
    %v538 = vmul.f32 %v402, %v512
    %v539 = vmul.f32 %v403, %v522
    %v540 = vmul.f32 %v404, %v532
    %v542 = vperm.slane %v330, 0
    %v544 = vmul.f32 %v533, %v542
    %v545 = vmul.f32 %v534, %v542
    %v546 = vmul.f32 %v535, %v542
    %v547 = vmul.f32 %v536, %v542
    %v548 = vmul.f32 %v537, %v542
    %v549 = vmul.f32 %v538, %v542
    %v550 = vmul.f32 %v539, %v542
    %v551 = vmul.f32 %v540, %v542
    %v553 = vperm.slane %v331, 0
    %v555 = vadd.f32 %v544, %v553
    %v556 = vadd.f32 %v545, %v553
    %v557 = vadd.f32 %v546, %v553
    %v558 = vadd.f32 %v547, %v553
    %v559 = vadd.f32 %v548, %v553
    %v560 = vadd.f32 %v549, %v553
    %v561 = vadd.f32 %v550, %v553
    %v562 = vadd.f32 %v551, %v553
    %v563 = vpack.c.bf16 %v556, %v555
    %v564 = vpack.c.bf16 %v558, %v557
    %v565 = vpack.c.bf16 %v560, %v559
    %v566 = vpack.c.bf16 %v562, %v561
    %v568 = vperm.slane %v336, 0
    %v574 = vunpack.c.l.b16 %v332
    %v575 = vunpack.c.l.b16 %v333
    %v576 = vunpack.c.l.b16 %v334
    %v577 = vunpack.c.l.b16 %v335
    %v578 = vpack.c.b16 %v575, %v574
    %v579 = vpack.c.b16 %v577, %v576
    %v583 = vsel %vm165, %v563, 0
    %v586 = vsel %vm165, %v564, 0
    %v589 = vsel %vm165, %v565, 0
    %v592 = vsel %vm165, %v566, 0
    %594 = vmatpush.bf16.msra.mxu0 0
    %595 = vmatpush.bf16.msra.mxu0 0
    %596 = vmatpush.bf16.msra.mxu0 0
    %597 = vmatpush.bf16.msra.mxu0 0
    %598 = vmatpush.bf16.msra.mxu0 0
    %599 = vmatpush.bf16.msra.mxu0 0
    %600 = vmatpush.bf16.msra.mxu0 %v579
    %601 = vmatpush.bf16.msra.mxu0 %v578
    %602 = vmatmul.bf16.gmra.mxu0 %v583
    %v603 = vpop.f32.mrf.mxu0
    %v604 = vadd.f32 %v568, %v603
    %v605 = vpop.f32.mrf.mxu0
    %v606 = vadd.f32 %v568, %v605
    %607 = vmatmul.bf16.gmra.mxu0 %v586
    %v608 = vpop.f32.mrf.mxu0
    %v609 = vadd.f32 %v568, %v608
    %v610 = vpop.f32.mrf.mxu0
    %v611 = vadd.f32 %v568, %v610
    %612 = vmatmul.bf16.gmra.mxu0 %v589
    %v613 = vpop.f32.mrf.mxu0
    %v614 = vadd.f32 %v568, %v613
    %v615 = vpop.f32.mrf.mxu0
    %v616 = vadd.f32 %v568, %v615
    %617 = vmatmul.bf16.gmra.mxu0 %v592
    %v618 = vpop.f32.mrf.mxu0
    %v619 = vadd.f32 %v568, %v618
    %v620 = vpop.f32.mrf.mxu0
    %v621 = vadd.f32 %v568, %v620
    %622 = vdwg.mxu0
    %v623 = vpack.c.bf16 %v606, %v604
    %v624 = vpack.c.bf16 %v611, %v609
    %627 = vrot.lane.b32.xlu0 %v623, 96
    %v628 = vpop.permute.xlu0 %627
    %629 = vrot.lane.b32.xlu0 %v624, 96
    %v630 = vpop.permute.xlu0 %629
    %vm631 = vcmask 64512
    %v633 = vsel %vm631, %v623, 0
    %v636 = vsel %vm631, %v624, 0
    %v639 = vsel %vm631, %v628, 0
    %v642 = vsel %vm631, %v630, 0
    %644 = vmatpush.bf16.xpose.msra.mxu0 0
    %645 = vmatpush.bf16.xpose.msra.mxu0 0
    %646 = vmatpush.bf16.xpose.msra.mxu0 0
    %647 = vmatpush.bf16.xpose.msra.mxu0 0
    %648 = vmatpush.bf16.xpose.msra.mxu0 0
    %649 = vmatpush.bf16.xpose.msra.mxu0 0
    %650 = vmatpush.bf16.xpose.msra.mxu0 %v642
    %651 = vmatpush.bf16.xpose.msra.mxu0 %v639
    %652 = vmatmul.bf16.gmra.mxu0 %v633
    %v653 = vpop.f32.mrf.mxu0
    %v654 = vadd.f32 0.0, %v653
    %v655 = vpop.f32.mrf.mxu0
    %v656 = vadd.f32 0.0, %v655
    %657 = vmatmul.bf16.gmra.mxu0 %v636
    %v658 = vpop.f32.mrf.mxu0
    %v659 = vadd.f32 0.0, %v658
    %v660 = vpop.f32.mrf.mxu0
    %v661 = vadd.f32 0.0, %v660
    %662 = vdwg.mxu0
    %v663 = vmul.f32 %v654, 0.35355338
    %v664 = vmul.f32 %v656, 0.35355338
    %v665 = vmul.f32 %v659, 0.35355338
    %v666 = vmul.f32 %v661, 0.35355338
    %v667 = vadd.f32 %v663, %v329
    %v668 = vadd.f32 %v664, %v329
    %v669 = vadd.f32 %v665, %v329
    %v670 = vadd.f32 %v666, %v329
    %v671 = vsel %vm165, %v667, -inf
    %672 = vmax.xlane.f32.xlu0 %v671
    %v673 = vpop.xlane.xlu0 %672
    %v674 = vsel %vm165, %v668, -inf
    %675 = vmax.xlane.f32.xlu0 %v674
    %v676 = vpop.xlane.xlu0 %675
    %v677 = vsel %vm165, %v669, -inf
    %678 = vmax.xlane.f32.xlu0 %v677
    %v679 = vpop.xlane.xlu0 %678
    %v680 = vsel %vm165, %v670, -inf
    %681 = vmax.xlane.f32.xlu0 %v680
    %v682 = vpop.xlane.xlu0 %681
    %v683 = vsub.f32 %v667, %v673
    %v684 = vsub.f32 %v668, %v676
    %v685 = vsub.f32 %v669, %v679
    %v686 = vsub.f32 %v670, %v682
    %v687 = vmul.f32 %v683, 1.442695
    %v688 = vpow.pop %v687
    %v689 = vmul.f32 %v684, 1.442695
    %v690 = vpow.pop %v689
    %v691 = vmul.f32 %v685, 1.442695
    %v692 = vpow.pop %v691
    %v693 = vmul.f32 %v686, 1.442695
    %v694 = vpow.pop %v693
    %v695 = vsel %vm165, %v688, 0.0
    %696 = vadd.xlane.f32.xlu0 %v695
    %v697 = vpop.xlane.xlu0 %696
    %v698 = vsel %vm165, %v690, 0.0
    %699 = vadd.xlane.f32.xlu0 %v698
    %v700 = vpop.xlane.xlu0 %699
    %v701 = vsel %vm165, %v692, 0.0
    %702 = vadd.xlane.f32.xlu0 %v701
    %v703 = vpop.xlane.xlu0 %702
    %v704 = vsel %vm165, %v694, 0.0
    %705 = vadd.xlane.f32.xlu0 %v704
    %v706 = vpop.xlane.xlu0 %705
    %v707 = vrcp.pop %v697
    %v708 = vrcp.pop %v700
    %v709 = vrcp.pop %v703
    %v710 = vrcp.pop %v706
    %v711 = vmul.f32 %v688, %v707
    %v712 = vmul.f32 %v690, %v708
    %v713 = vmul.f32 %v692, %v709
    %v714 = vmul.f32 %v694, %v710
    %v715 = vpack.c.bf16 %v712, %v711
    %v716 = vpack.c.bf16 %v714, %v713
    %717 = vrot.lane.b32.xlu0 %v623, 64
    %v718 = vpop.permute.xlu0 %717
    %719 = vrot.lane.b32.xlu0 %v624, 64
    %v720 = vpop.permute.xlu0 %719
    %v724 = vsel %vm165, %v715, 0
    %v727 = vsel %vm165, %v716, 0
    %729 = vmatpush.bf16.msra.mxu0 0
    %730 = vmatpush.bf16.msra.mxu0 0
    %731 = vmatpush.bf16.msra.mxu0 0
    %732 = vmatpush.bf16.msra.mxu0 0
    %733 = vmatpush.bf16.msra.mxu0 0
    %734 = vmatpush.bf16.msra.mxu0 0
    %735 = vmatpush.bf16.msra.mxu0 %v720
    %736 = vmatpush.bf16.msra.mxu0 %v718
    %737 = vmatmul.bf16.gmra.mxu0 %v724
    %v738 = vpop.f32.mrf.mxu0
    %v739 = vadd.f32 0.0, %v738
    %v740 = vpop.f32.mrf.mxu0
    %v741 = vadd.f32 0.0, %v740
    %742 = vmatmul.bf16.gmra.mxu0 %v727
    %v743 = vpop.f32.mrf.mxu0
    %v744 = vadd.f32 0.0, %v743
    %v745 = vpop.f32.mrf.mxu0
    %v746 = vadd.f32 0.0, %v745
    %747 = vdwg.mxu0
    %748 = vst.msk [vmem:[#allocation2] sm:$0xff] %vm631, %v739
    %749 = vst.msk [vmem:[#allocation2 + $0x8] sm:$0xff] %vm631, %v741
    %750 = vst.msk [vmem:[#allocation2 + $0x10] sm:$0xff] %vm631, %v744
    %751 = vst.msk [vmem:[#allocation2 + $0x18] sm:$0xff] %vm631, %v746
    %752 = vrot.lane.b32.xlu0 %v623, 120
    %v753 = vpop.permute.xlu0 %752
    %754 = vrot.lane.b32.xlu0 %v624, 120
    %v755 = vpop.permute.xlu0 %754
    %756 = vrot.lane.b32.xlu0 %v623, 88
    %v757 = vpop.permute.xlu0 %756
    %758 = vrot.lane.b32.xlu0 %v624, 88
    %v759 = vpop.permute.xlu0 %758
    %v761 = vsel %vm631, %v753, 0
    %v764 = vsel %vm631, %v755, 0
    %v767 = vsel %vm631, %v757, 0
    %v770 = vsel %vm631, %v759, 0
    %772 = vmatpush.bf16.xpose.msra.mxu0 0
    %773 = vmatpush.bf16.xpose.msra.mxu0 0
    %774 = vmatpush.bf16.xpose.msra.mxu0 0
    %775 = vmatpush.bf16.xpose.msra.mxu0 0
    %776 = vmatpush.bf16.xpose.msra.mxu0 0
    %777 = vmatpush.bf16.xpose.msra.mxu0 0
    %778 = vmatpush.bf16.xpose.msra.mxu0 %v770
    %779 = vmatpush.bf16.xpose.msra.mxu0 %v767
    %780 = vmatmul.bf16.gmra.mxu0 %v761
    %v781 = vpop.f32.mrf.mxu0
    %v782 = vadd.f32 0.0, %v781
    %v783 = vpop.f32.mrf.mxu0
    %v784 = vadd.f32 0.0, %v783
    %785 = vmatmul.bf16.gmra.mxu0 %v764
    %v786 = vpop.f32.mrf.mxu0
    %v787 = vadd.f32 0.0, %v786
    %v788 = vpop.f32.mrf.mxu0
    %v789 = vadd.f32 0.0, %v788
    %790 = vdwg.mxu0
    %v791 = vmul.f32 %v782, 0.35355338
    %v792 = vmul.f32 %v784, 0.35355338
    %v793 = vmul.f32 %v787, 0.35355338
    %v794 = vmul.f32 %v789, 0.35355338
    %v795 = vadd.f32 %v791, %v329
    %v796 = vadd.f32 %v792, %v329
    %v797 = vadd.f32 %v793, %v329
    %v798 = vadd.f32 %v794, %v329
    %v799 = vsel %vm165, %v795, -inf
    %800 = vmax.xlane.f32.xlu0 %v799
    %v801 = vpop.xlane.xlu0 %800
    %v802 = vsel %vm165, %v796, -inf
    %803 = vmax.xlane.f32.xlu0 %v802
    %v804 = vpop.xlane.xlu0 %803
    %v805 = vsel %vm165, %v797, -inf
    %806 = vmax.xlane.f32.xlu0 %v805
    %v807 = vpop.xlane.xlu0 %806
    %v808 = vsel %vm165, %v798, -inf
    %809 = vmax.xlane.f32.xlu0 %v808
    %v810 = vpop.xlane.xlu0 %809
    %v811 = vsub.f32 %v795, %v801
    %v812 = vsub.f32 %v796, %v804
    %v813 = vsub.f32 %v797, %v807
    %v814 = vsub.f32 %v798, %v810
    %v815 = vmul.f32 %v811, 1.442695
    %v816 = vpow.pop %v815
    %v817 = vmul.f32 %v812, 1.442695
    %v818 = vpow.pop %v817
    %v819 = vmul.f32 %v813, 1.442695
    %v820 = vpow.pop %v819
    %v821 = vmul.f32 %v814, 1.442695
    %v822 = vpow.pop %v821
    %v823 = vsel %vm165, %v816, 0.0
    %824 = vadd.xlane.f32.xlu0 %v823
    %v825 = vpop.xlane.xlu0 %824
    %v826 = vsel %vm165, %v818, 0.0
    %827 = vadd.xlane.f32.xlu0 %v826
    %v828 = vpop.xlane.xlu0 %827
    %v829 = vsel %vm165, %v820, 0.0
    %830 = vadd.xlane.f32.xlu0 %v829
    %v831 = vpop.xlane.xlu0 %830
    %v832 = vsel %vm165, %v822, 0.0
    %833 = vadd.xlane.f32.xlu0 %v832
    %v834 = vpop.xlane.xlu0 %833
    %v835 = vrcp.pop %v825
    %v836 = vrcp.pop %v828
    %v837 = vrcp.pop %v831
    %v838 = vrcp.pop %v834
    %v839 = vmul.f32 %v816, %v835
    %v840 = vmul.f32 %v818, %v836
    %v841 = vmul.f32 %v820, %v837
    %v842 = vmul.f32 %v822, %v838
    %v843 = vpack.c.bf16 %v840, %v839
    %v844 = vpack.c.bf16 %v842, %v841
    %845 = vrot.lane.b32.xlu0 %v623, 56
    %v846 = vpop.permute.xlu0 %845
    %847 = vrot.lane.b32.xlu0 %v624, 56
    %v848 = vpop.permute.xlu0 %847
    %v852 = vsel %vm165, %v843, 0
    %v855 = vsel %vm165, %v844, 0
    %857 = vmatpush.bf16.msra.mxu0 0
    %858 = vmatpush.bf16.msra.mxu0 0
    %859 = vmatpush.bf16.msra.mxu0 0
    %860 = vmatpush.bf16.msra.mxu0 0
    %861 = vmatpush.bf16.msra.mxu0 0
    %862 = vmatpush.bf16.msra.mxu0 0
    %863 = vmatpush.bf16.msra.mxu0 %v848
    %864 = vmatpush.bf16.msra.mxu0 %v846
    %865 = vmatmul.bf16.gmra.mxu0 %v852
    %v866 = vpop.f32.mrf.mxu0
    %v867 = vadd.f32 0.0, %v866
    %v868 = vpop.f32.mrf.mxu0
    %v869 = vadd.f32 0.0, %v868
    %870 = vmatmul.bf16.gmra.mxu0 %v855
    %v871 = vpop.f32.mrf.mxu0
    %v872 = vadd.f32 0.0, %v871
    %v873 = vpop.f32.mrf.mxu0
    %v874 = vadd.f32 0.0, %v873
    %875 = vdwg.mxu0
    %880 = vrot.lane.b32.xlu0 %v867, 8
    %v881 = vpop.permute.xlu0 %880
    %882 = vrot.lane.b32.xlu0 %v869, 8
    %v883 = vpop.permute.xlu0 %882
    %884 = vrot.lane.b32.xlu0 %v872, 8
    %v885 = vpop.permute.xlu0 %884
    %886 = vrot.lane.b32.xlu0 %v874, 8
    %v887 = vpop.permute.xlu0 %886
    %vm892 = vcmask 130112
    %893 = vst.msk [vmem:[#allocation2] sm:$0xff] %vm892, %v881
    %894 = vst.msk [vmem:[#allocation2 + $0x8] sm:$0xff] %vm892, %v883
    %895 = vst.msk [vmem:[#allocation2 + $0x10] sm:$0xff] %vm892, %v885
    %896 = vst.msk [vmem:[#allocation2 + $0x18] sm:$0xff] %vm892, %v887
    %897 = vrot.lane.b32.xlu0 %v623, 112
    %v898 = vpop.permute.xlu0 %897
    %899 = vrot.lane.b32.xlu0 %v624, 112
    %v900 = vpop.permute.xlu0 %899
    %901 = vrot.lane.b32.xlu0 %v623, 80
    %v902 = vpop.permute.xlu0 %901
    %903 = vrot.lane.b32.xlu0 %v624, 80
    %v904 = vpop.permute.xlu0 %903
    %v906 = vsel %vm631, %v898, 0
    %v909 = vsel %vm631, %v900, 0
    %v912 = vsel %vm631, %v902, 0
    %v915 = vsel %vm631, %v904, 0
    %917 = vmatpush.bf16.xpose.msra.mxu0 0
    %918 = vmatpush.bf16.xpose.msra.mxu0 0
    %919 = vmatpush.bf16.xpose.msra.mxu0 0
    %920 = vmatpush.bf16.xpose.msra.mxu0 0
    %921 = vmatpush.bf16.xpose.msra.mxu0 0
    %922 = vmatpush.bf16.xpose.msra.mxu0 0
    %923 = vmatpush.bf16.xpose.msra.mxu0 %v915
    %924 = vmatpush.bf16.xpose.msra.mxu0 %v912
    %925 = vmatmul.bf16.gmra.mxu0 %v906
    %v926 = vpop.f32.mrf.mxu0
    %v927 = vadd.f32 0.0, %v926
    %v928 = vpop.f32.mrf.mxu0
    %v929 = vadd.f32 0.0, %v928
    %930 = vmatmul.bf16.gmra.mxu0 %v909
    %v931 = vpop.f32.mrf.mxu0
    %v932 = vadd.f32 0.0, %v931
    %v933 = vpop.f32.mrf.mxu0
    %v934 = vadd.f32 0.0, %v933
    %935 = vdwg.mxu0
    %v936 = vmul.f32 %v927, 0.35355338
    %v937 = vmul.f32 %v929, 0.35355338
    %v938 = vmul.f32 %v932, 0.35355338
    %v939 = vmul.f32 %v934, 0.35355338
    %v940 = vadd.f32 %v936, %v329
    %v941 = vadd.f32 %v937, %v329
    %v942 = vadd.f32 %v938, %v329
    %v943 = vadd.f32 %v939, %v329
    %v944 = vsel %vm165, %v940, -inf
    %945 = vmax.xlane.f32.xlu0 %v944
    %v946 = vpop.xlane.xlu0 %945
    %v947 = vsel %vm165, %v941, -inf
    %948 = vmax.xlane.f32.xlu0 %v947
    %v949 = vpop.xlane.xlu0 %948
    %v950 = vsel %vm165, %v942, -inf
    %951 = vmax.xlane.f32.xlu0 %v950
    %v952 = vpop.xlane.xlu0 %951
    %v953 = vsel %vm165, %v943, -inf
    %954 = vmax.xlane.f32.xlu0 %v953
    %v955 = vpop.xlane.xlu0 %954
    %v956 = vsub.f32 %v940, %v946
    %v957 = vsub.f32 %v941, %v949
    %v958 = vsub.f32 %v942, %v952
    %v959 = vsub.f32 %v943, %v955
    %v960 = vmul.f32 %v956, 1.442695
    %v961 = vpow.pop %v960
    %v962 = vmul.f32 %v957, 1.442695
    %v963 = vpow.pop %v962
    %v964 = vmul.f32 %v958, 1.442695
    %v965 = vpow.pop %v964
    %v966 = vmul.f32 %v959, 1.442695
    %v967 = vpow.pop %v966
    %v968 = vsel %vm165, %v961, 0.0
    %969 = vadd.xlane.f32.xlu0 %v968
    %v970 = vpop.xlane.xlu0 %969
    %v971 = vsel %vm165, %v963, 0.0
    %972 = vadd.xlane.f32.xlu0 %v971
    %v973 = vpop.xlane.xlu0 %972
    %v974 = vsel %vm165, %v965, 0.0
    %975 = vadd.xlane.f32.xlu0 %v974
    %v976 = vpop.xlane.xlu0 %975
    %v977 = vsel %vm165, %v967, 0.0
    %978 = vadd.xlane.f32.xlu0 %v977
    %v979 = vpop.xlane.xlu0 %978
    %v980 = vrcp.pop %v970
    %v981 = vrcp.pop %v973
    %v982 = vrcp.pop %v976
    %v983 = vrcp.pop %v979
    %v984 = vmul.f32 %v961, %v980
    %v985 = vmul.f32 %v963, %v981
    %v986 = vmul.f32 %v965, %v982
    %v987 = vmul.f32 %v967, %v983
    %v988 = vpack.c.bf16 %v985, %v984
    %v989 = vpack.c.bf16 %v987, %v986
    %990 = vrot.lane.b32.xlu0 %v623, 48
    %v991 = vpop.permute.xlu0 %990
    %992 = vrot.lane.b32.xlu0 %v624, 48
    %v993 = vpop.permute.xlu0 %992
    %v997 = vsel %vm165, %v988, 0
    %v1000 = vsel %vm165, %v989, 0
    %1002 = vmatpush.bf16.msra.mxu0 0
    %1003 = vmatpush.bf16.msra.mxu0 0
    %1004 = vmatpush.bf16.msra.mxu0 0
    %1005 = vmatpush.bf16.msra.mxu0 0
    %1006 = vmatpush.bf16.msra.mxu0 0
    %1007 = vmatpush.bf16.msra.mxu0 0
    %1008 = vmatpush.bf16.msra.mxu0 %v993
    %1009 = vmatpush.bf16.msra.mxu0 %v991
    %1010 = vmatmul.bf16.gmra.mxu0 %v997
    %v1011 = vpop.f32.mrf.mxu0
    %v1012 = vadd.f32 0.0, %v1011
    %v1013 = vpop.f32.mrf.mxu0
    %v1014 = vadd.f32 0.0, %v1013
    %1015 = vmatmul.bf16.gmra.mxu0 %v1000
    %v1016 = vpop.f32.mrf.mxu0
    %v1017 = vadd.f32 0.0, %v1016
    %v1018 = vpop.f32.mrf.mxu0
    %v1019 = vadd.f32 0.0, %v1018
    %1020 = vdwg.mxu0
    %1025 = vrot.lane.b32.xlu0 %v1012, 16
    %v1026 = vpop.permute.xlu0 %1025
    %1027 = vrot.lane.b32.xlu0 %v1014, 16
    %v1028 = vpop.permute.xlu0 %1027
    %1029 = vrot.lane.b32.xlu0 %v1017, 16
    %v1030 = vpop.permute.xlu0 %1029
    %1031 = vrot.lane.b32.xlu0 %v1019, 16
    %v1032 = vpop.permute.xlu0 %1031
    %vm1037 = vcmask 195712
    %1038 = vst.msk [vmem:[#allocation2] sm:$0xff] %vm1037, %v1026
    %1039 = vst.msk [vmem:[#allocation2 + $0x8] sm:$0xff] %vm1037, %v1028
    %1040 = vst.msk [vmem:[#allocation2 + $0x10] sm:$0xff] %vm1037, %v1030
    %1041 = vst.msk [vmem:[#allocation2 + $0x18] sm:$0xff] %vm1037, %v1032
    %1042 = vrot.lane.b32.xlu0 %v623, 104
    %v1043 = vpop.permute.xlu0 %1042
    %1044 = vrot.lane.b32.xlu0 %v624, 104
    %v1045 = vpop.permute.xlu0 %1044
    %1046 = vrot.lane.b32.xlu0 %v623, 72
    %v1047 = vpop.permute.xlu0 %1046
    %1048 = vrot.lane.b32.xlu0 %v624, 72
    %v1049 = vpop.permute.xlu0 %1048
    %v1051 = vsel %vm631, %v1043, 0
    %v1054 = vsel %vm631, %v1045, 0
    %v1057 = vsel %vm631, %v1047, 0
    %v1060 = vsel %vm631, %v1049, 0
    %1062 = vmatpush.bf16.xpose.msra.mxu0 0
    %1063 = vmatpush.bf16.xpose.msra.mxu0 0
    %1064 = vmatpush.bf16.xpose.msra.mxu0 0
    %1065 = vmatpush.bf16.xpose.msra.mxu0 0
    %1066 = vmatpush.bf16.xpose.msra.mxu0 0
    %1067 = vmatpush.bf16.xpose.msra.mxu0 0
    %1068 = vmatpush.bf16.xpose.msra.mxu0 %v1060
    %1069 = vmatpush.bf16.xpose.msra.mxu0 %v1057
    %1070 = vmatmul.bf16.gmra.mxu0 %v1051
    %v1071 = vpop.f32.mrf.mxu0
    %v1072 = vadd.f32 0.0, %v1071
    %v1073 = vpop.f32.mrf.mxu0
    %v1074 = vadd.f32 0.0, %v1073
    %1075 = vmatmul.bf16.gmra.mxu0 %v1054
    %v1076 = vpop.f32.mrf.mxu0
    %v1077 = vadd.f32 0.0, %v1076
    %v1078 = vpop.f32.mrf.mxu0
    %v1079 = vadd.f32 0.0, %v1078
    %1080 = vdwg.mxu0
    %v1081 = vmul.f32 %v1072, 0.35355338
    %v1082 = vmul.f32 %v1074, 0.35355338
    %v1083 = vmul.f32 %v1077, 0.35355338
    %v1084 = vmul.f32 %v1079, 0.35355338
    %v1085 = vadd.f32 %v1081, %v329
    %v1086 = vadd.f32 %v1082, %v329
    %v1087 = vadd.f32 %v1083, %v329
    %v1088 = vadd.f32 %v1084, %v329
    %v1089 = vsel %vm165, %v1085, -inf
    %1090 = vmax.xlane.f32.xlu0 %v1089
    %v1091 = vpop.xlane.xlu0 %1090
    %v1092 = vsel %vm165, %v1086, -inf
    %1093 = vmax.xlane.f32.xlu0 %v1092
    %v1094 = vpop.xlane.xlu0 %1093
    %v1095 = vsel %vm165, %v1087, -inf
    %1096 = vmax.xlane.f32.xlu0 %v1095
    %v1097 = vpop.xlane.xlu0 %1096
    %v1098 = vsel %vm165, %v1088, -inf
    %1099 = vmax.xlane.f32.xlu0 %v1098
    %v1100 = vpop.xlane.xlu0 %1099
    %v1101 = vsub.f32 %v1085, %v1091
    %v1102 = vsub.f32 %v1086, %v1094
    %v1103 = vsub.f32 %v1087, %v1097
    %v1104 = vsub.f32 %v1088, %v1100
    %v1105 = vmul.f32 %v1101, 1.442695
    %v1106 = vpow.pop %v1105
    %v1107 = vmul.f32 %v1102, 1.442695
    %v1108 = vpow.pop %v1107
    %v1109 = vmul.f32 %v1103, 1.442695
    %v1110 = vpow.pop %v1109
    %v1111 = vmul.f32 %v1104, 1.442695
    %v1112 = vpow.pop %v1111
    %v1113 = vsel %vm165, %v1106, 0.0
    %1114 = vadd.xlane.f32.xlu0 %v1113
    %v1115 = vpop.xlane.xlu0 %1114
    %v1116 = vsel %vm165, %v1108, 0.0
    %1117 = vadd.xlane.f32.xlu0 %v1116
    %v1118 = vpop.xlane.xlu0 %1117
    %v1119 = vsel %vm165, %v1110, 0.0
    %1120 = vadd.xlane.f32.xlu0 %v1119
    %v1121 = vpop.xlane.xlu0 %1120
    %v1122 = vsel %vm165, %v1112, 0.0
    %1123 = vadd.xlane.f32.xlu0 %v1122
    %v1124 = vpop.xlane.xlu0 %1123
    %v1125 = vrcp.pop %v1115
    %v1126 = vrcp.pop %v1118
    %v1127 = vrcp.pop %v1121
    %v1128 = vrcp.pop %v1124
    %v1129 = vmul.f32 %v1106, %v1125
    %v1130 = vmul.f32 %v1108, %v1126
    %v1131 = vmul.f32 %v1110, %v1127
    %v1132 = vmul.f32 %v1112, %v1128
    %v1133 = vpack.c.bf16 %v1130, %v1129
    %v1134 = vpack.c.bf16 %v1132, %v1131
    %1135 = vrot.lane.b32.xlu0 %v623, 40
    %v1136 = vpop.permute.xlu0 %1135
    %1137 = vrot.lane.b32.xlu0 %v624, 40
    %v1138 = vpop.permute.xlu0 %1137
    %v1142 = vsel %vm165, %v1133, 0
    %v1145 = vsel %vm165, %v1134, 0
    %1147 = vmatpush.bf16.msra.mxu0 0
    %1148 = vmatpush.bf16.msra.mxu0 0
    %1149 = vmatpush.bf16.msra.mxu0 0
    %1150 = vmatpush.bf16.msra.mxu0 0
    %1151 = vmatpush.bf16.msra.mxu0 0
    %1152 = vmatpush.bf16.msra.mxu0 0
    %1153 = vmatpush.bf16.msra.mxu0 %v1138
    %1154 = vmatpush.bf16.msra.mxu0 %v1136
    %1155 = vmatmul.bf16.gmra.mxu0 %v1142
    %v1156 = vpop.f32.mrf.mxu0
    %v1157 = vadd.f32 0.0, %v1156
    %v1158 = vpop.f32.mrf.mxu0
    %v1159 = vadd.f32 0.0, %v1158
    %1160 = vmatmul.bf16.gmra.mxu0 %v1145
    %v1161 = vpop.f32.mrf.mxu0
    %v1162 = vadd.f32 0.0, %v1161
    %v1163 = vpop.f32.mrf.mxu0
    %v1164 = vadd.f32 0.0, %v1163
    %1165 = vdwg.mxu0
    %1170 = vrot.lane.b32.xlu0 %v1157, 24
    %v1171 = vpop.permute.xlu0 %1170
    %1172 = vrot.lane.b32.xlu0 %v1159, 24
    %v1173 = vpop.permute.xlu0 %1172
    %1174 = vrot.lane.b32.xlu0 %v1162, 24
    %v1175 = vpop.permute.xlu0 %1174
    %1176 = vrot.lane.b32.xlu0 %v1164, 24
    %v1177 = vpop.permute.xlu0 %1176
    %vm1182 = vcmask 261312
    %1183 = vst.msk [vmem:[#allocation2] sm:$0xff] %vm1182, %v1171
    %1184 = vst.msk [vmem:[#allocation2 + $0x8] sm:$0xff] %vm1182, %v1173
    %1185 = vst.msk [vmem:[#allocation2 + $0x10] sm:$0xff] %vm1182, %v1175
    %1186 = vst.msk [vmem:[#allocation2 + $0x18] sm:$0xff] %vm1182, %v1177
    %v1187 = vpack.c.bf16 %v616, %v614
    %v1188 = vpack.c.bf16 %v621, %v619
    %1191 = vrot.lane.b32.xlu0 %v1187, 96
    %v1192 = vpop.permute.xlu0 %1191
    %1193 = vrot.lane.b32.xlu0 %v1188, 96
    %v1194 = vpop.permute.xlu0 %1193
    %v1196 = vsel %vm631, %v1187, 0
    %v1199 = vsel %vm631, %v1188, 0
    %v1202 = vsel %vm631, %v1192, 0
    %v1205 = vsel %vm631, %v1194, 0
    %1207 = vmatpush.bf16.xpose.msra.mxu0 0
    %1208 = vmatpush.bf16.xpose.msra.mxu0 0
    %1209 = vmatpush.bf16.xpose.msra.mxu0 0
    %1210 = vmatpush.bf16.xpose.msra.mxu0 0
    %1211 = vmatpush.bf16.xpose.msra.mxu0 0
    %1212 = vmatpush.bf16.xpose.msra.mxu0 0
    %1213 = vmatpush.bf16.xpose.msra.mxu0 %v1205
    %1214 = vmatpush.bf16.xpose.msra.mxu0 %v1202
    %1215 = vmatmul.bf16.gmra.mxu0 %v1196
    %v1216 = vpop.f32.mrf.mxu0
    %v1217 = vadd.f32 0.0, %v1216
    %v1218 = vpop.f32.mrf.mxu0
    %v1219 = vadd.f32 0.0, %v1218
    %1220 = vmatmul.bf16.gmra.mxu0 %v1199
    %v1221 = vpop.f32.mrf.mxu0
    %v1222 = vadd.f32 0.0, %v1221
    %v1223 = vpop.f32.mrf.mxu0
    %v1224 = vadd.f32 0.0, %v1223
    %1225 = vdwg.mxu0
    %v1226 = vmul.f32 %v1217, 0.35355338
    %v1227 = vmul.f32 %v1219, 0.35355338
    %v1228 = vmul.f32 %v1222, 0.35355338
    %v1229 = vmul.f32 %v1224, 0.35355338
    %v1230 = vadd.f32 %v1226, %v329
    %v1231 = vadd.f32 %v1227, %v329
    %v1232 = vadd.f32 %v1228, %v329
    %v1233 = vadd.f32 %v1229, %v329
    %v1234 = vsel %vm165, %v1230, -inf
    %1235 = vmax.xlane.f32.xlu0 %v1234
    %v1236 = vpop.xlane.xlu0 %1235
    %v1237 = vsel %vm165, %v1231, -inf
    %1238 = vmax.xlane.f32.xlu0 %v1237
    %v1239 = vpop.xlane.xlu0 %1238
    %v1240 = vsel %vm165, %v1232, -inf
    %1241 = vmax.xlane.f32.xlu0 %v1240
    %v1242 = vpop.xlane.xlu0 %1241
    %v1243 = vsel %vm165, %v1233, -inf
    %1244 = vmax.xlane.f32.xlu0 %v1243
    %v1245 = vpop.xlane.xlu0 %1244
    %v1246 = vsub.f32 %v1230, %v1236
    %v1247 = vsub.f32 %v1231, %v1239
    %v1248 = vsub.f32 %v1232, %v1242
    %v1249 = vsub.f32 %v1233, %v1245
    %v1250 = vmul.f32 %v1246, 1.442695
    %v1251 = vpow.pop %v1250
    %v1252 = vmul.f32 %v1247, 1.442695
    %v1253 = vpow.pop %v1252
    %v1254 = vmul.f32 %v1248, 1.442695
    %v1255 = vpow.pop %v1254
    %v1256 = vmul.f32 %v1249, 1.442695
    %v1257 = vpow.pop %v1256
    %v1258 = vsel %vm165, %v1251, 0.0
    %1259 = vadd.xlane.f32.xlu0 %v1258
    %v1260 = vpop.xlane.xlu0 %1259
    %v1261 = vsel %vm165, %v1253, 0.0
    %1262 = vadd.xlane.f32.xlu0 %v1261
    %v1263 = vpop.xlane.xlu0 %1262
    %v1264 = vsel %vm165, %v1255, 0.0
    %1265 = vadd.xlane.f32.xlu0 %v1264
    %v1266 = vpop.xlane.xlu0 %1265
    %v1267 = vsel %vm165, %v1257, 0.0
    %1268 = vadd.xlane.f32.xlu0 %v1267
    %v1269 = vpop.xlane.xlu0 %1268
    %v1270 = vrcp.pop %v1260
    %v1271 = vrcp.pop %v1263
    %v1272 = vrcp.pop %v1266
    %v1273 = vrcp.pop %v1269
    %v1274 = vmul.f32 %v1251, %v1270
    %v1275 = vmul.f32 %v1253, %v1271
    %v1276 = vmul.f32 %v1255, %v1272
    %v1277 = vmul.f32 %v1257, %v1273
    %v1278 = vpack.c.bf16 %v1275, %v1274
    %v1279 = vpack.c.bf16 %v1277, %v1276
    %1280 = vrot.lane.b32.xlu0 %v1187, 64
    %v1281 = vpop.permute.xlu0 %1280
    %1282 = vrot.lane.b32.xlu0 %v1188, 64
    %v1283 = vpop.permute.xlu0 %1282
    %v1287 = vsel %vm165, %v1278, 0
    %v1290 = vsel %vm165, %v1279, 0
    %1292 = vmatpush.bf16.msra.mxu0 0
    %1293 = vmatpush.bf16.msra.mxu0 0
    %1294 = vmatpush.bf16.msra.mxu0 0
    %1295 = vmatpush.bf16.msra.mxu0 0
    %1296 = vmatpush.bf16.msra.mxu0 0
    %1297 = vmatpush.bf16.msra.mxu0 0
    %1298 = vmatpush.bf16.msra.mxu0 %v1283
    %1299 = vmatpush.bf16.msra.mxu0 %v1281
    %1300 = vmatmul.bf16.gmra.mxu0 %v1287
    %v1301 = vpop.f32.mrf.mxu0
    %v1302 = vadd.f32 0.0, %v1301
    %v1303 = vpop.f32.mrf.mxu0
    %v1304 = vadd.f32 0.0, %v1303
    %1305 = vmatmul.bf16.gmra.mxu0 %v1290
    %v1306 = vpop.f32.mrf.mxu0
    %v1307 = vadd.f32 0.0, %v1306
    %v1308 = vpop.f32.mrf.mxu0
    %v1309 = vadd.f32 0.0, %v1308
    %1310 = vdwg.mxu0
    %1311 = vst.msk [vmem:[#allocation2 + $0x20] sm:$0xff] %vm631, %v1302
    %1312 = vst.msk [vmem:[#allocation2 + $0x28] sm:$0xff] %vm631, %v1304
    %1313 = vst.msk [vmem:[#allocation2 + $0x30] sm:$0xff] %vm631, %v1307
    %1314 = vst.msk [vmem:[#allocation2 + $0x38] sm:$0xff] %vm631, %v1309
    %1315 = vrot.lane.b32.xlu0 %v1187, 120
    %v1316 = vpop.permute.xlu0 %1315
    %1317 = vrot.lane.b32.xlu0 %v1188, 120
    %v1318 = vpop.permute.xlu0 %1317
    %1319 = vrot.lane.b32.xlu0 %v1187, 88
    %v1320 = vpop.permute.xlu0 %1319
    %1321 = vrot.lane.b32.xlu0 %v1188, 88
    %v1322 = vpop.permute.xlu0 %1321
    %v1324 = vsel %vm631, %v1316, 0
    %v1327 = vsel %vm631, %v1318, 0
    %v1330 = vsel %vm631, %v1320, 0
    %v1333 = vsel %vm631, %v1322, 0
    %1335 = vmatpush.bf16.xpose.msra.mxu0 0
    %1336 = vmatpush.bf16.xpose.msra.mxu0 0
    %1337 = vmatpush.bf16.xpose.msra.mxu0 0
    %1338 = vmatpush.bf16.xpose.msra.mxu0 0
    %1339 = vmatpush.bf16.xpose.msra.mxu0 0
    %1340 = vmatpush.bf16.xpose.msra.mxu0 0
    %1341 = vmatpush.bf16.xpose.msra.mxu0 %v1333
    %1342 = vmatpush.bf16.xpose.msra.mxu0 %v1330
    %1343 = vmatmul.bf16.gmra.mxu0 %v1324
    %v1344 = vpop.f32.mrf.mxu0
    %v1345 = vadd.f32 0.0, %v1344
    %v1346 = vpop.f32.mrf.mxu0
    %v1347 = vadd.f32 0.0, %v1346
    %1348 = vmatmul.bf16.gmra.mxu0 %v1327
    %v1349 = vpop.f32.mrf.mxu0
    %v1350 = vadd.f32 0.0, %v1349
    %v1351 = vpop.f32.mrf.mxu0
    %v1352 = vadd.f32 0.0, %v1351
    %1353 = vdwg.mxu0
    %v1354 = vmul.f32 %v1345, 0.35355338
    %v1355 = vmul.f32 %v1347, 0.35355338
    %v1356 = vmul.f32 %v1350, 0.35355338
    %v1357 = vmul.f32 %v1352, 0.35355338
    %v1358 = vadd.f32 %v1354, %v329
    %v1359 = vadd.f32 %v1355, %v329
    %v1360 = vadd.f32 %v1356, %v329
    %v1361 = vadd.f32 %v1357, %v329
    %v1362 = vsel %vm165, %v1358, -inf
    %1363 = vmax.xlane.f32.xlu0 %v1362
    %v1364 = vpop.xlane.xlu0 %1363
    %v1365 = vsel %vm165, %v1359, -inf
    %1366 = vmax.xlane.f32.xlu0 %v1365
    %v1367 = vpop.xlane.xlu0 %1366
    %v1368 = vsel %vm165, %v1360, -inf
    %1369 = vmax.xlane.f32.xlu0 %v1368
    %v1370 = vpop.xlane.xlu0 %1369
    %v1371 = vsel %vm165, %v1361, -inf
    %1372 = vmax.xlane.f32.xlu0 %v1371
    %v1373 = vpop.xlane.xlu0 %1372
    %v1374 = vsub.f32 %v1358, %v1364
    %v1375 = vsub.f32 %v1359, %v1367
    %v1376 = vsub.f32 %v1360, %v1370
    %v1377 = vsub.f32 %v1361, %v1373
    %v1378 = vmul.f32 %v1374, 1.442695
    %v1379 = vpow.pop %v1378
    %v1380 = vmul.f32 %v1375, 1.442695
    %v1381 = vpow.pop %v1380
    %v1382 = vmul.f32 %v1376, 1.442695
    %v1383 = vpow.pop %v1382
    %v1384 = vmul.f32 %v1377, 1.442695
    %v1385 = vpow.pop %v1384
    %v1386 = vsel %vm165, %v1379, 0.0
    %1387 = vadd.xlane.f32.xlu0 %v1386
    %v1388 = vpop.xlane.xlu0 %1387
    %v1389 = vsel %vm165, %v1381, 0.0
    %1390 = vadd.xlane.f32.xlu0 %v1389
    %v1391 = vpop.xlane.xlu0 %1390
    %v1392 = vsel %vm165, %v1383, 0.0
    %1393 = vadd.xlane.f32.xlu0 %v1392
    %v1394 = vpop.xlane.xlu0 %1393
    %v1395 = vsel %vm165, %v1385, 0.0
    %1396 = vadd.xlane.f32.xlu0 %v1395
    %v1397 = vpop.xlane.xlu0 %1396
    %v1398 = vrcp.pop %v1388
    %v1399 = vrcp.pop %v1391
    %v1400 = vrcp.pop %v1394
    %v1401 = vrcp.pop %v1397
    %v1402 = vmul.f32 %v1379, %v1398
    %v1403 = vmul.f32 %v1381, %v1399
    %v1404 = vmul.f32 %v1383, %v1400
    %v1405 = vmul.f32 %v1385, %v1401
    %v1406 = vpack.c.bf16 %v1403, %v1402
    %v1407 = vpack.c.bf16 %v1405, %v1404
    %1408 = vrot.lane.b32.xlu0 %v1187, 56
    %v1409 = vpop.permute.xlu0 %1408
    %1410 = vrot.lane.b32.xlu0 %v1188, 56
    %v1411 = vpop.permute.xlu0 %1410
    %v1415 = vsel %vm165, %v1406, 0
    %v1418 = vsel %vm165, %v1407, 0
    %1420 = vmatpush.bf16.msra.mxu0 0
    %1421 = vmatpush.bf16.msra.mxu0 0
    %1422 = vmatpush.bf16.msra.mxu0 0
    %1423 = vmatpush.bf16.msra.mxu0 0
    %1424 = vmatpush.bf16.msra.mxu0 0
    %1425 = vmatpush.bf16.msra.mxu0 0
    %1426 = vmatpush.bf16.msra.mxu0 %v1411
    %1427 = vmatpush.bf16.msra.mxu0 %v1409
    %1428 = vmatmul.bf16.gmra.mxu0 %v1415
    %v1429 = vpop.f32.mrf.mxu0
    %v1430 = vadd.f32 0.0, %v1429
    %v1431 = vpop.f32.mrf.mxu0
    %v1432 = vadd.f32 0.0, %v1431
    %1433 = vmatmul.bf16.gmra.mxu0 %v1418
    %v1434 = vpop.f32.mrf.mxu0
    %v1435 = vadd.f32 0.0, %v1434
    %v1436 = vpop.f32.mrf.mxu0
    %v1437 = vadd.f32 0.0, %v1436
    %1438 = vdwg.mxu0
    %1443 = vrot.lane.b32.xlu0 %v1430, 8
    %v1444 = vpop.permute.xlu0 %1443
    %1445 = vrot.lane.b32.xlu0 %v1432, 8
    %v1446 = vpop.permute.xlu0 %1445
    %1447 = vrot.lane.b32.xlu0 %v1435, 8
    %v1448 = vpop.permute.xlu0 %1447
    %1449 = vrot.lane.b32.xlu0 %v1437, 8
    %v1450 = vpop.permute.xlu0 %1449
    %1455 = vst.msk [vmem:[#allocation2 + $0x20] sm:$0xff] %vm892, %v1444
    %1456 = vst.msk [vmem:[#allocation2 + $0x28] sm:$0xff] %vm892, %v1446
    %1457 = vst.msk [vmem:[#allocation2 + $0x30] sm:$0xff] %vm892, %v1448
    %1458 = vst.msk [vmem:[#allocation2 + $0x38] sm:$0xff] %vm892, %v1450
    %1459 = vrot.lane.b32.xlu0 %v1187, 112
    %v1460 = vpop.permute.xlu0 %1459
    %1461 = vrot.lane.b32.xlu0 %v1188, 112
    %v1462 = vpop.permute.xlu0 %1461
    %1463 = vrot.lane.b32.xlu0 %v1187, 80
    %v1464 = vpop.permute.xlu0 %1463
    %1465 = vrot.lane.b32.xlu0 %v1188, 80
    %v1466 = vpop.permute.xlu0 %1465
    %v1468 = vsel %vm631, %v1460, 0
    %v1471 = vsel %vm631, %v1462, 0
    %v1474 = vsel %vm631, %v1464, 0
    %v1477 = vsel %vm631, %v1466, 0
    %1479 = vmatpush.bf16.xpose.msra.mxu0 0
    %1480 = vmatpush.bf16.xpose.msra.mxu0 0
    %1481 = vmatpush.bf16.xpose.msra.mxu0 0
    %1482 = vmatpush.bf16.xpose.msra.mxu0 0
    %1483 = vmatpush.bf16.xpose.msra.mxu0 0
    %1484 = vmatpush.bf16.xpose.msra.mxu0 0
    %1485 = vmatpush.bf16.xpose.msra.mxu0 %v1477
    %1486 = vmatpush.bf16.xpose.msra.mxu0 %v1474
    %1487 = vmatmul.bf16.gmra.mxu0 %v1468
    %v1488 = vpop.f32.mrf.mxu0
    %v1489 = vadd.f32 0.0, %v1488
    %v1490 = vpop.f32.mrf.mxu0
    %v1491 = vadd.f32 0.0, %v1490
    %1492 = vmatmul.bf16.gmra.mxu0 %v1471
    %v1493 = vpop.f32.mrf.mxu0
    %v1494 = vadd.f32 0.0, %v1493
    %v1495 = vpop.f32.mrf.mxu0
    %v1496 = vadd.f32 0.0, %v1495
    %1497 = vdwg.mxu0
    %v1498 = vmul.f32 %v1489, 0.35355338
    %v1499 = vmul.f32 %v1491, 0.35355338
    %v1500 = vmul.f32 %v1494, 0.35355338
    %v1501 = vmul.f32 %v1496, 0.35355338
    %v1502 = vadd.f32 %v1498, %v329
    %v1503 = vadd.f32 %v1499, %v329
    %v1504 = vadd.f32 %v1500, %v329
    %v1505 = vadd.f32 %v1501, %v329
    %v1506 = vsel %vm165, %v1502, -inf
    %1507 = vmax.xlane.f32.xlu0 %v1506
    %v1508 = vpop.xlane.xlu0 %1507
    %v1509 = vsel %vm165, %v1503, -inf
    %1510 = vmax.xlane.f32.xlu0 %v1509
    %v1511 = vpop.xlane.xlu0 %1510
    %v1512 = vsel %vm165, %v1504, -inf
    %1513 = vmax.xlane.f32.xlu0 %v1512
    %v1514 = vpop.xlane.xlu0 %1513
    %v1515 = vsel %vm165, %v1505, -inf
    %1516 = vmax.xlane.f32.xlu0 %v1515
    %v1517 = vpop.xlane.xlu0 %1516
    %v1518 = vsub.f32 %v1502, %v1508
    %v1519 = vsub.f32 %v1503, %v1511
    %v1520 = vsub.f32 %v1504, %v1514
    %v1521 = vsub.f32 %v1505, %v1517
    %v1522 = vmul.f32 %v1518, 1.442695
    %v1523 = vpow.pop %v1522
    %v1524 = vmul.f32 %v1519, 1.442695
    %v1525 = vpow.pop %v1524
    %v1526 = vmul.f32 %v1520, 1.442695
    %v1527 = vpow.pop %v1526
    %v1528 = vmul.f32 %v1521, 1.442695
    %v1529 = vpow.pop %v1528
    %v1530 = vsel %vm165, %v1523, 0.0
    %1531 = vadd.xlane.f32.xlu0 %v1530
    %v1532 = vpop.xlane.xlu0 %1531
    %v1533 = vsel %vm165, %v1525, 0.0
    %1534 = vadd.xlane.f32.xlu0 %v1533
    %v1535 = vpop.xlane.xlu0 %1534
    %v1536 = vsel %vm165, %v1527, 0.0
    %1537 = vadd.xlane.f32.xlu0 %v1536
    %v1538 = vpop.xlane.xlu0 %1537
    %v1539 = vsel %vm165, %v1529, 0.0
    %1540 = vadd.xlane.f32.xlu0 %v1539
    %v1541 = vpop.xlane.xlu0 %1540
    %v1542 = vrcp.pop %v1532
    %v1543 = vrcp.pop %v1535
    %v1544 = vrcp.pop %v1538
    %v1545 = vrcp.pop %v1541
    %v1546 = vmul.f32 %v1523, %v1542
    %v1547 = vmul.f32 %v1525, %v1543
    %v1548 = vmul.f32 %v1527, %v1544
    %v1549 = vmul.f32 %v1529, %v1545
    %v1550 = vpack.c.bf16 %v1547, %v1546
    %v1551 = vpack.c.bf16 %v1549, %v1548
    %1552 = vrot.lane.b32.xlu0 %v1187, 48
    %v1553 = vpop.permute.xlu0 %1552
    %1554 = vrot.lane.b32.xlu0 %v1188, 48
    %v1555 = vpop.permute.xlu0 %1554
    %v1559 = vsel %vm165, %v1550, 0
    %v1562 = vsel %vm165, %v1551, 0
    %1564 = vmatpush.bf16.msra.mxu0 0
    %1565 = vmatpush.bf16.msra.mxu0 0
    %1566 = vmatpush.bf16.msra.mxu0 0
    %1567 = vmatpush.bf16.msra.mxu0 0
    %1568 = vmatpush.bf16.msra.mxu0 0
    %1569 = vmatpush.bf16.msra.mxu0 0
    %1570 = vmatpush.bf16.msra.mxu0 %v1555
    %1571 = vmatpush.bf16.msra.mxu0 %v1553
    %1572 = vmatmul.bf16.gmra.mxu0 %v1559
    %v1573 = vpop.f32.mrf.mxu0
    %v1574 = vadd.f32 0.0, %v1573
    %v1575 = vpop.f32.mrf.mxu0
    %v1576 = vadd.f32 0.0, %v1575
    %1577 = vmatmul.bf16.gmra.mxu0 %v1562
    %v1578 = vpop.f32.mrf.mxu0
    %v1579 = vadd.f32 0.0, %v1578
    %v1580 = vpop.f32.mrf.mxu0
    %v1581 = vadd.f32 0.0, %v1580
    %1582 = vdwg.mxu0
    %1587 = vrot.lane.b32.xlu0 %v1574, 16
    %v1588 = vpop.permute.xlu0 %1587
    %1589 = vrot.lane.b32.xlu0 %v1576, 16
    %v1590 = vpop.permute.xlu0 %1589
    %1591 = vrot.lane.b32.xlu0 %v1579, 16
    %v1592 = vpop.permute.xlu0 %1591
    %1593 = vrot.lane.b32.xlu0 %v1581, 16
    %v1594 = vpop.permute.xlu0 %1593
    %1599 = vst.msk [vmem:[#allocation2 + $0x20] sm:$0xff] %vm1037, %v1588
    %1600 = vst.msk [vmem:[#allocation2 + $0x28] sm:$0xff] %vm1037, %v1590
    %1601 = vst.msk [vmem:[#allocation2 + $0x30] sm:$0xff] %vm1037, %v1592
    %1602 = vst.msk [vmem:[#allocation2 + $0x38] sm:$0xff] %vm1037, %v1594
    %1603 = vrot.lane.b32.xlu0 %v1187, 104
    %v1604 = vpop.permute.xlu0 %1603
    %1605 = vrot.lane.b32.xlu0 %v1188, 104
    %v1606 = vpop.permute.xlu0 %1605
    %1607 = vrot.lane.b32.xlu0 %v1187, 72
    %v1608 = vpop.permute.xlu0 %1607
    %1609 = vrot.lane.b32.xlu0 %v1188, 72
    %v1610 = vpop.permute.xlu0 %1609
    %v1612 = vsel %vm631, %v1604, 0
    %v1615 = vsel %vm631, %v1606, 0
    %v1618 = vsel %vm631, %v1608, 0
    %v1621 = vsel %vm631, %v1610, 0
    %1623 = vmatpush.bf16.xpose.msra.mxu0 0
    %1624 = vmatpush.bf16.xpose.msra.mxu0 0
    %1625 = vmatpush.bf16.xpose.msra.mxu0 0
    %1626 = vmatpush.bf16.xpose.msra.mxu0 0
    %1627 = vmatpush.bf16.xpose.msra.mxu0 0
    %1628 = vmatpush.bf16.xpose.msra.mxu0 0
    %1629 = vmatpush.bf16.xpose.msra.mxu0 %v1621
    %1630 = vmatpush.bf16.xpose.msra.mxu0 %v1618
    %1631 = vmatmul.bf16.gmra.mxu0 %v1612
    %v1632 = vpop.f32.mrf.mxu0
    %v1633 = vadd.f32 0.0, %v1632
    %v1634 = vpop.f32.mrf.mxu0
    %v1635 = vadd.f32 0.0, %v1634
    %1636 = vmatmul.bf16.gmra.mxu0 %v1615
    %v1637 = vpop.f32.mrf.mxu0
    %v1638 = vadd.f32 0.0, %v1637
    %v1639 = vpop.f32.mrf.mxu0
    %v1640 = vadd.f32 0.0, %v1639
    %1641 = vdwg.mxu0
    %v1642 = vmul.f32 %v1633, 0.35355338
    %v1643 = vmul.f32 %v1635, 0.35355338
    %v1644 = vmul.f32 %v1638, 0.35355338
    %v1645 = vmul.f32 %v1640, 0.35355338
    %v1646 = vadd.f32 %v1642, %v329
    %v1647 = vadd.f32 %v1643, %v329
    %v1648 = vadd.f32 %v1644, %v329
    %v1649 = vadd.f32 %v1645, %v329
    %v1650 = vsel %vm165, %v1646, -inf
    %1651 = vmax.xlane.f32.xlu0 %v1650
    %v1652 = vpop.xlane.xlu0 %1651
    %v1653 = vsel %vm165, %v1647, -inf
    %1654 = vmax.xlane.f32.xlu0 %v1653
    %v1655 = vpop.xlane.xlu0 %1654
    %v1656 = vsel %vm165, %v1648, -inf
    %1657 = vmax.xlane.f32.xlu0 %v1656
    %v1658 = vpop.xlane.xlu0 %1657
    %v1659 = vsel %vm165, %v1649, -inf
    %1660 = vmax.xlane.f32.xlu0 %v1659
    %v1661 = vpop.xlane.xlu0 %1660
    %v1662 = vsub.f32 %v1646, %v1652
    %v1663 = vsub.f32 %v1647, %v1655
    %v1664 = vsub.f32 %v1648, %v1658
    %v1665 = vsub.f32 %v1649, %v1661
    %v1666 = vmul.f32 %v1662, 1.442695
    %v1667 = vpow.pop %v1666
    %v1668 = vmul.f32 %v1663, 1.442695
    %v1669 = vpow.pop %v1668
    %v1670 = vmul.f32 %v1664, 1.442695
    %v1671 = vpow.pop %v1670
    %v1672 = vmul.f32 %v1665, 1.442695
    %v1673 = vpow.pop %v1672
    %v1674 = vsel %vm165, %v1667, 0.0
    %1675 = vadd.xlane.f32.xlu0 %v1674
    %v1676 = vpop.xlane.xlu0 %1675
    %v1677 = vsel %vm165, %v1669, 0.0
    %1678 = vadd.xlane.f32.xlu0 %v1677
    %v1679 = vpop.xlane.xlu0 %1678
    %v1680 = vsel %vm165, %v1671, 0.0
    %1681 = vadd.xlane.f32.xlu0 %v1680
    %v1682 = vpop.xlane.xlu0 %1681
    %v1683 = vsel %vm165, %v1673, 0.0
    %1684 = vadd.xlane.f32.xlu0 %v1683
    %v1685 = vpop.xlane.xlu0 %1684
    %v1686 = vrcp.pop %v1676
    %v1687 = vrcp.pop %v1679
    %v1688 = vrcp.pop %v1682
    %v1689 = vrcp.pop %v1685
    %v1690 = vmul.f32 %v1667, %v1686
    %v1691 = vmul.f32 %v1669, %v1687
    %v1692 = vmul.f32 %v1671, %v1688
    %v1693 = vmul.f32 %v1673, %v1689
    %v1694 = vpack.c.bf16 %v1691, %v1690
    %v1695 = vpack.c.bf16 %v1693, %v1692
    %1696 = vrot.lane.b32.xlu0 %v1187, 40
    %v1697 = vpop.permute.xlu0 %1696
    %1698 = vrot.lane.b32.xlu0 %v1188, 40
    %v1699 = vpop.permute.xlu0 %1698
    %v1703 = vsel %vm165, %v1694, 0
    %v1706 = vsel %vm165, %v1695, 0
    %1708 = vmatpush.bf16.msra.mxu0 0
    %1709 = vmatpush.bf16.msra.mxu0 0
    %1710 = vmatpush.bf16.msra.mxu0 0
    %1711 = vmatpush.bf16.msra.mxu0 0
    %1712 = vmatpush.bf16.msra.mxu0 0
    %1713 = vmatpush.bf16.msra.mxu0 0
    %1714 = vmatpush.bf16.msra.mxu0 %v1699
    %1715 = vmatpush.bf16.msra.mxu0 %v1697
    %1716 = vmatmul.bf16.gmra.mxu0 %v1703
    %v1717 = vpop.f32.mrf.mxu0
    %v1718 = vadd.f32 0.0, %v1717
    %v1719 = vpop.f32.mrf.mxu0
    %v1720 = vadd.f32 0.0, %v1719
    %1721 = vmatmul.bf16.gmra.mxu0 %v1706
    %v1722 = vpop.f32.mrf.mxu0
    %v1723 = vadd.f32 0.0, %v1722
    %v1724 = vpop.f32.mrf.mxu0
    %v1725 = vadd.f32 0.0, %v1724
    %1726 = vdwg.mxu0
    %1731 = vrot.lane.b32.xlu0 %v1718, 24
    %v1732 = vpop.permute.xlu0 %1731
    %1733 = vrot.lane.b32.xlu0 %v1720, 24
    %v1734 = vpop.permute.xlu0 %1733
    %1735 = vrot.lane.b32.xlu0 %v1723, 24
    %v1736 = vpop.permute.xlu0 %1735
    %1737 = vrot.lane.b32.xlu0 %v1725, 24
    %v1738 = vpop.permute.xlu0 %1737
    %1743 = vst.msk [vmem:[#allocation2 + $0x20] sm:$0xff] %vm1182, %v1732
    %1744 = vst.msk [vmem:[#allocation2 + $0x28] sm:$0xff] %vm1182, %v1734
    %1745 = vst.msk [vmem:[#allocation2 + $0x30] sm:$0xff] %vm1182, %v1736
    %1746 = vst.msk [vmem:[#allocation2 + $0x38] sm:$0xff] %vm1182, %v1738
    %v1747 = vld [vmem:[#allocation2] sm:$0xff]
    %v1748 = vld [vmem:[#allocation2 + $0x8] sm:$0xff]
    %v1749 = vld [vmem:[#allocation2 + $0x10] sm:$0xff]
    %v1750 = vld [vmem:[#allocation2 + $0x18] sm:$0xff]
    %v1751 = vld [vmem:[#allocation2 + $0x20] sm:$0xff]
    %v1752 = vld [vmem:[#allocation2 + $0x28] sm:$0xff]
    %v1753 = vld [vmem:[#allocation2 + $0x30] sm:$0xff]
    %v1754 = vld [vmem:[#allocation2 + $0x38] sm:$0xff]
    %v1755 = vpack.c.bf16 %v1748, %v1747
    %v1756 = vpack.c.bf16 %v1750, %v1749
    %v1757 = vpack.c.bf16 %v1752, %v1751
    %v1758 = vpack.c.bf16 %v1754, %v1753
    %v1760 = vperm.slane %v341, 0
    %v1766 = vunpack.c.l.b16 %v337
    %v1767 = vunpack.c.l.b16 %v338
    %v1768 = vunpack.c.l.b16 %v339
    %v1769 = vunpack.c.l.b16 %v340
    %v1770 = vpack.c.b16 %v1767, %v1766
    %v1771 = vpack.c.b16 %v1769, %v1768
    %v1775 = vsel %vm165, %v1755, 0
    %v1778 = vsel %vm165, %v1756, 0
    %v1781 = vsel %vm165, %v1757, 0
    %v1784 = vsel %vm165, %v1758, 0
    %1786 = vmatpush.bf16.msra.mxu0 0
    %1787 = vmatpush.bf16.msra.mxu0 0
    %1788 = vmatpush.bf16.msra.mxu0 0
    %1789 = vmatpush.bf16.msra.mxu0 0
    %1790 = vmatpush.bf16.msra.mxu0 0
    %1791 = vmatpush.bf16.msra.mxu0 0
    %1792 = vmatpush.bf16.msra.mxu0 %v1771
    %1793 = vmatpush.bf16.msra.mxu0 %v1770
    %1794 = vmatmul.bf16.gmra.mxu0 %v1775
    %v1795 = vpop.f32.mrf.mxu0
    %v1796 = vadd.f32 %v1760, %v1795
    %v1797 = vpop.f32.mrf.mxu0
    %v1798 = vadd.f32 %v1760, %v1797
    %1799 = vmatmul.bf16.gmra.mxu0 %v1778
    %v1800 = vpop.f32.mrf.mxu0
    %v1801 = vadd.f32 %v1760, %v1800
    %v1802 = vpop.f32.mrf.mxu0
    %v1803 = vadd.f32 %v1760, %v1802
    %1804 = vmatmul.bf16.gmra.mxu0 %v1781
    %v1805 = vpop.f32.mrf.mxu0
    %v1806 = vadd.f32 %v1760, %v1805
    %v1807 = vpop.f32.mrf.mxu0
    %v1808 = vadd.f32 %v1760, %v1807
    %1809 = vmatmul.bf16.gmra.mxu0 %v1784
    %v1810 = vpop.f32.mrf.mxu0
    %v1811 = vadd.f32 %v1760, %v1810
    %v1812 = vpop.f32.mrf.mxu0
    %v1813 = vadd.f32 %v1760, %v1812
    %1814 = vdwg.mxu0
    %v1815 = vadd.f32 %v318, %v1796
    %v1816 = vadd.f32 %v319, %v1798
    %v1817 = vadd.f32 %v320, %v1801
    %v1818 = vadd.f32 %v321, %v1803
    %v1819 = vadd.f32 %v322, %v1806
    %v1820 = vadd.f32 %v323, %v1808
    %v1821 = vadd.f32 %v324, %v1811
    %v1822 = vadd.f32 %v325, %v1813
    %v1823 = vsel %vm165, %v1815, 0.0
    %1824 = vadd.xlane.f32.xlu0 %v1823
    %v1825 = vpop.xlane.xlu0 %1824
    %v1826 = vsel %vm165, %v1816, 0.0
    %1827 = vadd.xlane.f32.xlu0 %v1826
    %v1828 = vpop.xlane.xlu0 %1827
    %v1829 = vsel %vm165, %v1817, 0.0
    %1830 = vadd.xlane.f32.xlu0 %v1829
    %v1831 = vpop.xlane.xlu0 %1830
    %v1832 = vsel %vm165, %v1818, 0.0
    %1833 = vadd.xlane.f32.xlu0 %v1832
    %v1834 = vpop.xlane.xlu0 %1833
    %v1835 = vsel %vm165, %v1819, 0.0
    %1836 = vadd.xlane.f32.xlu0 %v1835
    %v1837 = vpop.xlane.xlu0 %1836
    %v1838 = vsel %vm165, %v1820, 0.0
    %1839 = vadd.xlane.f32.xlu0 %v1838
    %v1840 = vpop.xlane.xlu0 %1839
    %v1841 = vsel %vm165, %v1821, 0.0
    %1842 = vadd.xlane.f32.xlu0 %v1841
    %v1843 = vpop.xlane.xlu0 %1842
    %v1844 = vsel %vm165, %v1822, 0.0
    %1845 = vadd.xlane.f32.xlu0 %v1844
    %v1846 = vpop.xlane.xlu0 %1845
    %v1847 = vmul.f32 %v1825, %v388
    %v1848 = vmul.f32 %v1828, %v388
    %v1849 = vmul.f32 %v1831, %v388
    %v1850 = vmul.f32 %v1834, %v388
    %v1851 = vmul.f32 %v1837, %v388
    %v1852 = vmul.f32 %v1840, %v388
    %v1853 = vmul.f32 %v1843, %v388
    %v1854 = vmul.f32 %v1846, %v388
    %v1855 = vsub.f32 %v1815, %v1847
    %v1856 = vsub.f32 %v1816, %v1848
    %v1857 = vsub.f32 %v1817, %v1849
    %v1858 = vsub.f32 %v1818, %v1850
    %v1859 = vsub.f32 %v1819, %v1851
    %v1860 = vsub.f32 %v1820, %v1852
    %v1861 = vsub.f32 %v1821, %v1853
    %v1862 = vsub.f32 %v1822, %v1854
    %v1863 = vmul.f32 %v1855, %v1855
    %v1864 = vmul.f32 %v1856, %v1856
    %v1865 = vmul.f32 %v1857, %v1857
    %v1866 = vmul.f32 %v1858, %v1858
    %v1867 = vmul.f32 %v1859, %v1859
    %v1868 = vmul.f32 %v1860, %v1860
    %v1869 = vmul.f32 %v1861, %v1861
    %v1870 = vmul.f32 %v1862, %v1862
    %v1871 = vsel %vm165, %v1863, 0.0
    %1872 = vadd.xlane.f32.xlu0 %v1871
    %v1873 = vpop.xlane.xlu0 %1872
    %v1874 = vsel %vm165, %v1864, 0.0
    %1875 = vadd.xlane.f32.xlu0 %v1874
    %v1876 = vpop.xlane.xlu0 %1875
    %v1877 = vsel %vm165, %v1865, 0.0
    %1878 = vadd.xlane.f32.xlu0 %v1877
    %v1879 = vpop.xlane.xlu0 %1878
    %v1880 = vsel %vm165, %v1866, 0.0
    %1881 = vadd.xlane.f32.xlu0 %v1880
    %v1882 = vpop.xlane.xlu0 %1881
    %v1883 = vsel %vm165, %v1867, 0.0
    %1884 = vadd.xlane.f32.xlu0 %v1883
    %v1885 = vpop.xlane.xlu0 %1884
    %v1886 = vsel %vm165, %v1868, 0.0
    %1887 = vadd.xlane.f32.xlu0 %v1886
    %v1888 = vpop.xlane.xlu0 %1887
    %v1889 = vsel %vm165, %v1869, 0.0
    %1890 = vadd.xlane.f32.xlu0 %v1889
    %v1891 = vpop.xlane.xlu0 %1890
    %v1892 = vsel %vm165, %v1870, 0.0
    %1893 = vadd.xlane.f32.xlu0 %v1892
    %v1894 = vpop.xlane.xlu0 %1893
    %v1895 = vmul.f32 %v1873, %v388
    %v1896 = vmul.f32 %v1876, %v388
    %v1897 = vmul.f32 %v1879, %v388
    %v1898 = vmul.f32 %v1882, %v388
    %v1899 = vmul.f32 %v1885, %v388
    %v1900 = vmul.f32 %v1888, %v388
    %v1901 = vmul.f32 %v1891, %v388
    %v1902 = vmul.f32 %v1894, %v388
    %v1903 = vadd.f32 %v1895, 1e-06
    %v1904 = vadd.f32 %v1896, 1e-06
    %v1905 = vadd.f32 %v1897, 1e-06
    %v1906 = vadd.f32 %v1898, 1e-06
    %v1907 = vadd.f32 %v1899, 1e-06
    %v1908 = vadd.f32 %v1900, 1e-06
    %v1909 = vadd.f32 %v1901, 1e-06
    %v1910 = vadd.f32 %v1902, 1e-06
    %v1911 = vrsqrt.pop %v1903
    %v1912 = vmul.f32 %v1911, %v1903
    %v1913 = vmul.f32 %v1912, %v1911
    %v1914 = vmul.f32 0.5, %v1913
    %v1915 = vsub.f32 1.5, %v1914
    %v1916 = vmul.f32 %v1911, %v1915
    %vm1917 = vweird.f32 %v1903
    %vm1918 = vweird.f32 %v1911
    %vm1919 = vmor %vm1917, %vm1918
    %v1920 = vsel %vm1919, %v1911, %v1916
    %v1921 = vrsqrt.pop %v1904
    %v1922 = vmul.f32 %v1921, %v1904
    %v1923 = vmul.f32 %v1922, %v1921
    %v1924 = vmul.f32 0.5, %v1923
    %v1925 = vsub.f32 1.5, %v1924
    %v1926 = vmul.f32 %v1921, %v1925
    %vm1927 = vweird.f32 %v1904
    %vm1928 = vweird.f32 %v1921
    %vm1929 = vmor %vm1927, %vm1928
    %v1930 = vsel %vm1929, %v1921, %v1926
    %v1931 = vrsqrt.pop %v1905
    %v1932 = vmul.f32 %v1931, %v1905
    %v1933 = vmul.f32 %v1932, %v1931
    %v1934 = vmul.f32 0.5, %v1933
    %v1935 = vsub.f32 1.5, %v1934
    %v1936 = vmul.f32 %v1931, %v1935
    %vm1937 = vweird.f32 %v1905
    %vm1938 = vweird.f32 %v1931
    %vm1939 = vmor %vm1937, %vm1938
    %v1940 = vsel %vm1939, %v1931, %v1936
    %v1941 = vrsqrt.pop %v1906
    %v1942 = vmul.f32 %v1941, %v1906
    %v1943 = vmul.f32 %v1942, %v1941
    %v1944 = vmul.f32 0.5, %v1943
    %v1945 = vsub.f32 1.5, %v1944
    %v1946 = vmul.f32 %v1941, %v1945
    %vm1947 = vweird.f32 %v1906
    %vm1948 = vweird.f32 %v1941
    %vm1949 = vmor %vm1947, %vm1948
    %v1950 = vsel %vm1949, %v1941, %v1946
    %v1951 = vrsqrt.pop %v1907
    %v1952 = vmul.f32 %v1951, %v1907
    %v1953 = vmul.f32 %v1952, %v1951
    %v1954 = vmul.f32 0.5, %v1953
    %v1955 = vsub.f32 1.5, %v1954
    %v1956 = vmul.f32 %v1951, %v1955
    %vm1957 = vweird.f32 %v1907
    %vm1958 = vweird.f32 %v1951
    %vm1959 = vmor %vm1957, %vm1958
    %v1960 = vsel %vm1959, %v1951, %v1956
    %v1961 = vrsqrt.pop %v1908
    %v1962 = vmul.f32 %v1961, %v1908
    %v1963 = vmul.f32 %v1962, %v1961
    %v1964 = vmul.f32 0.5, %v1963
    %v1965 = vsub.f32 1.5, %v1964
    %v1966 = vmul.f32 %v1961, %v1965
    %vm1967 = vweird.f32 %v1908
    %vm1968 = vweird.f32 %v1961
    %vm1969 = vmor %vm1967, %vm1968
    %v1970 = vsel %vm1969, %v1961, %v1966
    %v1971 = vrsqrt.pop %v1909
    %v1972 = vmul.f32 %v1971, %v1909
    %v1973 = vmul.f32 %v1972, %v1971
    %v1974 = vmul.f32 0.5, %v1973
    %v1975 = vsub.f32 1.5, %v1974
    %v1976 = vmul.f32 %v1971, %v1975
    %vm1977 = vweird.f32 %v1909
    %vm1978 = vweird.f32 %v1971
    %vm1979 = vmor %vm1977, %vm1978
    %v1980 = vsel %vm1979, %v1971, %v1976
    %v1981 = vrsqrt.pop %v1910
    %v1982 = vmul.f32 %v1981, %v1910
    %v1983 = vmul.f32 %v1982, %v1981
    %v1984 = vmul.f32 0.5, %v1983
    %v1985 = vsub.f32 1.5, %v1984
    %v1986 = vmul.f32 %v1981, %v1985
    %vm1987 = vweird.f32 %v1910
    %vm1988 = vweird.f32 %v1981
    %vm1989 = vmor %vm1987, %vm1988
    %v1990 = vsel %vm1989, %v1981, %v1986
    %v1991 = vmul.f32 %v1855, %v1920
    %v1992 = vmul.f32 %v1856, %v1930
    %v1993 = vmul.f32 %v1857, %v1940
    %v1994 = vmul.f32 %v1858, %v1950
    %v1995 = vmul.f32 %v1859, %v1960
    %v1996 = vmul.f32 %v1860, %v1970
    %v1997 = vmul.f32 %v1861, %v1980
    %v1998 = vmul.f32 %v1862, %v1990
    %v2000 = vperm.slane %v342, 0
    %v2002 = vmul.f32 %v1991, %v2000
    %v2003 = vmul.f32 %v1992, %v2000
    %v2004 = vmul.f32 %v1993, %v2000
    %v2005 = vmul.f32 %v1994, %v2000
    %v2006 = vmul.f32 %v1995, %v2000
    %v2007 = vmul.f32 %v1996, %v2000
    %v2008 = vmul.f32 %v1997, %v2000
    %v2009 = vmul.f32 %v1998, %v2000
    %v2011 = vperm.slane %v343, 0
    %v2013 = vadd.f32 %v2002, %v2011
    %v2014 = vadd.f32 %v2003, %v2011
    %v2015 = vadd.f32 %v2004, %v2011
    %v2016 = vadd.f32 %v2005, %v2011
    %v2017 = vadd.f32 %v2006, %v2011
    %v2018 = vadd.f32 %v2007, %v2011
    %v2019 = vadd.f32 %v2008, %v2011
    %v2020 = vadd.f32 %v2009, %v2011
    %v2021 = vpack.c.bf16 %v2014, %v2013
    %v2022 = vpack.c.bf16 %v2016, %v2015
    %v2023 = vpack.c.bf16 %v2018, %v2017
    %v2024 = vpack.c.bf16 %v2020, %v2019
    %v2026 = vperm.slane %v348, 0
    %v2032 = vunpack.c.l.b16 %v344
    %v2033 = vunpack.c.l.b16 %v345
    %v2034 = vunpack.c.l.b16 %v346
    %v2035 = vunpack.c.l.b16 %v347
    %v2036 = vpack.c.b16 %v2033, %v2032
    %v2037 = vpack.c.b16 %v2035, %v2034
    %v2041 = vsel %vm165, %v2021, 0
    %v2044 = vsel %vm165, %v2022, 0
    %v2047 = vsel %vm165, %v2023, 0
    %v2050 = vsel %vm165, %v2024, 0
    %2052 = vmatpush.bf16.msra.mxu0 0
    %2053 = vmatpush.bf16.msra.mxu0 0
    %2054 = vmatpush.bf16.msra.mxu0 0
    %2055 = vmatpush.bf16.msra.mxu0 0
    %2056 = vmatpush.bf16.msra.mxu0 0
    %2057 = vmatpush.bf16.msra.mxu0 0
    %2058 = vmatpush.bf16.msra.mxu0 %v2037
    %2059 = vmatpush.bf16.msra.mxu0 %v2036
    %2060 = vmatmul.bf16.gmra.mxu0 %v2041
    %v2061 = vpop.f32.mrf.mxu0
    %v2062 = vadd.f32 %v2026, %v2061
    %v2063 = vpop.f32.mrf.mxu0
    %v2064 = vadd.f32 %v2026, %v2063
    %2065 = vmatmul.bf16.gmra.mxu0 %v2044
    %v2066 = vpop.f32.mrf.mxu0
    %v2067 = vadd.f32 %v2026, %v2066
    %v2068 = vpop.f32.mrf.mxu0
    %v2069 = vadd.f32 %v2026, %v2068
    %2070 = vmatmul.bf16.gmra.mxu0 %v2047
    %v2071 = vpop.f32.mrf.mxu0
    %v2072 = vadd.f32 %v2026, %v2071
    %v2073 = vpop.f32.mrf.mxu0
    %v2074 = vadd.f32 %v2026, %v2073
    %2075 = vmatmul.bf16.gmra.mxu0 %v2050
    %v2076 = vpop.f32.mrf.mxu0
    %v2077 = vadd.f32 %v2026, %v2076
    %v2078 = vpop.f32.mrf.mxu0
    %v2079 = vadd.f32 %v2026, %v2078
    %2080 = vdwg.mxu0
    %v2081 = vmul.f32 %v2062, 0.5
    %v2082 = vmul.f32 %v2064, 0.5
    %v2083 = vmul.f32 %v2067, 0.5
    %v2084 = vmul.f32 %v2069, 0.5
    %v2085 = vmul.f32 %v2072, 0.5
    %v2086 = vmul.f32 %v2074, 0.5
    %v2087 = vmul.f32 %v2077, 0.5
    %v2088 = vmul.f32 %v2079, 0.5
    %v2089 = vmul.f32 %v2062, 0.70710677
    %v2090 = vmul.f32 %v2064, 0.70710677
    %v2091 = vmul.f32 %v2067, 0.70710677
    %v2092 = vmul.f32 %v2069, 0.70710677
    %v2093 = vmul.f32 %v2072, 0.70710677
    %v2094 = vmul.f32 %v2074, 0.70710677
    %v2095 = vmul.f32 %v2077, 0.70710677
    %v2096 = vmul.f32 %v2079, 0.70710677
    %v2097 = vmul.f32 %v2089, %v2089
    %v2098 = vmin.f32 16.0, %v2097
    %v2099 = vmul.f32 %v2098, 2.1237322e-06
    %v2100 = vadd.f32 %v2099, 0.00028619796
    %v2101 = vmul.f32 %v2098, %v2100
    %v2102 = vadd.f32 %v2101, 0.0036580483
    %v2103 = vmul.f32 %v2098, %v2102
    %v2104 = vadd.f32 %v2103, 0.05243302
    %v2105 = vmul.f32 %v2098, %v2104
    %v2106 = vadd.f32 %v2105, 0.18741608
    %v2107 = vmul.f32 %v2098, %v2106
    %v2108 = vadd.f32 %v2107, 1.1283791
    %v2109 = vmul.f32 %v2089, %v2108
    %v2110 = vmul.f32 %v2098, 3.8918573e-05
    %v2111 = vadd.f32 %v2110, 0.001143296
    %v2112 = vmul.f32 %v2098, %v2111
    %v2113 = vadd.f32 %v2112, 0.014752088
    %v2114 = vmul.f32 %v2098, %v2113
    %v2115 = vadd.f32 %v2114, 0.112945676
    %v2116 = vmul.f32 %v2098, %v2115
    %v2117 = vadd.f32 %v2116, 0.4994258
    %v2118 = vmul.f32 %v2098, %v2117
    %v2119 = vadd.f32 %v2118, 1.0
    %v2120 = vrcp.pop %v2119
    %v2121 = vmul.f32 %v2119, %v2120
    %v2122 = vsub.f32 1.0, %v2121
    %v2123 = vmul.f32 %v2120, %v2122
    %v2124 = vadd.f32 %v2120, %v2123
    %vm2125 = vweird.f32 %v2119
    %vm2126 = vweird.f32 %v2120
    %vm2127 = vmor %vm2125, %vm2126
    %v2128 = vsel %vm2127, %v2120, %v2124
    %v2129 = vand.u32 2147483647, %v2119
    %vm2130 = vcmp.eq.f32.partialorder %v2129, 8.507059e+37
    %v2131 = vand.u32 %v2119, 2147483648
    %v2132 = vor.u32 1.1754944e-38, %v2131
    %v2133 = vsel %vm2130, %v2132, %v2128
    %v2134 = vmul.f32 %v2109, %v2133
    %v2135 = vmin.f32 %v2134, 1.0
    %v2136 = vmax.f32 %v2135, -1.0
    %v2137 = vmul.f32 %v2090, %v2090
    %v2138 = vmin.f32 16.0, %v2137
    %v2139 = vmul.f32 %v2138, 2.1237322e-06
    %v2140 = vadd.f32 %v2139, 0.00028619796
    %v2141 = vmul.f32 %v2138, %v2140
    %v2142 = vadd.f32 %v2141, 0.0036580483
    %v2143 = vmul.f32 %v2138, %v2142
    %v2144 = vadd.f32 %v2143, 0.05243302
    %v2145 = vmul.f32 %v2138, %v2144
    %v2146 = vadd.f32 %v2145, 0.18741608
    %v2147 = vmul.f32 %v2138, %v2146
    %v2148 = vadd.f32 %v2147, 1.1283791
    %v2149 = vmul.f32 %v2090, %v2148
    %v2150 = vmul.f32 %v2138, 3.8918573e-05
    %v2151 = vadd.f32 %v2150, 0.001143296
    %v2152 = vmul.f32 %v2138, %v2151
    %v2153 = vadd.f32 %v2152, 0.014752088
    %v2154 = vmul.f32 %v2138, %v2153
    %v2155 = vadd.f32 %v2154, 0.112945676
    %v2156 = vmul.f32 %v2138, %v2155
    %v2157 = vadd.f32 %v2156, 0.4994258
    %v2158 = vmul.f32 %v2138, %v2157
    %v2159 = vadd.f32 %v2158, 1.0
    %v2160 = vrcp.pop %v2159
    %v2161 = vmul.f32 %v2159, %v2160
    %v2162 = vsub.f32 1.0, %v2161
    %v2163 = vmul.f32 %v2160, %v2162
    %v2164 = vadd.f32 %v2160, %v2163
    %vm2165 = vweird.f32 %v2159
    %vm2166 = vweird.f32 %v2160
    %vm2167 = vmor %vm2165, %vm2166
    %v2168 = vsel %vm2167, %v2160, %v2164
    %v2169 = vand.u32 2147483647, %v2159
    %vm2170 = vcmp.eq.f32.partialorder %v2169, 8.507059e+37
    %v2171 = vand.u32 %v2159, 2147483648
    %v2172 = vor.u32 1.1754944e-38, %v2171
    %v2173 = vsel %vm2170, %v2172, %v2168
    %v2174 = vmul.f32 %v2149, %v2173
    %v2175 = vmin.f32 %v2174, 1.0
    %v2176 = vmax.f32 %v2175, -1.0
    %v2177 = vmul.f32 %v2091, %v2091
    %v2178 = vmin.f32 16.0, %v2177
    %v2179 = vmul.f32 %v2178, 2.1237322e-06
    %v2180 = vadd.f32 %v2179, 0.00028619796
    %v2181 = vmul.f32 %v2178, %v2180
    %v2182 = vadd.f32 %v2181, 0.0036580483
    %v2183 = vmul.f32 %v2178, %v2182
    %v2184 = vadd.f32 %v2183, 0.05243302
    %v2185 = vmul.f32 %v2178, %v2184
    %v2186 = vadd.f32 %v2185, 0.18741608
    %v2187 = vmul.f32 %v2178, %v2186
    %v2188 = vadd.f32 %v2187, 1.1283791
    %v2189 = vmul.f32 %v2091, %v2188
    %v2190 = vmul.f32 %v2178, 3.8918573e-05
    %v2191 = vadd.f32 %v2190, 0.001143296
    %v2192 = vmul.f32 %v2178, %v2191
    %v2193 = vadd.f32 %v2192, 0.014752088
    %v2194 = vmul.f32 %v2178, %v2193
    %v2195 = vadd.f32 %v2194, 0.112945676
    %v2196 = vmul.f32 %v2178, %v2195
    %v2197 = vadd.f32 %v2196, 0.4994258
    %v2198 = vmul.f32 %v2178, %v2197
    %v2199 = vadd.f32 %v2198, 1.0
    %v2200 = vrcp.pop %v2199
    %v2201 = vmul.f32 %v2199, %v2200
    %v2202 = vsub.f32 1.0, %v2201
    %v2203 = vmul.f32 %v2200, %v2202
    %v2204 = vadd.f32 %v2200, %v2203
    %vm2205 = vweird.f32 %v2199
    %vm2206 = vweird.f32 %v2200
    %vm2207 = vmor %vm2205, %vm2206
    %v2208 = vsel %vm2207, %v2200, %v2204
    %v2209 = vand.u32 2147483647, %v2199
    %vm2210 = vcmp.eq.f32.partialorder %v2209, 8.507059e+37
    %v2211 = vand.u32 %v2199, 2147483648
    %v2212 = vor.u32 1.1754944e-38, %v2211
    %v2213 = vsel %vm2210, %v2212, %v2208
    %v2214 = vmul.f32 %v2189, %v2213
    %v2215 = vmin.f32 %v2214, 1.0
    %v2216 = vmax.f32 %v2215, -1.0
    %v2217 = vmul.f32 %v2092, %v2092
    %v2218 = vmin.f32 16.0, %v2217
    %v2219 = vmul.f32 %v2218, 2.1237322e-06
    %v2220 = vadd.f32 %v2219, 0.00028619796
    %v2221 = vmul.f32 %v2218, %v2220
    %v2222 = vadd.f32 %v2221, 0.0036580483
    %v2223 = vmul.f32 %v2218, %v2222
    %v2224 = vadd.f32 %v2223, 0.05243302
    %v2225 = vmul.f32 %v2218, %v2224
    %v2226 = vadd.f32 %v2225, 0.18741608
    %v2227 = vmul.f32 %v2218, %v2226
    %v2228 = vadd.f32 %v2227, 1.1283791
    %v2229 = vmul.f32 %v2092, %v2228
    %v2230 = vmul.f32 %v2218, 3.8918573e-05
    %v2231 = vadd.f32 %v2230, 0.001143296
    %v2232 = vmul.f32 %v2218, %v2231
    %v2233 = vadd.f32 %v2232, 0.014752088
    %v2234 = vmul.f32 %v2218, %v2233
    %v2235 = vadd.f32 %v2234, 0.112945676
    %v2236 = vmul.f32 %v2218, %v2235
    %v2237 = vadd.f32 %v2236, 0.4994258
    %v2238 = vmul.f32 %v2218, %v2237
    %v2239 = vadd.f32 %v2238, 1.0
    %v2240 = vrcp.pop %v2239
    %v2241 = vmul.f32 %v2239, %v2240
    %v2242 = vsub.f32 1.0, %v2241
    %v2243 = vmul.f32 %v2240, %v2242
    %v2244 = vadd.f32 %v2240, %v2243
    %vm2245 = vweird.f32 %v2239
    %vm2246 = vweird.f32 %v2240
    %vm2247 = vmor %vm2245, %vm2246
    %v2248 = vsel %vm2247, %v2240, %v2244
    %v2249 = vand.u32 2147483647, %v2239
    %vm2250 = vcmp.eq.f32.partialorder %v2249, 8.507059e+37
    %v2251 = vand.u32 %v2239, 2147483648
    %v2252 = vor.u32 1.1754944e-38, %v2251
    %v2253 = vsel %vm2250, %v2252, %v2248
    %v2254 = vmul.f32 %v2229, %v2253
    %v2255 = vmin.f32 %v2254, 1.0
    %v2256 = vmax.f32 %v2255, -1.0
    %v2257 = vmul.f32 %v2093, %v2093
    %v2258 = vmin.f32 16.0, %v2257
    %v2259 = vmul.f32 %v2258, 2.1237322e-06
    %v2260 = vadd.f32 %v2259, 0.00028619796
    %v2261 = vmul.f32 %v2258, %v2260
    %v2262 = vadd.f32 %v2261, 0.0036580483
    %v2263 = vmul.f32 %v2258, %v2262
    %v2264 = vadd.f32 %v2263, 0.05243302
    %v2265 = vmul.f32 %v2258, %v2264
    %v2266 = vadd.f32 %v2265, 0.18741608
    %v2267 = vmul.f32 %v2258, %v2266
    %v2268 = vadd.f32 %v2267, 1.1283791
    %v2269 = vmul.f32 %v2093, %v2268
    %v2270 = vmul.f32 %v2258, 3.8918573e-05
    %v2271 = vadd.f32 %v2270, 0.001143296
    %v2272 = vmul.f32 %v2258, %v2271
    %v2273 = vadd.f32 %v2272, 0.014752088
    %v2274 = vmul.f32 %v2258, %v2273
    %v2275 = vadd.f32 %v2274, 0.112945676
    %v2276 = vmul.f32 %v2258, %v2275
    %v2277 = vadd.f32 %v2276, 0.4994258
    %v2278 = vmul.f32 %v2258, %v2277
    %v2279 = vadd.f32 %v2278, 1.0
    %v2280 = vrcp.pop %v2279
    %v2281 = vmul.f32 %v2279, %v2280
    %v2282 = vsub.f32 1.0, %v2281
    %v2283 = vmul.f32 %v2280, %v2282
    %v2284 = vadd.f32 %v2280, %v2283
    %vm2285 = vweird.f32 %v2279
    %vm2286 = vweird.f32 %v2280
    %vm2287 = vmor %vm2285, %vm2286
    %v2288 = vsel %vm2287, %v2280, %v2284
    %v2289 = vand.u32 2147483647, %v2279
    %vm2290 = vcmp.eq.f32.partialorder %v2289, 8.507059e+37
    %v2291 = vand.u32 %v2279, 2147483648
    %v2292 = vor.u32 1.1754944e-38, %v2291
    %v2293 = vsel %vm2290, %v2292, %v2288
    %v2294 = vmul.f32 %v2269, %v2293
    %v2295 = vmin.f32 %v2294, 1.0
    %v2296 = vmax.f32 %v2295, -1.0
    %v2297 = vmul.f32 %v2094, %v2094
    %v2298 = vmin.f32 16.0, %v2297
    %v2299 = vmul.f32 %v2298, 2.1237322e-06
    %v2300 = vadd.f32 %v2299, 0.00028619796
    %v2301 = vmul.f32 %v2298, %v2300
    %v2302 = vadd.f32 %v2301, 0.0036580483
    %v2303 = vmul.f32 %v2298, %v2302
    %v2304 = vadd.f32 %v2303, 0.05243302
    %v2305 = vmul.f32 %v2298, %v2304
    %v2306 = vadd.f32 %v2305, 0.18741608
    %v2307 = vmul.f32 %v2298, %v2306
    %v2308 = vadd.f32 %v2307, 1.1283791
    %v2309 = vmul.f32 %v2094, %v2308
    %v2310 = vmul.f32 %v2298, 3.8918573e-05
    %v2311 = vadd.f32 %v2310, 0.001143296
    %v2312 = vmul.f32 %v2298, %v2311
    %v2313 = vadd.f32 %v2312, 0.014752088
    %v2314 = vmul.f32 %v2298, %v2313
    %v2315 = vadd.f32 %v2314, 0.112945676
    %v2316 = vmul.f32 %v2298, %v2315
    %v2317 = vadd.f32 %v2316, 0.4994258
    %v2318 = vmul.f32 %v2298, %v2317
    %v2319 = vadd.f32 %v2318, 1.0
    %v2320 = vrcp.pop %v2319
    %v2321 = vmul.f32 %v2319, %v2320
    %v2322 = vsub.f32 1.0, %v2321
    %v2323 = vmul.f32 %v2320, %v2322
    %v2324 = vadd.f32 %v2320, %v2323
    %vm2325 = vweird.f32 %v2319
    %vm2326 = vweird.f32 %v2320
    %vm2327 = vmor %vm2325, %vm2326
    %v2328 = vsel %vm2327, %v2320, %v2324
    %v2329 = vand.u32 2147483647, %v2319
    %vm2330 = vcmp.eq.f32.partialorder %v2329, 8.507059e+37
    %v2331 = vand.u32 %v2319, 2147483648
    %v2332 = vor.u32 1.1754944e-38, %v2331
    %v2333 = vsel %vm2330, %v2332, %v2328
    %v2334 = vmul.f32 %v2309, %v2333
    %v2335 = vmin.f32 %v2334, 1.0
    %v2336 = vmax.f32 %v2335, -1.0
    %v2337 = vmul.f32 %v2095, %v2095
    %v2338 = vmin.f32 16.0, %v2337
    %v2339 = vmul.f32 %v2338, 2.1237322e-06
    %v2340 = vadd.f32 %v2339, 0.00028619796
    %v2341 = vmul.f32 %v2338, %v2340
    %v2342 = vadd.f32 %v2341, 0.0036580483
    %v2343 = vmul.f32 %v2338, %v2342
    %v2344 = vadd.f32 %v2343, 0.05243302
    %v2345 = vmul.f32 %v2338, %v2344
    %v2346 = vadd.f32 %v2345, 0.18741608
    %v2347 = vmul.f32 %v2338, %v2346
    %v2348 = vadd.f32 %v2347, 1.1283791
    %v2349 = vmul.f32 %v2095, %v2348
    %v2350 = vmul.f32 %v2338, 3.8918573e-05
    %v2351 = vadd.f32 %v2350, 0.001143296
    %v2352 = vmul.f32 %v2338, %v2351
    %v2353 = vadd.f32 %v2352, 0.014752088
    %v2354 = vmul.f32 %v2338, %v2353
    %v2355 = vadd.f32 %v2354, 0.112945676
    %v2356 = vmul.f32 %v2338, %v2355
    %v2357 = vadd.f32 %v2356, 0.4994258
    %v2358 = vmul.f32 %v2338, %v2357
    %v2359 = vadd.f32 %v2358, 1.0
    %v2360 = vrcp.pop %v2359
    %v2361 = vmul.f32 %v2359, %v2360
    %v2362 = vsub.f32 1.0, %v2361
    %v2363 = vmul.f32 %v2360, %v2362
    %v2364 = vadd.f32 %v2360, %v2363
    %vm2365 = vweird.f32 %v2359
    %vm2366 = vweird.f32 %v2360
    %vm2367 = vmor %vm2365, %vm2366
    %v2368 = vsel %vm2367, %v2360, %v2364
    %v2369 = vand.u32 2147483647, %v2359
    %vm2370 = vcmp.eq.f32.partialorder %v2369, 8.507059e+37
    %v2371 = vand.u32 %v2359, 2147483648
    %v2372 = vor.u32 1.1754944e-38, %v2371
    %v2373 = vsel %vm2370, %v2372, %v2368
    %v2374 = vmul.f32 %v2349, %v2373
    %v2375 = vmin.f32 %v2374, 1.0
    %v2376 = vmax.f32 %v2375, -1.0
    %v2377 = vmul.f32 %v2096, %v2096
    %v2378 = vmin.f32 16.0, %v2377
    %v2379 = vmul.f32 %v2378, 2.1237322e-06
    %v2380 = vadd.f32 %v2379, 0.00028619796
    %v2381 = vmul.f32 %v2378, %v2380
    %v2382 = vadd.f32 %v2381, 0.0036580483
    %v2383 = vmul.f32 %v2378, %v2382
    %v2384 = vadd.f32 %v2383, 0.05243302
    %v2385 = vmul.f32 %v2378, %v2384
    %v2386 = vadd.f32 %v2385, 0.18741608
    %v2387 = vmul.f32 %v2378, %v2386
    %v2388 = vadd.f32 %v2387, 1.1283791
    %v2389 = vmul.f32 %v2096, %v2388
    %v2390 = vmul.f32 %v2378, 3.8918573e-05
    %v2391 = vadd.f32 %v2390, 0.001143296
    %v2392 = vmul.f32 %v2378, %v2391
    %v2393 = vadd.f32 %v2392, 0.014752088
    %v2394 = vmul.f32 %v2378, %v2393
    %v2395 = vadd.f32 %v2394, 0.112945676
    %v2396 = vmul.f32 %v2378, %v2395
    %v2397 = vadd.f32 %v2396, 0.4994258
    %v2398 = vmul.f32 %v2378, %v2397
    %v2399 = vadd.f32 %v2398, 1.0
    %v2400 = vrcp.pop %v2399
    %v2401 = vmul.f32 %v2399, %v2400
    %v2402 = vsub.f32 1.0, %v2401
    %v2403 = vmul.f32 %v2400, %v2402
    %v2404 = vadd.f32 %v2400, %v2403
    %vm2405 = vweird.f32 %v2399
    %vm2406 = vweird.f32 %v2400
    %vm2407 = vmor %vm2405, %vm2406
    %v2408 = vsel %vm2407, %v2400, %v2404
    %v2409 = vand.u32 2147483647, %v2399
    %vm2410 = vcmp.eq.f32.partialorder %v2409, 8.507059e+37
    %v2411 = vand.u32 %v2399, 2147483648
    %v2412 = vor.u32 1.1754944e-38, %v2411
    %v2413 = vsel %vm2410, %v2412, %v2408
    %v2414 = vmul.f32 %v2389, %v2413
    %v2415 = vmin.f32 %v2414, 1.0
    %v2416 = vmax.f32 %v2415, -1.0
    %v2417 = vadd.f32 %v2136, 1.0
    %v2418 = vadd.f32 %v2176, 1.0
    %v2419 = vadd.f32 %v2216, 1.0
    %v2420 = vadd.f32 %v2256, 1.0
    %v2421 = vadd.f32 %v2296, 1.0
    %v2422 = vadd.f32 %v2336, 1.0
    %v2423 = vadd.f32 %v2376, 1.0
    %v2424 = vadd.f32 %v2416, 1.0
    %v2425 = vmul.f32 %v2081, %v2417
    %v2426 = vmul.f32 %v2082, %v2418
    %v2427 = vmul.f32 %v2083, %v2419
    %v2428 = vmul.f32 %v2084, %v2420
    %v2429 = vmul.f32 %v2085, %v2421
    %v2430 = vmul.f32 %v2086, %v2422
    %v2431 = vmul.f32 %v2087, %v2423
    %v2432 = vmul.f32 %v2088, %v2424
    %v2433 = vpack.c.bf16 %v2426, %v2425
    %v2434 = vpack.c.bf16 %v2428, %v2427
    %v2435 = vpack.c.bf16 %v2430, %v2429
    %v2436 = vpack.c.bf16 %v2432, %v2431
    %v2438 = vperm.slane %v357, 0
    %v2448 = vunpack.c.l.b16 %v349
    %v2449 = vunpack.c.l.b16 %v350
    %v2450 = vunpack.c.l.b16 %v351
    %v2451 = vunpack.c.l.b16 %v352
    %v2452 = vunpack.c.l.b16 %v353
    %v2453 = vunpack.c.l.b16 %v354
    %v2454 = vunpack.c.l.b16 %v355
    %v2455 = vunpack.c.l.b16 %v356
    %v2456 = vpack.c.b16 %v2449, %v2448
    %v2457 = vpack.c.b16 %v2451, %v2450
    %v2458 = vpack.c.b16 %v2453, %v2452
    %v2459 = vpack.c.b16 %v2455, %v2454
    %v2465 = vsel %vm127, %v2433, 0
    %v2468 = vsel %vm127, %v2434, 0
    %v2471 = vsel %vm127, %v2435, 0
    %v2474 = vsel %vm127, %v2436, 0
    %2476 = vmatpush.bf16.msra.mxu0 0
    %2477 = vmatpush.bf16.msra.mxu0 0
    %2478 = vmatpush.bf16.msra.mxu0 0
    %2479 = vmatpush.bf16.msra.mxu0 0
    %2480 = vmatpush.bf16.msra.mxu0 %v2459
    %2481 = vmatpush.bf16.msra.mxu0 %v2458
    %2482 = vmatpush.bf16.msra.mxu0 %v2457
    %2483 = vmatpush.bf16.msra.mxu0 %v2456
    %2484 = vmatmul.bf16.gmra.mxu0 %v2465
    %v2485 = vpop.f32.mrf.mxu0
    %v2486 = vadd.f32 %v2438, %v2485
    %v2487 = vpop.f32.mrf.mxu0
    %v2488 = vadd.f32 %v2438, %v2487
    %2489 = vmatmul.bf16.gmra.mxu0 %v2468
    %v2490 = vpop.f32.mrf.mxu0
    %v2491 = vadd.f32 %v2438, %v2490
    %v2492 = vpop.f32.mrf.mxu0
    %v2493 = vadd.f32 %v2438, %v2492
    %2494 = vmatmul.bf16.gmra.mxu0 %v2471
    %v2495 = vpop.f32.mrf.mxu0
    %v2496 = vadd.f32 %v2438, %v2495
    %v2497 = vpop.f32.mrf.mxu0
    %v2498 = vadd.f32 %v2438, %v2497
    %2499 = vmatmul.bf16.gmra.mxu0 %v2474
    %v2500 = vpop.f32.mrf.mxu0
    %v2501 = vadd.f32 %v2438, %v2500
    %v2502 = vpop.f32.mrf.mxu0
    %v2503 = vadd.f32 %v2438, %v2502
    %2504 = vdwg.mxu0
    %v2505 = vadd.f32 %v1815, %v2486
    %v2506 = vadd.f32 %v1816, %v2488
    %v2507 = vadd.f32 %v1817, %v2491
    %v2508 = vadd.f32 %v1818, %v2493
    %v2509 = vadd.f32 %v1819, %v2496
    %v2510 = vadd.f32 %v1820, %v2498
    %v2511 = vadd.f32 %v1821, %v2501
    %v2512 = vadd.f32 %v1822, %v2503
    %s2513 = scalar_lea.vmem %s10, 1
    %v2514 = vld [vmem:[%s2513] sm:$0x1]
    %s2515 = scalar_lea.vmem %s11, 1
    %v2516 = vld [vmem:[%s2515] sm:$0x1]
    %s2517 = scalar_lea.vmem %s12, 16
    %v2518 = vld [vmem:[%s2517] sm:$0xf]
    %v2519 = vld [vmem:[%s2517 + $0x4] sm:$0xf]
    %v2520 = vld [vmem:[%s2517 + $0x8] sm:$0xf]
    %v2521 = vld [vmem:[%s2517 + $0xc] sm:$0xf]
    %s2522 = scalar_lea.vmem %s13, 1
    %v2523 = vld [vmem:[%s2522] sm:$0x1]
    %s2524 = scalar_lea.vmem %s14, 16
    %v2525 = vld [vmem:[%s2524] sm:$0xf]
    %v2526 = vld [vmem:[%s2524 + $0x4] sm:$0xf]
    %v2527 = vld [vmem:[%s2524 + $0x8] sm:$0xf]
    %v2528 = vld [vmem:[%s2524 + $0xc] sm:$0xf]
    %s2529 = scalar_lea.vmem %s15, 1
    %v2530 = vld [vmem:[%s2529] sm:$0x1]
    %s2531 = scalar_lea.vmem %s16, 1
    %v2532 = vld [vmem:[%s2531] sm:$0x1]
    %s2533 = scalar_lea.vmem %s17, 1
    %v2534 = vld [vmem:[%s2533] sm:$0x1]
    %s2535 = scalar_lea.vmem %s18, 16
    %v2536 = vld [vmem:[%s2535] sm:$0xf]
    %v2537 = vld [vmem:[%s2535 + $0x4] sm:$0xf]
    %v2538 = vld [vmem:[%s2535 + $0x8] sm:$0xf]
    %v2539 = vld [vmem:[%s2535 + $0xc] sm:$0xf]
    %s2540 = scalar_lea.vmem %s19, 1
    %v2541 = vld [vmem:[%s2540] sm:$0x1]
    %s2542 = scalar_lea.vmem %s20, 32
    %v2543 = vld [vmem:[%s2542] sm:$0xf]
    %v2544 = vld [vmem:[%s2542 + $0x4] sm:$0xf]
    %v2545 = vld [vmem:[%s2542 + $0x8] sm:$0xf]
    %v2546 = vld [vmem:[%s2542 + $0xc] sm:$0xf]
    %v2547 = vld [vmem:[%s2542 + $0x10] sm:$0xf]
    %v2548 = vld [vmem:[%s2542 + $0x14] sm:$0xf]
    %v2549 = vld [vmem:[%s2542 + $0x18] sm:$0xf]
    %v2550 = vld [vmem:[%s2542 + $0x1c] sm:$0xf]
    %s2551 = scalar_lea.vmem %s21, 1
    %v2552 = vld [vmem:[%s2551] sm:$0x1]
    %v2553 = vsel %vm165, %v2505, 0.0
    %2554 = vadd.xlane.f32.xlu0 %v2553
    %v2555 = vpop.xlane.xlu0 %2554
    %v2556 = vsel %vm165, %v2506, 0.0
    %2557 = vadd.xlane.f32.xlu0 %v2556
    %v2558 = vpop.xlane.xlu0 %2557
    %v2559 = vsel %vm165, %v2507, 0.0
    %2560 = vadd.xlane.f32.xlu0 %v2559
    %v2561 = vpop.xlane.xlu0 %2560
    %v2562 = vsel %vm165, %v2508, 0.0
    %2563 = vadd.xlane.f32.xlu0 %v2562
    %v2564 = vpop.xlane.xlu0 %2563
    %v2565 = vsel %vm165, %v2509, 0.0
    %2566 = vadd.xlane.f32.xlu0 %v2565
    %v2567 = vpop.xlane.xlu0 %2566
    %v2568 = vsel %vm165, %v2510, 0.0
    %2569 = vadd.xlane.f32.xlu0 %v2568
    %v2570 = vpop.xlane.xlu0 %2569
    %v2571 = vsel %vm165, %v2511, 0.0
    %2572 = vadd.xlane.f32.xlu0 %v2571
    %v2573 = vpop.xlane.xlu0 %2572
    %v2574 = vsel %vm165, %v2512, 0.0
    %2575 = vadd.xlane.f32.xlu0 %v2574
    %v2576 = vpop.xlane.xlu0 %2575
    %v2577 = vmul.f32 %v2555, %v388
    %v2578 = vmul.f32 %v2558, %v388
    %v2579 = vmul.f32 %v2561, %v388
    %v2580 = vmul.f32 %v2564, %v388
    %v2581 = vmul.f32 %v2567, %v388
    %v2582 = vmul.f32 %v2570, %v388
    %v2583 = vmul.f32 %v2573, %v388
    %v2584 = vmul.f32 %v2576, %v388
    %v2585 = vsub.f32 %v2505, %v2577
    %v2586 = vsub.f32 %v2506, %v2578
    %v2587 = vsub.f32 %v2507, %v2579
    %v2588 = vsub.f32 %v2508, %v2580
    %v2589 = vsub.f32 %v2509, %v2581
    %v2590 = vsub.f32 %v2510, %v2582
    %v2591 = vsub.f32 %v2511, %v2583
    %v2592 = vsub.f32 %v2512, %v2584
    %v2593 = vmul.f32 %v2585, %v2585
    %v2594 = vmul.f32 %v2586, %v2586
    %v2595 = vmul.f32 %v2587, %v2587
    %v2596 = vmul.f32 %v2588, %v2588
    %v2597 = vmul.f32 %v2589, %v2589
    %v2598 = vmul.f32 %v2590, %v2590
    %v2599 = vmul.f32 %v2591, %v2591
    %v2600 = vmul.f32 %v2592, %v2592
    %v2601 = vsel %vm165, %v2593, 0.0
    %2602 = vadd.xlane.f32.xlu0 %v2601
    %v2603 = vpop.xlane.xlu0 %2602
    %v2604 = vsel %vm165, %v2594, 0.0
    %2605 = vadd.xlane.f32.xlu0 %v2604
    %v2606 = vpop.xlane.xlu0 %2605
    %v2607 = vsel %vm165, %v2595, 0.0
    %2608 = vadd.xlane.f32.xlu0 %v2607
    %v2609 = vpop.xlane.xlu0 %2608
    %v2610 = vsel %vm165, %v2596, 0.0
    %2611 = vadd.xlane.f32.xlu0 %v2610
    %v2612 = vpop.xlane.xlu0 %2611
    %v2613 = vsel %vm165, %v2597, 0.0
    %2614 = vadd.xlane.f32.xlu0 %v2613
    %v2615 = vpop.xlane.xlu0 %2614
    %v2616 = vsel %vm165, %v2598, 0.0
    %2617 = vadd.xlane.f32.xlu0 %v2616
    %v2618 = vpop.xlane.xlu0 %2617
    %v2619 = vsel %vm165, %v2599, 0.0
    %2620 = vadd.xlane.f32.xlu0 %v2619
    %v2621 = vpop.xlane.xlu0 %2620
    %v2622 = vsel %vm165, %v2600, 0.0
    %2623 = vadd.xlane.f32.xlu0 %v2622
    %v2624 = vpop.xlane.xlu0 %2623
    %v2625 = vmul.f32 %v2603, %v388
    %v2626 = vmul.f32 %v2606, %v388
    %v2627 = vmul.f32 %v2609, %v388
    %v2628 = vmul.f32 %v2612, %v388
    %v2629 = vmul.f32 %v2615, %v388
    %v2630 = vmul.f32 %v2618, %v388
    %v2631 = vmul.f32 %v2621, %v388
    %v2632 = vmul.f32 %v2624, %v388
    %v2633 = vadd.f32 %v2625, 1e-06
    %v2634 = vadd.f32 %v2626, 1e-06
    %v2635 = vadd.f32 %v2627, 1e-06
    %v2636 = vadd.f32 %v2628, 1e-06
    %v2637 = vadd.f32 %v2629, 1e-06
    %v2638 = vadd.f32 %v2630, 1e-06
    %v2639 = vadd.f32 %v2631, 1e-06
    %v2640 = vadd.f32 %v2632, 1e-06
    %v2641 = vrsqrt.pop %v2633
    %v2642 = vmul.f32 %v2641, %v2633
    %v2643 = vmul.f32 %v2642, %v2641
    %v2644 = vmul.f32 0.5, %v2643
    %v2645 = vsub.f32 1.5, %v2644
    %v2646 = vmul.f32 %v2641, %v2645
    %vm2647 = vweird.f32 %v2633
    %vm2648 = vweird.f32 %v2641
    %vm2649 = vmor %vm2647, %vm2648
    %v2650 = vsel %vm2649, %v2641, %v2646
    %v2651 = vrsqrt.pop %v2634
    %v2652 = vmul.f32 %v2651, %v2634
    %v2653 = vmul.f32 %v2652, %v2651
    %v2654 = vmul.f32 0.5, %v2653
    %v2655 = vsub.f32 1.5, %v2654
    %v2656 = vmul.f32 %v2651, %v2655
    %vm2657 = vweird.f32 %v2634
    %vm2658 = vweird.f32 %v2651
    %vm2659 = vmor %vm2657, %vm2658
    %v2660 = vsel %vm2659, %v2651, %v2656
    %v2661 = vrsqrt.pop %v2635
    %v2662 = vmul.f32 %v2661, %v2635
    %v2663 = vmul.f32 %v2662, %v2661
    %v2664 = vmul.f32 0.5, %v2663
    %v2665 = vsub.f32 1.5, %v2664
    %v2666 = vmul.f32 %v2661, %v2665
    %vm2667 = vweird.f32 %v2635
    %vm2668 = vweird.f32 %v2661
    %vm2669 = vmor %vm2667, %vm2668
    %v2670 = vsel %vm2669, %v2661, %v2666
    %v2671 = vrsqrt.pop %v2636
    %v2672 = vmul.f32 %v2671, %v2636
    %v2673 = vmul.f32 %v2672, %v2671
    %v2674 = vmul.f32 0.5, %v2673
    %v2675 = vsub.f32 1.5, %v2674
    %v2676 = vmul.f32 %v2671, %v2675
    %vm2677 = vweird.f32 %v2636
    %vm2678 = vweird.f32 %v2671
    %vm2679 = vmor %vm2677, %vm2678
    %v2680 = vsel %vm2679, %v2671, %v2676
    %v2681 = vrsqrt.pop %v2637
    %v2682 = vmul.f32 %v2681, %v2637
    %v2683 = vmul.f32 %v2682, %v2681
    %v2684 = vmul.f32 0.5, %v2683
    %v2685 = vsub.f32 1.5, %v2684
    %v2686 = vmul.f32 %v2681, %v2685
    %vm2687 = vweird.f32 %v2637
    %vm2688 = vweird.f32 %v2681
    %vm2689 = vmor %vm2687, %vm2688
    %v2690 = vsel %vm2689, %v2681, %v2686
    %v2691 = vrsqrt.pop %v2638
    %v2692 = vmul.f32 %v2691, %v2638
    %v2693 = vmul.f32 %v2692, %v2691
    %v2694 = vmul.f32 0.5, %v2693
    %v2695 = vsub.f32 1.5, %v2694
    %v2696 = vmul.f32 %v2691, %v2695
    %vm2697 = vweird.f32 %v2638
    %vm2698 = vweird.f32 %v2691
    %vm2699 = vmor %vm2697, %vm2698
    %v2700 = vsel %vm2699, %v2691, %v2696
    %v2701 = vrsqrt.pop %v2639
    %v2702 = vmul.f32 %v2701, %v2639
    %v2703 = vmul.f32 %v2702, %v2701
    %v2704 = vmul.f32 0.5, %v2703
    %v2705 = vsub.f32 1.5, %v2704
    %v2706 = vmul.f32 %v2701, %v2705
    %vm2707 = vweird.f32 %v2639
    %vm2708 = vweird.f32 %v2701
    %vm2709 = vmor %vm2707, %vm2708
    %v2710 = vsel %vm2709, %v2701, %v2706
    %v2711 = vrsqrt.pop %v2640
    %v2712 = vmul.f32 %v2711, %v2640
    %v2713 = vmul.f32 %v2712, %v2711
    %v2714 = vmul.f32 0.5, %v2713
    %v2715 = vsub.f32 1.5, %v2714
    %v2716 = vmul.f32 %v2711, %v2715
    %vm2717 = vweird.f32 %v2640
    %vm2718 = vweird.f32 %v2711
    %vm2719 = vmor %vm2717, %vm2718
    %v2720 = vsel %vm2719, %v2711, %v2716
    %v2721 = vmul.f32 %v2585, %v2650
    %v2722 = vmul.f32 %v2586, %v2660
    %v2723 = vmul.f32 %v2587, %v2670
    %v2724 = vmul.f32 %v2588, %v2680
    %v2725 = vmul.f32 %v2589, %v2690
    %v2726 = vmul.f32 %v2590, %v2700
    %v2727 = vmul.f32 %v2591, %v2710
    %v2728 = vmul.f32 %v2592, %v2720
    %v2730 = vperm.slane %v2514, 0
    %v2732 = vmul.f32 %v2721, %v2730
    %v2733 = vmul.f32 %v2722, %v2730
    %v2734 = vmul.f32 %v2723, %v2730
    %v2735 = vmul.f32 %v2724, %v2730
    %v2736 = vmul.f32 %v2725, %v2730
    %v2737 = vmul.f32 %v2726, %v2730
    %v2738 = vmul.f32 %v2727, %v2730
    %v2739 = vmul.f32 %v2728, %v2730
    %v2741 = vperm.slane %v2516, 0
    %v2743 = vadd.f32 %v2732, %v2741
    %v2744 = vadd.f32 %v2733, %v2741
    %v2745 = vadd.f32 %v2734, %v2741
    %v2746 = vadd.f32 %v2735, %v2741
    %v2747 = vadd.f32 %v2736, %v2741
    %v2748 = vadd.f32 %v2737, %v2741
    %v2749 = vadd.f32 %v2738, %v2741
    %v2750 = vadd.f32 %v2739, %v2741
    %v2751 = vpack.c.bf16 %v2744, %v2743
    %v2752 = vpack.c.bf16 %v2746, %v2745
    %v2753 = vpack.c.bf16 %v2748, %v2747
    %v2754 = vpack.c.bf16 %v2750, %v2749
    %v2756 = vperm.slane %v2523, 0
    %v2762 = vunpack.c.l.b16 %v2518
    %v2763 = vunpack.c.l.b16 %v2519
    %v2764 = vunpack.c.l.b16 %v2520
    %v2765 = vunpack.c.l.b16 %v2521
    %v2766 = vpack.c.b16 %v2763, %v2762
    %v2767 = vpack.c.b16 %v2765, %v2764
    %v2771 = vsel %vm165, %v2751, 0
    %v2774 = vsel %vm165, %v2752, 0
    %v2777 = vsel %vm165, %v2753, 0
    %v2780 = vsel %vm165, %v2754, 0
    %2782 = vmatpush.bf16.msra.mxu0 0
    %2783 = vmatpush.bf16.msra.mxu0 0
    %2784 = vmatpush.bf16.msra.mxu0 0
    %2785 = vmatpush.bf16.msra.mxu0 0
    %2786 = vmatpush.bf16.msra.mxu0 0
    %2787 = vmatpush.bf16.msra.mxu0 0
    %2788 = vmatpush.bf16.msra.mxu0 %v2767
    %2789 = vmatpush.bf16.msra.mxu0 %v2766
    %2790 = vmatmul.bf16.gmra.mxu0 %v2771
    %v2791 = vpop.f32.mrf.mxu0
    %v2792 = vadd.f32 %v2756, %v2791
    %v2793 = vpop.f32.mrf.mxu0
    %v2794 = vadd.f32 %v2756, %v2793
    %2795 = vmatmul.bf16.gmra.mxu0 %v2774
    %v2796 = vpop.f32.mrf.mxu0
    %v2797 = vadd.f32 %v2756, %v2796
    %v2798 = vpop.f32.mrf.mxu0
    %v2799 = vadd.f32 %v2756, %v2798
    %2800 = vmatmul.bf16.gmra.mxu0 %v2777
    %v2801 = vpop.f32.mrf.mxu0
    %v2802 = vadd.f32 %v2756, %v2801
    %v2803 = vpop.f32.mrf.mxu0
    %v2804 = vadd.f32 %v2756, %v2803
    %2805 = vmatmul.bf16.gmra.mxu0 %v2780
    %v2806 = vpop.f32.mrf.mxu0
    %v2807 = vadd.f32 %v2756, %v2806
    %v2808 = vpop.f32.mrf.mxu0
    %v2809 = vadd.f32 %v2756, %v2808
    %2810 = vdwg.mxu0
    %v2811 = vpack.c.bf16 %v2794, %v2792
    %v2812 = vpack.c.bf16 %v2799, %v2797
    %2815 = vrot.lane.b32.xlu0 %v2811, 96
    %v2816 = vpop.permute.xlu0 %2815
    %2817 = vrot.lane.b32.xlu0 %v2812, 96
    %v2818 = vpop.permute.xlu0 %2817
    %v2820 = vsel %vm631, %v2811, 0
    %v2823 = vsel %vm631, %v2812, 0
    %v2826 = vsel %vm631, %v2816, 0
    %v2829 = vsel %vm631, %v2818, 0
    %2831 = vmatpush.bf16.xpose.msra.mxu0 0
    %2832 = vmatpush.bf16.xpose.msra.mxu0 0
    %2833 = vmatpush.bf16.xpose.msra.mxu0 0
    %2834 = vmatpush.bf16.xpose.msra.mxu0 0
    %2835 = vmatpush.bf16.xpose.msra.mxu0 0
    %2836 = vmatpush.bf16.xpose.msra.mxu0 0
    %2837 = vmatpush.bf16.xpose.msra.mxu0 %v2829
    %2838 = vmatpush.bf16.xpose.msra.mxu0 %v2826
    %2839 = vmatmul.bf16.gmra.mxu0 %v2820
    %v2840 = vpop.f32.mrf.mxu0
    %v2841 = vadd.f32 0.0, %v2840
    %v2842 = vpop.f32.mrf.mxu0
    %v2843 = vadd.f32 0.0, %v2842
    %2844 = vmatmul.bf16.gmra.mxu0 %v2823
    %v2845 = vpop.f32.mrf.mxu0
    %v2846 = vadd.f32 0.0, %v2845
    %v2847 = vpop.f32.mrf.mxu0
    %v2848 = vadd.f32 0.0, %v2847
    %2849 = vdwg.mxu0
    %v2850 = vmul.f32 %v2841, 0.35355338
    %v2851 = vmul.f32 %v2843, 0.35355338
    %v2852 = vmul.f32 %v2846, 0.35355338
    %v2853 = vmul.f32 %v2848, 0.35355338
    %v2854 = vadd.f32 %v2850, %v329
    %v2855 = vadd.f32 %v2851, %v329
    %v2856 = vadd.f32 %v2852, %v329
    %v2857 = vadd.f32 %v2853, %v329
    %v2858 = vsel %vm165, %v2854, -inf
    %2859 = vmax.xlane.f32.xlu0 %v2858
    %v2860 = vpop.xlane.xlu0 %2859
    %v2861 = vsel %vm165, %v2855, -inf
    %2862 = vmax.xlane.f32.xlu0 %v2861
    %v2863 = vpop.xlane.xlu0 %2862
    %v2864 = vsel %vm165, %v2856, -inf
    %2865 = vmax.xlane.f32.xlu0 %v2864
    %v2866 = vpop.xlane.xlu0 %2865
    %v2867 = vsel %vm165, %v2857, -inf
    %2868 = vmax.xlane.f32.xlu0 %v2867
    %v2869 = vpop.xlane.xlu0 %2868
    %v2870 = vsub.f32 %v2854, %v2860
    %v2871 = vsub.f32 %v2855, %v2863
    %v2872 = vsub.f32 %v2856, %v2866
    %v2873 = vsub.f32 %v2857, %v2869
    %v2874 = vmul.f32 %v2870, 1.442695
    %v2875 = vpow.pop %v2874
    %v2876 = vmul.f32 %v2871, 1.442695
    %v2877 = vpow.pop %v2876
    %v2878 = vmul.f32 %v2872, 1.442695
    %v2879 = vpow.pop %v2878
    %v2880 = vmul.f32 %v2873, 1.442695
    %v2881 = vpow.pop %v2880
    %v2882 = vsel %vm165, %v2875, 0.0
    %2883 = vadd.xlane.f32.xlu0 %v2882
    %v2884 = vpop.xlane.xlu0 %2883
    %v2885 = vsel %vm165, %v2877, 0.0
    %2886 = vadd.xlane.f32.xlu0 %v2885
    %v2887 = vpop.xlane.xlu0 %2886
    %v2888 = vsel %vm165, %v2879, 0.0
    %2889 = vadd.xlane.f32.xlu0 %v2888
    %v2890 = vpop.xlane.xlu0 %2889
    %v2891 = vsel %vm165, %v2881, 0.0
    %2892 = vadd.xlane.f32.xlu0 %v2891
    %v2893 = vpop.xlane.xlu0 %2892
    %v2894 = vrcp.pop %v2884
    %v2895 = vrcp.pop %v2887
    %v2896 = vrcp.pop %v2890
    %v2897 = vrcp.pop %v2893
    %v2898 = vmul.f32 %v2875, %v2894
    %v2899 = vmul.f32 %v2877, %v2895
    %v2900 = vmul.f32 %v2879, %v2896
    %v2901 = vmul.f32 %v2881, %v2897
    %v2902 = vpack.c.bf16 %v2899, %v2898
    %v2903 = vpack.c.bf16 %v2901, %v2900
    %2904 = vrot.lane.b32.xlu0 %v2811, 64
    %v2905 = vpop.permute.xlu0 %2904
    %2906 = vrot.lane.b32.xlu0 %v2812, 64
    %v2907 = vpop.permute.xlu0 %2906
    %v2911 = vsel %vm165, %v2902, 0
    %v2914 = vsel %vm165, %v2903, 0
    %2916 = vmatpush.bf16.msra.mxu0 0
    %2917 = vmatpush.bf16.msra.mxu0 0
    %2918 = vmatpush.bf16.msra.mxu0 0
    %2919 = vmatpush.bf16.msra.mxu0 0
    %2920 = vmatpush.bf16.msra.mxu0 0
    %2921 = vmatpush.bf16.msra.mxu0 0
    %2922 = vmatpush.bf16.msra.mxu0 %v2907
    %2923 = vmatpush.bf16.msra.mxu0 %v2905
    %2924 = vmatmul.bf16.gmra.mxu0 %v2911
    %v2925 = vpop.f32.mrf.mxu0
    %v2926 = vadd.f32 0.0, %v2925
    %v2927 = vpop.f32.mrf.mxu0
    %v2928 = vadd.f32 0.0, %v2927
    %2929 = vmatmul.bf16.gmra.mxu0 %v2914
    %v2930 = vpop.f32.mrf.mxu0
    %v2931 = vadd.f32 0.0, %v2930
    %v2932 = vpop.f32.mrf.mxu0
    %v2933 = vadd.f32 0.0, %v2932
    %2934 = vdwg.mxu0
    %2935 = vst.msk [vmem:[#allocation2] sm:$0xff] %vm631, %v2926
    %2936 = vst.msk [vmem:[#allocation2 + $0x8] sm:$0xff] %vm631, %v2928
    %2937 = vst.msk [vmem:[#allocation2 + $0x10] sm:$0xff] %vm631, %v2931
    %2938 = vst.msk [vmem:[#allocation2 + $0x18] sm:$0xff] %vm631, %v2933
    %2939 = vrot.lane.b32.xlu0 %v2811, 120
    %v2940 = vpop.permute.xlu0 %2939
    %2941 = vrot.lane.b32.xlu0 %v2812, 120
    %v2942 = vpop.permute.xlu0 %2941
    %2943 = vrot.lane.b32.xlu0 %v2811, 88
    %v2944 = vpop.permute.xlu0 %2943
    %2945 = vrot.lane.b32.xlu0 %v2812, 88
    %v2946 = vpop.permute.xlu0 %2945
    %v2948 = vsel %vm631, %v2940, 0
    %v2951 = vsel %vm631, %v2942, 0
    %v2954 = vsel %vm631, %v2944, 0
    %v2957 = vsel %vm631, %v2946, 0
    %2959 = vmatpush.bf16.xpose.msra.mxu0 0
    %2960 = vmatpush.bf16.xpose.msra.mxu0 0
    %2961 = vmatpush.bf16.xpose.msra.mxu0 0
    %2962 = vmatpush.bf16.xpose.msra.mxu0 0
    %2963 = vmatpush.bf16.xpose.msra.mxu0 0
    %2964 = vmatpush.bf16.xpose.msra.mxu0 0
    %2965 = vmatpush.bf16.xpose.msra.mxu0 %v2957
    %2966 = vmatpush.bf16.xpose.msra.mxu0 %v2954
    %2967 = vmatmul.bf16.gmra.mxu0 %v2948
    %v2968 = vpop.f32.mrf.mxu0
    %v2969 = vadd.f32 0.0, %v2968
    %v2970 = vpop.f32.mrf.mxu0
    %v2971 = vadd.f32 0.0, %v2970
    %2972 = vmatmul.bf16.gmra.mxu0 %v2951
    %v2973 = vpop.f32.mrf.mxu0
    %v2974 = vadd.f32 0.0, %v2973
    %v2975 = vpop.f32.mrf.mxu0
    %v2976 = vadd.f32 0.0, %v2975
    %2977 = vdwg.mxu0
    %v2978 = vmul.f32 %v2969, 0.35355338
    %v2979 = vmul.f32 %v2971, 0.35355338
    %v2980 = vmul.f32 %v2974, 0.35355338
    %v2981 = vmul.f32 %v2976, 0.35355338
    %v2982 = vadd.f32 %v2978, %v329
    %v2983 = vadd.f32 %v2979, %v329
    %v2984 = vadd.f32 %v2980, %v329
    %v2985 = vadd.f32 %v2981, %v329
    %v2986 = vsel %vm165, %v2982, -inf
    %2987 = vmax.xlane.f32.xlu0 %v2986
    %v2988 = vpop.xlane.xlu0 %2987
    %v2989 = vsel %vm165, %v2983, -inf
    %2990 = vmax.xlane.f32.xlu0 %v2989
    %v2991 = vpop.xlane.xlu0 %2990
    %v2992 = vsel %vm165, %v2984, -inf
    %2993 = vmax.xlane.f32.xlu0 %v2992
    %v2994 = vpop.xlane.xlu0 %2993
    %v2995 = vsel %vm165, %v2985, -inf
    %2996 = vmax.xlane.f32.xlu0 %v2995
    %v2997 = vpop.xlane.xlu0 %2996
    %v2998 = vsub.f32 %v2982, %v2988
    %v2999 = vsub.f32 %v2983, %v2991
    %v3000 = vsub.f32 %v2984, %v2994
    %v3001 = vsub.f32 %v2985, %v2997
    %v3002 = vmul.f32 %v2998, 1.442695
    %v3003 = vpow.pop %v3002
    %v3004 = vmul.f32 %v2999, 1.442695
    %v3005 = vpow.pop %v3004
    %v3006 = vmul.f32 %v3000, 1.442695
    %v3007 = vpow.pop %v3006
    %v3008 = vmul.f32 %v3001, 1.442695
    %v3009 = vpow.pop %v3008
    %v3010 = vsel %vm165, %v3003, 0.0
    %3011 = vadd.xlane.f32.xlu0 %v3010
    %v3012 = vpop.xlane.xlu0 %3011
    %v3013 = vsel %vm165, %v3005, 0.0
    %3014 = vadd.xlane.f32.xlu0 %v3013
    %v3015 = vpop.xlane.xlu0 %3014
    %v3016 = vsel %vm165, %v3007, 0.0
    %3017 = vadd.xlane.f32.xlu0 %v3016
    %v3018 = vpop.xlane.xlu0 %3017
    %v3019 = vsel %vm165, %v3009, 0.0
    %3020 = vadd.xlane.f32.xlu0 %v3019
    %v3021 = vpop.xlane.xlu0 %3020
    %v3022 = vrcp.pop %v3012
    %v3023 = vrcp.pop %v3015
    %v3024 = vrcp.pop %v3018
    %v3025 = vrcp.pop %v3021
    %v3026 = vmul.f32 %v3003, %v3022
    %v3027 = vmul.f32 %v3005, %v3023
    %v3028 = vmul.f32 %v3007, %v3024
    %v3029 = vmul.f32 %v3009, %v3025
    %v3030 = vpack.c.bf16 %v3027, %v3026
    %v3031 = vpack.c.bf16 %v3029, %v3028
    %3032 = vrot.lane.b32.xlu0 %v2811, 56
    %v3033 = vpop.permute.xlu0 %3032
    %3034 = vrot.lane.b32.xlu0 %v2812, 56
    %v3035 = vpop.permute.xlu0 %3034
    %v3039 = vsel %vm165, %v3030, 0
    %v3042 = vsel %vm165, %v3031, 0
    %3044 = vmatpush.bf16.msra.mxu0 0
    %3045 = vmatpush.bf16.msra.mxu0 0
    %3046 = vmatpush.bf16.msra.mxu0 0
    %3047 = vmatpush.bf16.msra.mxu0 0
    %3048 = vmatpush.bf16.msra.mxu0 0
    %3049 = vmatpush.bf16.msra.mxu0 0
    %3050 = vmatpush.bf16.msra.mxu0 %v3035
    %3051 = vmatpush.bf16.msra.mxu0 %v3033
    %3052 = vmatmul.bf16.gmra.mxu0 %v3039
    %v3053 = vpop.f32.mrf.mxu0
    %v3054 = vadd.f32 0.0, %v3053
    %v3055 = vpop.f32.mrf.mxu0
    %v3056 = vadd.f32 0.0, %v3055
    %3057 = vmatmul.bf16.gmra.mxu0 %v3042
    %v3058 = vpop.f32.mrf.mxu0
    %v3059 = vadd.f32 0.0, %v3058
    %v3060 = vpop.f32.mrf.mxu0
    %v3061 = vadd.f32 0.0, %v3060
    %3062 = vdwg.mxu0
    %3067 = vrot.lane.b32.xlu0 %v3054, 8
    %v3068 = vpop.permute.xlu0 %3067
    %3069 = vrot.lane.b32.xlu0 %v3056, 8
    %v3070 = vpop.permute.xlu0 %3069
    %3071 = vrot.lane.b32.xlu0 %v3059, 8
    %v3072 = vpop.permute.xlu0 %3071
    %3073 = vrot.lane.b32.xlu0 %v3061, 8
    %v3074 = vpop.permute.xlu0 %3073
    %3079 = vst.msk [vmem:[#allocation2] sm:$0xff] %vm892, %v3068
    %3080 = vst.msk [vmem:[#allocation2 + $0x8] sm:$0xff] %vm892, %v3070
    %3081 = vst.msk [vmem:[#allocation2 + $0x10] sm:$0xff] %vm892, %v3072
    %3082 = vst.msk [vmem:[#allocation2 + $0x18] sm:$0xff] %vm892, %v3074
    %3083 = vrot.lane.b32.xlu0 %v2811, 112
    %v3084 = vpop.permute.xlu0 %3083
    %3085 = vrot.lane.b32.xlu0 %v2812, 112
    %v3086 = vpop.permute.xlu0 %3085
    %3087 = vrot.lane.b32.xlu0 %v2811, 80
    %v3088 = vpop.permute.xlu0 %3087
    %3089 = vrot.lane.b32.xlu0 %v2812, 80
    %v3090 = vpop.permute.xlu0 %3089
    %v3092 = vsel %vm631, %v3084, 0
    %v3095 = vsel %vm631, %v3086, 0
    %v3098 = vsel %vm631, %v3088, 0
    %v3101 = vsel %vm631, %v3090, 0
    %3103 = vmatpush.bf16.xpose.msra.mxu0 0
    %3104 = vmatpush.bf16.xpose.msra.mxu0 0
    %3105 = vmatpush.bf16.xpose.msra.mxu0 0
    %3106 = vmatpush.bf16.xpose.msra.mxu0 0
    %3107 = vmatpush.bf16.xpose.msra.mxu0 0
    %3108 = vmatpush.bf16.xpose.msra.mxu0 0
    %3109 = vmatpush.bf16.xpose.msra.mxu0 %v3101
    %3110 = vmatpush.bf16.xpose.msra.mxu0 %v3098
    %3111 = vmatmul.bf16.gmra.mxu0 %v3092
    %v3112 = vpop.f32.mrf.mxu0
    %v3113 = vadd.f32 0.0, %v3112
    %v3114 = vpop.f32.mrf.mxu0
    %v3115 = vadd.f32 0.0, %v3114
    %3116 = vmatmul.bf16.gmra.mxu0 %v3095
    %v3117 = vpop.f32.mrf.mxu0
    %v3118 = vadd.f32 0.0, %v3117
    %v3119 = vpop.f32.mrf.mxu0
    %v3120 = vadd.f32 0.0, %v3119
    %3121 = vdwg.mxu0
    %v3122 = vmul.f32 %v3113, 0.35355338
    %v3123 = vmul.f32 %v3115, 0.35355338
    %v3124 = vmul.f32 %v3118, 0.35355338
    %v3125 = vmul.f32 %v3120, 0.35355338
    %v3126 = vadd.f32 %v3122, %v329
    %v3127 = vadd.f32 %v3123, %v329
    %v3128 = vadd.f32 %v3124, %v329
    %v3129 = vadd.f32 %v3125, %v329
    %v3130 = vsel %vm165, %v3126, -inf
    %3131 = vmax.xlane.f32.xlu0 %v3130
    %v3132 = vpop.xlane.xlu0 %3131
    %v3133 = vsel %vm165, %v3127, -inf
    %3134 = vmax.xlane.f32.xlu0 %v3133
    %v3135 = vpop.xlane.xlu0 %3134
    %v3136 = vsel %vm165, %v3128, -inf
    %3137 = vmax.xlane.f32.xlu0 %v3136
    %v3138 = vpop.xlane.xlu0 %3137
    %v3139 = vsel %vm165, %v3129, -inf
    %3140 = vmax.xlane.f32.xlu0 %v3139
    %v3141 = vpop.xlane.xlu0 %3140
    %v3142 = vsub.f32 %v3126, %v3132
    %v3143 = vsub.f32 %v3127, %v3135
    %v3144 = vsub.f32 %v3128, %v3138
    %v3145 = vsub.f32 %v3129, %v3141
    %v3146 = vmul.f32 %v3142, 1.442695
    %v3147 = vpow.pop %v3146
    %v3148 = vmul.f32 %v3143, 1.442695
    %v3149 = vpow.pop %v3148
    %v3150 = vmul.f32 %v3144, 1.442695
    %v3151 = vpow.pop %v3150
    %v3152 = vmul.f32 %v3145, 1.442695
    %v3153 = vpow.pop %v3152
    %v3154 = vsel %vm165, %v3147, 0.0
    %3155 = vadd.xlane.f32.xlu0 %v3154
    %v3156 = vpop.xlane.xlu0 %3155
    %v3157 = vsel %vm165, %v3149, 0.0
    %3158 = vadd.xlane.f32.xlu0 %v3157
    %v3159 = vpop.xlane.xlu0 %3158
    %v3160 = vsel %vm165, %v3151, 0.0
    %3161 = vadd.xlane.f32.xlu0 %v3160
    %v3162 = vpop.xlane.xlu0 %3161
    %v3163 = vsel %vm165, %v3153, 0.0
    %3164 = vadd.xlane.f32.xlu0 %v3163
    %v3165 = vpop.xlane.xlu0 %3164
    %v3166 = vrcp.pop %v3156
    %v3167 = vrcp.pop %v3159
    %v3168 = vrcp.pop %v3162
    %v3169 = vrcp.pop %v3165
    %v3170 = vmul.f32 %v3147, %v3166
    %v3171 = vmul.f32 %v3149, %v3167
    %v3172 = vmul.f32 %v3151, %v3168
    %v3173 = vmul.f32 %v3153, %v3169
    %v3174 = vpack.c.bf16 %v3171, %v3170
    %v3175 = vpack.c.bf16 %v3173, %v3172
    %3176 = vrot.lane.b32.xlu0 %v2811, 48
    %v3177 = vpop.permute.xlu0 %3176
    %3178 = vrot.lane.b32.xlu0 %v2812, 48
    %v3179 = vpop.permute.xlu0 %3178
    %v3183 = vsel %vm165, %v3174, 0
    %v3186 = vsel %vm165, %v3175, 0
    %3188 = vmatpush.bf16.msra.mxu0 0
    %3189 = vmatpush.bf16.msra.mxu0 0
    %3190 = vmatpush.bf16.msra.mxu0 0
    %3191 = vmatpush.bf16.msra.mxu0 0
    %3192 = vmatpush.bf16.msra.mxu0 0
    %3193 = vmatpush.bf16.msra.mxu0 0
    %3194 = vmatpush.bf16.msra.mxu0 %v3179
    %3195 = vmatpush.bf16.msra.mxu0 %v3177
    %3196 = vmatmul.bf16.gmra.mxu0 %v3183
    %v3197 = vpop.f32.mrf.mxu0
    %v3198 = vadd.f32 0.0, %v3197
    %v3199 = vpop.f32.mrf.mxu0
    %v3200 = vadd.f32 0.0, %v3199
    %3201 = vmatmul.bf16.gmra.mxu0 %v3186
    %v3202 = vpop.f32.mrf.mxu0
    %v3203 = vadd.f32 0.0, %v3202
    %v3204 = vpop.f32.mrf.mxu0
    %v3205 = vadd.f32 0.0, %v3204
    %3206 = vdwg.mxu0
    %3211 = vrot.lane.b32.xlu0 %v3198, 16
    %v3212 = vpop.permute.xlu0 %3211
    %3213 = vrot.lane.b32.xlu0 %v3200, 16
    %v3214 = vpop.permute.xlu0 %3213
    %3215 = vrot.lane.b32.xlu0 %v3203, 16
    %v3216 = vpop.permute.xlu0 %3215
    %3217 = vrot.lane.b32.xlu0 %v3205, 16
    %v3218 = vpop.permute.xlu0 %3217
    %3223 = vst.msk [vmem:[#allocation2] sm:$0xff] %vm1037, %v3212
    %3224 = vst.msk [vmem:[#allocation2 + $0x8] sm:$0xff] %vm1037, %v3214
    %3225 = vst.msk [vmem:[#allocation2 + $0x10] sm:$0xff] %vm1037, %v3216
    %3226 = vst.msk [vmem:[#allocation2 + $0x18] sm:$0xff] %vm1037, %v3218
    %3227 = vrot.lane.b32.xlu0 %v2811, 104
    %v3228 = vpop.permute.xlu0 %3227
    %3229 = vrot.lane.b32.xlu0 %v2812, 104
    %v3230 = vpop.permute.xlu0 %3229
    %3231 = vrot.lane.b32.xlu0 %v2811, 72
    %v3232 = vpop.permute.xlu0 %3231
    %3233 = vrot.lane.b32.xlu0 %v2812, 72
    %v3234 = vpop.permute.xlu0 %3233
    %v3236 = vsel %vm631, %v3228, 0
    %v3239 = vsel %vm631, %v3230, 0
    %v3242 = vsel %vm631, %v3232, 0
    %v3245 = vsel %vm631, %v3234, 0
    %3247 = vmatpush.bf16.xpose.msra.mxu0 0
    %3248 = vmatpush.bf16.xpose.msra.mxu0 0
    %3249 = vmatpush.bf16.xpose.msra.mxu0 0
    %3250 = vmatpush.bf16.xpose.msra.mxu0 0
    %3251 = vmatpush.bf16.xpose.msra.mxu0 0
    %3252 = vmatpush.bf16.xpose.msra.mxu0 0
    %3253 = vmatpush.bf16.xpose.msra.mxu0 %v3245
    %3254 = vmatpush.bf16.xpose.msra.mxu0 %v3242
    %3255 = vmatmul.bf16.gmra.mxu0 %v3236
    %v3256 = vpop.f32.mrf.mxu0
    %v3257 = vadd.f32 0.0, %v3256
    %v3258 = vpop.f32.mrf.mxu0
    %v3259 = vadd.f32 0.0, %v3258
    %3260 = vmatmul.bf16.gmra.mxu0 %v3239
    %v3261 = vpop.f32.mrf.mxu0
    %v3262 = vadd.f32 0.0, %v3261
    %v3263 = vpop.f32.mrf.mxu0
    %v3264 = vadd.f32 0.0, %v3263
    %3265 = vdwg.mxu0
    %v3266 = vmul.f32 %v3257, 0.35355338
    %v3267 = vmul.f32 %v3259, 0.35355338
    %v3268 = vmul.f32 %v3262, 0.35355338
    %v3269 = vmul.f32 %v3264, 0.35355338
    %v3270 = vadd.f32 %v3266, %v329
    %v3271 = vadd.f32 %v3267, %v329
    %v3272 = vadd.f32 %v3268, %v329
    %v3273 = vadd.f32 %v3269, %v329
    %v3274 = vsel %vm165, %v3270, -inf
    %3275 = vmax.xlane.f32.xlu0 %v3274
    %v3276 = vpop.xlane.xlu0 %3275
    %v3277 = vsel %vm165, %v3271, -inf
    %3278 = vmax.xlane.f32.xlu0 %v3277
    %v3279 = vpop.xlane.xlu0 %3278
    %v3280 = vsel %vm165, %v3272, -inf
    %3281 = vmax.xlane.f32.xlu0 %v3280
    %v3282 = vpop.xlane.xlu0 %3281
    %v3283 = vsel %vm165, %v3273, -inf
    %3284 = vmax.xlane.f32.xlu0 %v3283
    %v3285 = vpop.xlane.xlu0 %3284
    %v3286 = vsub.f32 %v3270, %v3276
    %v3287 = vsub.f32 %v3271, %v3279
    %v3288 = vsub.f32 %v3272, %v3282
    %v3289 = vsub.f32 %v3273, %v3285
    %v3290 = vmul.f32 %v3286, 1.442695
    %v3291 = vpow.pop %v3290
    %v3292 = vmul.f32 %v3287, 1.442695
    %v3293 = vpow.pop %v3292
    %v3294 = vmul.f32 %v3288, 1.442695
    %v3295 = vpow.pop %v3294
    %v3296 = vmul.f32 %v3289, 1.442695
    %v3297 = vpow.pop %v3296
    %v3298 = vsel %vm165, %v3291, 0.0
    %3299 = vadd.xlane.f32.xlu0 %v3298
    %v3300 = vpop.xlane.xlu0 %3299
    %v3301 = vsel %vm165, %v3293, 0.0
    %3302 = vadd.xlane.f32.xlu0 %v3301
    %v3303 = vpop.xlane.xlu0 %3302
    %v3304 = vsel %vm165, %v3295, 0.0
    %3305 = vadd.xlane.f32.xlu0 %v3304
    %v3306 = vpop.xlane.xlu0 %3305
    %v3307 = vsel %vm165, %v3297, 0.0
    %3308 = vadd.xlane.f32.xlu0 %v3307
    %v3309 = vpop.xlane.xlu0 %3308
    %v3310 = vrcp.pop %v3300
    %v3311 = vrcp.pop %v3303
    %v3312 = vrcp.pop %v3306
    %v3313 = vrcp.pop %v3309
    %v3314 = vmul.f32 %v3291, %v3310
    %v3315 = vmul.f32 %v3293, %v3311
    %v3316 = vmul.f32 %v3295, %v3312
    %v3317 = vmul.f32 %v3297, %v3313
    %v3318 = vpack.c.bf16 %v3315, %v3314
    %v3319 = vpack.c.bf16 %v3317, %v3316
    %3320 = vrot.lane.b32.xlu0 %v2811, 40
    %v3321 = vpop.permute.xlu0 %3320
    %3322 = vrot.lane.b32.xlu0 %v2812, 40
    %v3323 = vpop.permute.xlu0 %3322
    %v3327 = vsel %vm165, %v3318, 0
    %v3330 = vsel %vm165, %v3319, 0
    %3332 = vmatpush.bf16.msra.mxu0 0
    %3333 = vmatpush.bf16.msra.mxu0 0
    %3334 = vmatpush.bf16.msra.mxu0 0
    %3335 = vmatpush.bf16.msra.mxu0 0
    %3336 = vmatpush.bf16.msra.mxu0 0
    %3337 = vmatpush.bf16.msra.mxu0 0
    %3338 = vmatpush.bf16.msra.mxu0 %v3323
    %3339 = vmatpush.bf16.msra.mxu0 %v3321
    %3340 = vmatmul.bf16.gmra.mxu0 %v3327
    %v3341 = vpop.f32.mrf.mxu0
    %v3342 = vadd.f32 0.0, %v3341
    %v3343 = vpop.f32.mrf.mxu0
    %v3344 = vadd.f32 0.0, %v3343
    %3345 = vmatmul.bf16.gmra.mxu0 %v3330
    %v3346 = vpop.f32.mrf.mxu0
    %v3347 = vadd.f32 0.0, %v3346
    %v3348 = vpop.f32.mrf.mxu0
    %v3349 = vadd.f32 0.0, %v3348
    %3350 = vdwg.mxu0
    %3355 = vrot.lane.b32.xlu0 %v3342, 24
    %v3356 = vpop.permute.xlu0 %3355
    %3357 = vrot.lane.b32.xlu0 %v3344, 24
    %v3358 = vpop.permute.xlu0 %3357
    %3359 = vrot.lane.b32.xlu0 %v3347, 24
    %v3360 = vpop.permute.xlu0 %3359
    %3361 = vrot.lane.b32.xlu0 %v3349, 24
    %v3362 = vpop.permute.xlu0 %3361
    %3367 = vst.msk [vmem:[#allocation2] sm:$0xff] %vm1182, %v3356
    %3368 = vst.msk [vmem:[#allocation2 + $0x8] sm:$0xff] %vm1182, %v3358
    %3369 = vst.msk [vmem:[#allocation2 + $0x10] sm:$0xff] %vm1182, %v3360
    %3370 = vst.msk [vmem:[#allocation2 + $0x18] sm:$0xff] %vm1182, %v3362
    %v3371 = vpack.c.bf16 %v2804, %v2802
    %v3372 = vpack.c.bf16 %v2809, %v2807
    %3375 = vrot.lane.b32.xlu0 %v3371, 96
    %v3376 = vpop.permute.xlu0 %3375
    %3377 = vrot.lane.b32.xlu0 %v3372, 96
    %v3378 = vpop.permute.xlu0 %3377
    %v3380 = vsel %vm631, %v3371, 0
    %v3383 = vsel %vm631, %v3372, 0
    %v3386 = vsel %vm631, %v3376, 0
    %v3389 = vsel %vm631, %v3378, 0
    %3391 = vmatpush.bf16.xpose.msra.mxu0 0
    %3392 = vmatpush.bf16.xpose.msra.mxu0 0
    %3393 = vmatpush.bf16.xpose.msra.mxu0 0
    %3394 = vmatpush.bf16.xpose.msra.mxu0 0
    %3395 = vmatpush.bf16.xpose.msra.mxu0 0
    %3396 = vmatpush.bf16.xpose.msra.mxu0 0
    %3397 = vmatpush.bf16.xpose.msra.mxu0 %v3389
    %3398 = vmatpush.bf16.xpose.msra.mxu0 %v3386
    %3399 = vmatmul.bf16.gmra.mxu0 %v3380
    %v3400 = vpop.f32.mrf.mxu0
    %v3401 = vadd.f32 0.0, %v3400
    %v3402 = vpop.f32.mrf.mxu0
    %v3403 = vadd.f32 0.0, %v3402
    %3404 = vmatmul.bf16.gmra.mxu0 %v3383
    %v3405 = vpop.f32.mrf.mxu0
    %v3406 = vadd.f32 0.0, %v3405
    %v3407 = vpop.f32.mrf.mxu0
    %v3408 = vadd.f32 0.0, %v3407
    %3409 = vdwg.mxu0
    %v3410 = vmul.f32 %v3401, 0.35355338
    %v3411 = vmul.f32 %v3403, 0.35355338
    %v3412 = vmul.f32 %v3406, 0.35355338
    %v3413 = vmul.f32 %v3408, 0.35355338
    %v3414 = vadd.f32 %v3410, %v329
    %v3415 = vadd.f32 %v3411, %v329
    %v3416 = vadd.f32 %v3412, %v329
    %v3417 = vadd.f32 %v3413, %v329
    %v3418 = vsel %vm165, %v3414, -inf
    %3419 = vmax.xlane.f32.xlu0 %v3418
    %v3420 = vpop.xlane.xlu0 %3419
    %v3421 = vsel %vm165, %v3415, -inf
    %3422 = vmax.xlane.f32.xlu0 %v3421
    %v3423 = vpop.xlane.xlu0 %3422
    %v3424 = vsel %vm165, %v3416, -inf
    %3425 = vmax.xlane.f32.xlu0 %v3424
    %v3426 = vpop.xlane.xlu0 %3425
    %v3427 = vsel %vm165, %v3417, -inf
    %3428 = vmax.xlane.f32.xlu0 %v3427
    %v3429 = vpop.xlane.xlu0 %3428
    %v3430 = vsub.f32 %v3414, %v3420
    %v3431 = vsub.f32 %v3415, %v3423
    %v3432 = vsub.f32 %v3416, %v3426
    %v3433 = vsub.f32 %v3417, %v3429
    %v3434 = vmul.f32 %v3430, 1.442695
    %v3435 = vpow.pop %v3434
    %v3436 = vmul.f32 %v3431, 1.442695
    %v3437 = vpow.pop %v3436
    %v3438 = vmul.f32 %v3432, 1.442695
    %v3439 = vpow.pop %v3438
    %v3440 = vmul.f32 %v3433, 1.442695
    %v3441 = vpow.pop %v3440
    %v3442 = vsel %vm165, %v3435, 0.0
    %3443 = vadd.xlane.f32.xlu0 %v3442
    %v3444 = vpop.xlane.xlu0 %3443
    %v3445 = vsel %vm165, %v3437, 0.0
    %3446 = vadd.xlane.f32.xlu0 %v3445
    %v3447 = vpop.xlane.xlu0 %3446
    %v3448 = vsel %vm165, %v3439, 0.0
    %3449 = vadd.xlane.f32.xlu0 %v3448
    %v3450 = vpop.xlane.xlu0 %3449
    %v3451 = vsel %vm165, %v3441, 0.0
    %3452 = vadd.xlane.f32.xlu0 %v3451
    %v3453 = vpop.xlane.xlu0 %3452
    %v3454 = vrcp.pop %v3444
    %v3455 = vrcp.pop %v3447
    %v3456 = vrcp.pop %v3450
    %v3457 = vrcp.pop %v3453
    %v3458 = vmul.f32 %v3435, %v3454
    %v3459 = vmul.f32 %v3437, %v3455
    %v3460 = vmul.f32 %v3439, %v3456
    %v3461 = vmul.f32 %v3441, %v3457
    %v3462 = vpack.c.bf16 %v3459, %v3458
    %v3463 = vpack.c.bf16 %v3461, %v3460
    %3464 = vrot.lane.b32.xlu0 %v3371, 64
    %v3465 = vpop.permute.xlu0 %3464
    %3466 = vrot.lane.b32.xlu0 %v3372, 64
    %v3467 = vpop.permute.xlu0 %3466
    %v3471 = vsel %vm165, %v3462, 0
    %v3474 = vsel %vm165, %v3463, 0
    %3476 = vmatpush.bf16.msra.mxu0 0
    %3477 = vmatpush.bf16.msra.mxu0 0
    %3478 = vmatpush.bf16.msra.mxu0 0
    %3479 = vmatpush.bf16.msra.mxu0 0
    %3480 = vmatpush.bf16.msra.mxu0 0
    %3481 = vmatpush.bf16.msra.mxu0 0
    %3482 = vmatpush.bf16.msra.mxu0 %v3467
    %3483 = vmatpush.bf16.msra.mxu0 %v3465
    %3484 = vmatmul.bf16.gmra.mxu0 %v3471
    %v3485 = vpop.f32.mrf.mxu0
    %v3486 = vadd.f32 0.0, %v3485
    %v3487 = vpop.f32.mrf.mxu0
    %v3488 = vadd.f32 0.0, %v3487
    %3489 = vmatmul.bf16.gmra.mxu0 %v3474
    %v3490 = vpop.f32.mrf.mxu0
    %v3491 = vadd.f32 0.0, %v3490
    %v3492 = vpop.f32.mrf.mxu0
    %v3493 = vadd.f32 0.0, %v3492
    %3494 = vdwg.mxu0
    %3495 = vst.msk [vmem:[#allocation2 + $0x20] sm:$0xff] %vm631, %v3486
    %3496 = vst.msk [vmem:[#allocation2 + $0x28] sm:$0xff] %vm631, %v3488
    %3497 = vst.msk [vmem:[#allocation2 + $0x30] sm:$0xff] %vm631, %v3491
    %3498 = vst.msk [vmem:[#allocation2 + $0x38] sm:$0xff] %vm631, %v3493
    %3499 = vrot.lane.b32.xlu0 %v3371, 120
    %v3500 = vpop.permute.xlu0 %3499
    %3501 = vrot.lane.b32.xlu0 %v3372, 120
    %v3502 = vpop.permute.xlu0 %3501
    %3503 = vrot.lane.b32.xlu0 %v3371, 88
    %v3504 = vpop.permute.xlu0 %3503
    %3505 = vrot.lane.b32.xlu0 %v3372, 88
    %v3506 = vpop.permute.xlu0 %3505
    %v3508 = vsel %vm631, %v3500, 0
    %v3511 = vsel %vm631, %v3502, 0
    %v3514 = vsel %vm631, %v3504, 0
    %v3517 = vsel %vm631, %v3506, 0
    %3519 = vmatpush.bf16.xpose.msra.mxu0 0
    %3520 = vmatpush.bf16.xpose.msra.mxu0 0
    %3521 = vmatpush.bf16.xpose.msra.mxu0 0
    %3522 = vmatpush.bf16.xpose.msra.mxu0 0
    %3523 = vmatpush.bf16.xpose.msra.mxu0 0
    %3524 = vmatpush.bf16.xpose.msra.mxu0 0
    %3525 = vmatpush.bf16.xpose.msra.mxu0 %v3517
    %3526 = vmatpush.bf16.xpose.msra.mxu0 %v3514
    %3527 = vmatmul.bf16.gmra.mxu0 %v3508
    %v3528 = vpop.f32.mrf.mxu0
    %v3529 = vadd.f32 0.0, %v3528
    %v3530 = vpop.f32.mrf.mxu0
    %v3531 = vadd.f32 0.0, %v3530
    %3532 = vmatmul.bf16.gmra.mxu0 %v3511
    %v3533 = vpop.f32.mrf.mxu0
    %v3534 = vadd.f32 0.0, %v3533
    %v3535 = vpop.f32.mrf.mxu0
    %v3536 = vadd.f32 0.0, %v3535
    %3537 = vdwg.mxu0
    %v3538 = vmul.f32 %v3529, 0.35355338
    %v3539 = vmul.f32 %v3531, 0.35355338
    %v3540 = vmul.f32 %v3534, 0.35355338
    %v3541 = vmul.f32 %v3536, 0.35355338
    %v3542 = vadd.f32 %v3538, %v329
    %v3543 = vadd.f32 %v3539, %v329
    %v3544 = vadd.f32 %v3540, %v329
    %v3545 = vadd.f32 %v3541, %v329
    %v3546 = vsel %vm165, %v3542, -inf
    %3547 = vmax.xlane.f32.xlu0 %v3546
    %v3548 = vpop.xlane.xlu0 %3547
    %v3549 = vsel %vm165, %v3543, -inf
    %3550 = vmax.xlane.f32.xlu0 %v3549
    %v3551 = vpop.xlane.xlu0 %3550
    %v3552 = vsel %vm165, %v3544, -inf
    %3553 = vmax.xlane.f32.xlu0 %v3552
    %v3554 = vpop.xlane.xlu0 %3553
    %v3555 = vsel %vm165, %v3545, -inf
    %3556 = vmax.xlane.f32.xlu0 %v3555
    %v3557 = vpop.xlane.xlu0 %3556
    %v3558 = vsub.f32 %v3542, %v3548
    %v3559 = vsub.f32 %v3543, %v3551
    %v3560 = vsub.f32 %v3544, %v3554
    %v3561 = vsub.f32 %v3545, %v3557
    %v3562 = vmul.f32 %v3558, 1.442695
    %v3563 = vpow.pop %v3562
    %v3564 = vmul.f32 %v3559, 1.442695
    %v3565 = vpow.pop %v3564
    %v3566 = vmul.f32 %v3560, 1.442695
    %v3567 = vpow.pop %v3566
    %v3568 = vmul.f32 %v3561, 1.442695
    %v3569 = vpow.pop %v3568
    %v3570 = vsel %vm165, %v3563, 0.0
    %3571 = vadd.xlane.f32.xlu0 %v3570
    %v3572 = vpop.xlane.xlu0 %3571
    %v3573 = vsel %vm165, %v3565, 0.0
    %3574 = vadd.xlane.f32.xlu0 %v3573
    %v3575 = vpop.xlane.xlu0 %3574
    %v3576 = vsel %vm165, %v3567, 0.0
    %3577 = vadd.xlane.f32.xlu0 %v3576
    %v3578 = vpop.xlane.xlu0 %3577
    %v3579 = vsel %vm165, %v3569, 0.0
    %3580 = vadd.xlane.f32.xlu0 %v3579
    %v3581 = vpop.xlane.xlu0 %3580
    %v3582 = vrcp.pop %v3572
    %v3583 = vrcp.pop %v3575
    %v3584 = vrcp.pop %v3578
    %v3585 = vrcp.pop %v3581
    %v3586 = vmul.f32 %v3563, %v3582
    %v3587 = vmul.f32 %v3565, %v3583
    %v3588 = vmul.f32 %v3567, %v3584
    %v3589 = vmul.f32 %v3569, %v3585
    %v3590 = vpack.c.bf16 %v3587, %v3586
    %v3591 = vpack.c.bf16 %v3589, %v3588
    %3592 = vrot.lane.b32.xlu0 %v3371, 56
    %v3593 = vpop.permute.xlu0 %3592
    %3594 = vrot.lane.b32.xlu0 %v3372, 56
    %v3595 = vpop.permute.xlu0 %3594
    %v3599 = vsel %vm165, %v3590, 0
    %v3602 = vsel %vm165, %v3591, 0
    %3604 = vmatpush.bf16.msra.mxu0 0
    %3605 = vmatpush.bf16.msra.mxu0 0
    %3606 = vmatpush.bf16.msra.mxu0 0
    %3607 = vmatpush.bf16.msra.mxu0 0
    %3608 = vmatpush.bf16.msra.mxu0 0
    %3609 = vmatpush.bf16.msra.mxu0 0
    %3610 = vmatpush.bf16.msra.mxu0 %v3595
    %3611 = vmatpush.bf16.msra.mxu0 %v3593
    %3612 = vmatmul.bf16.gmra.mxu0 %v3599
    %v3613 = vpop.f32.mrf.mxu0
    %v3614 = vadd.f32 0.0, %v3613
    %v3615 = vpop.f32.mrf.mxu0
    %v3616 = vadd.f32 0.0, %v3615
    %3617 = vmatmul.bf16.gmra.mxu0 %v3602
    %v3618 = vpop.f32.mrf.mxu0
    %v3619 = vadd.f32 0.0, %v3618
    %v3620 = vpop.f32.mrf.mxu0
    %v3621 = vadd.f32 0.0, %v3620
    %3622 = vdwg.mxu0
    %3627 = vrot.lane.b32.xlu0 %v3614, 8
    %v3628 = vpop.permute.xlu0 %3627
    %3629 = vrot.lane.b32.xlu0 %v3616, 8
    %v3630 = vpop.permute.xlu0 %3629
    %3631 = vrot.lane.b32.xlu0 %v3619, 8
    %v3632 = vpop.permute.xlu0 %3631
    %3633 = vrot.lane.b32.xlu0 %v3621, 8
    %v3634 = vpop.permute.xlu0 %3633
    %3639 = vst.msk [vmem:[#allocation2 + $0x20] sm:$0xff] %vm892, %v3628
    %3640 = vst.msk [vmem:[#allocation2 + $0x28] sm:$0xff] %vm892, %v3630
    %3641 = vst.msk [vmem:[#allocation2 + $0x30] sm:$0xff] %vm892, %v3632
    %3642 = vst.msk [vmem:[#allocation2 + $0x38] sm:$0xff] %vm892, %v3634
    %3643 = vrot.lane.b32.xlu0 %v3371, 112
    %v3644 = vpop.permute.xlu0 %3643
    %3645 = vrot.lane.b32.xlu0 %v3372, 112
    %v3646 = vpop.permute.xlu0 %3645
    %3647 = vrot.lane.b32.xlu0 %v3371, 80
    %v3648 = vpop.permute.xlu0 %3647
    %3649 = vrot.lane.b32.xlu0 %v3372, 80
    %v3650 = vpop.permute.xlu0 %3649
    %v3652 = vsel %vm631, %v3644, 0
    %v3655 = vsel %vm631, %v3646, 0
    %v3658 = vsel %vm631, %v3648, 0
    %v3661 = vsel %vm631, %v3650, 0
    %3663 = vmatpush.bf16.xpose.msra.mxu0 0
    %3664 = vmatpush.bf16.xpose.msra.mxu0 0
    %3665 = vmatpush.bf16.xpose.msra.mxu0 0
    %3666 = vmatpush.bf16.xpose.msra.mxu0 0
    %3667 = vmatpush.bf16.xpose.msra.mxu0 0
    %3668 = vmatpush.bf16.xpose.msra.mxu0 0
    %3669 = vmatpush.bf16.xpose.msra.mxu0 %v3661
    %3670 = vmatpush.bf16.xpose.msra.mxu0 %v3658
    %3671 = vmatmul.bf16.gmra.mxu0 %v3652
    %v3672 = vpop.f32.mrf.mxu0
    %v3673 = vadd.f32 0.0, %v3672
    %v3674 = vpop.f32.mrf.mxu0
    %v3675 = vadd.f32 0.0, %v3674
    %3676 = vmatmul.bf16.gmra.mxu0 %v3655
    %v3677 = vpop.f32.mrf.mxu0
    %v3678 = vadd.f32 0.0, %v3677
    %v3679 = vpop.f32.mrf.mxu0
    %v3680 = vadd.f32 0.0, %v3679
    %3681 = vdwg.mxu0
    %v3682 = vmul.f32 %v3673, 0.35355338
    %v3683 = vmul.f32 %v3675, 0.35355338
    %v3684 = vmul.f32 %v3678, 0.35355338
    %v3685 = vmul.f32 %v3680, 0.35355338
    %v3686 = vadd.f32 %v3682, %v329
    %v3687 = vadd.f32 %v3683, %v329
    %v3688 = vadd.f32 %v3684, %v329
    %v3689 = vadd.f32 %v3685, %v329
    %v3690 = vsel %vm165, %v3686, -inf
    %3691 = vmax.xlane.f32.xlu0 %v3690
    %v3692 = vpop.xlane.xlu0 %3691
    %v3693 = vsel %vm165, %v3687, -inf
    %3694 = vmax.xlane.f32.xlu0 %v3693
    %v3695 = vpop.xlane.xlu0 %3694
    %v3696 = vsel %vm165, %v3688, -inf
    %3697 = vmax.xlane.f32.xlu0 %v3696
    %v3698 = vpop.xlane.xlu0 %3697
    %v3699 = vsel %vm165, %v3689, -inf
    %3700 = vmax.xlane.f32.xlu0 %v3699
    %v3701 = vpop.xlane.xlu0 %3700
    %v3702 = vsub.f32 %v3686, %v3692
    %v3703 = vsub.f32 %v3687, %v3695
    %v3704 = vsub.f32 %v3688, %v3698
    %v3705 = vsub.f32 %v3689, %v3701
    %v3706 = vmul.f32 %v3702, 1.442695
    %v3707 = vpow.pop %v3706
    %v3708 = vmul.f32 %v3703, 1.442695
    %v3709 = vpow.pop %v3708
    %v3710 = vmul.f32 %v3704, 1.442695
    %v3711 = vpow.pop %v3710
    %v3712 = vmul.f32 %v3705, 1.442695
    %v3713 = vpow.pop %v3712
    %v3714 = vsel %vm165, %v3707, 0.0
    %3715 = vadd.xlane.f32.xlu0 %v3714
    %v3716 = vpop.xlane.xlu0 %3715
    %v3717 = vsel %vm165, %v3709, 0.0
    %3718 = vadd.xlane.f32.xlu0 %v3717
    %v3719 = vpop.xlane.xlu0 %3718
    %v3720 = vsel %vm165, %v3711, 0.0
    %3721 = vadd.xlane.f32.xlu0 %v3720
    %v3722 = vpop.xlane.xlu0 %3721
    %v3723 = vsel %vm165, %v3713, 0.0
    %3724 = vadd.xlane.f32.xlu0 %v3723
    %v3725 = vpop.xlane.xlu0 %3724
    %v3726 = vrcp.pop %v3716
    %v3727 = vrcp.pop %v3719
    %v3728 = vrcp.pop %v3722
    %v3729 = vrcp.pop %v3725
    %v3730 = vmul.f32 %v3707, %v3726
    %v3731 = vmul.f32 %v3709, %v3727
    %v3732 = vmul.f32 %v3711, %v3728
    %v3733 = vmul.f32 %v3713, %v3729
    %v3734 = vpack.c.bf16 %v3731, %v3730
    %v3735 = vpack.c.bf16 %v3733, %v3732
    %3736 = vrot.lane.b32.xlu0 %v3371, 48
    %v3737 = vpop.permute.xlu0 %3736
    %3738 = vrot.lane.b32.xlu0 %v3372, 48
    %v3739 = vpop.permute.xlu0 %3738
    %v3743 = vsel %vm165, %v3734, 0
    %v3746 = vsel %vm165, %v3735, 0
    %3748 = vmatpush.bf16.msra.mxu0 0
    %3749 = vmatpush.bf16.msra.mxu0 0
    %3750 = vmatpush.bf16.msra.mxu0 0
    %3751 = vmatpush.bf16.msra.mxu0 0
    %3752 = vmatpush.bf16.msra.mxu0 0
    %3753 = vmatpush.bf16.msra.mxu0 0
    %3754 = vmatpush.bf16.msra.mxu0 %v3739
    %3755 = vmatpush.bf16.msra.mxu0 %v3737
    %3756 = vmatmul.bf16.gmra.mxu0 %v3743
    %v3757 = vpop.f32.mrf.mxu0
    %v3758 = vadd.f32 0.0, %v3757
    %v3759 = vpop.f32.mrf.mxu0
    %v3760 = vadd.f32 0.0, %v3759
    %3761 = vmatmul.bf16.gmra.mxu0 %v3746
    %v3762 = vpop.f32.mrf.mxu0
    %v3763 = vadd.f32 0.0, %v3762
    %v3764 = vpop.f32.mrf.mxu0
    %v3765 = vadd.f32 0.0, %v3764
    %3766 = vdwg.mxu0
    %3771 = vrot.lane.b32.xlu0 %v3758, 16
    %v3772 = vpop.permute.xlu0 %3771
    %3773 = vrot.lane.b32.xlu0 %v3760, 16
    %v3774 = vpop.permute.xlu0 %3773
    %3775 = vrot.lane.b32.xlu0 %v3763, 16
    %v3776 = vpop.permute.xlu0 %3775
    %3777 = vrot.lane.b32.xlu0 %v3765, 16
    %v3778 = vpop.permute.xlu0 %3777
    %3783 = vst.msk [vmem:[#allocation2 + $0x20] sm:$0xff] %vm1037, %v3772
    %3784 = vst.msk [vmem:[#allocation2 + $0x28] sm:$0xff] %vm1037, %v3774
    %3785 = vst.msk [vmem:[#allocation2 + $0x30] sm:$0xff] %vm1037, %v3776
    %3786 = vst.msk [vmem:[#allocation2 + $0x38] sm:$0xff] %vm1037, %v3778
    %3787 = vrot.lane.b32.xlu0 %v3371, 104
    %v3788 = vpop.permute.xlu0 %3787
    %3789 = vrot.lane.b32.xlu0 %v3372, 104
    %v3790 = vpop.permute.xlu0 %3789
    %3791 = vrot.lane.b32.xlu0 %v3371, 72
    %v3792 = vpop.permute.xlu0 %3791
    %3793 = vrot.lane.b32.xlu0 %v3372, 72
    %v3794 = vpop.permute.xlu0 %3793
    %v3796 = vsel %vm631, %v3788, 0
    %v3799 = vsel %vm631, %v3790, 0
    %v3802 = vsel %vm631, %v3792, 0
    %v3805 = vsel %vm631, %v3794, 0
    %3807 = vmatpush.bf16.xpose.msra.mxu0 0
    %3808 = vmatpush.bf16.xpose.msra.mxu0 0
    %3809 = vmatpush.bf16.xpose.msra.mxu0 0
    %3810 = vmatpush.bf16.xpose.msra.mxu0 0
    %3811 = vmatpush.bf16.xpose.msra.mxu0 0
    %3812 = vmatpush.bf16.xpose.msra.mxu0 0
    %3813 = vmatpush.bf16.xpose.msra.mxu0 %v3805
    %3814 = vmatpush.bf16.xpose.msra.mxu0 %v3802
    %3815 = vmatmul.bf16.gmra.mxu0 %v3796
    %v3816 = vpop.f32.mrf.mxu0
    %v3817 = vadd.f32 0.0, %v3816
    %v3818 = vpop.f32.mrf.mxu0
    %v3819 = vadd.f32 0.0, %v3818
    %3820 = vmatmul.bf16.gmra.mxu0 %v3799
    %v3821 = vpop.f32.mrf.mxu0
    %v3822 = vadd.f32 0.0, %v3821
    %v3823 = vpop.f32.mrf.mxu0
    %v3824 = vadd.f32 0.0, %v3823
    %3825 = vdwg.mxu0
    %v3826 = vmul.f32 %v3817, 0.35355338
    %v3827 = vmul.f32 %v3819, 0.35355338
    %v3828 = vmul.f32 %v3822, 0.35355338
    %v3829 = vmul.f32 %v3824, 0.35355338
    %v3830 = vadd.f32 %v3826, %v329
    %v3831 = vadd.f32 %v3827, %v329
    %v3832 = vadd.f32 %v3828, %v329
    %v3833 = vadd.f32 %v3829, %v329
    %v3834 = vsel %vm165, %v3830, -inf
    %3835 = vmax.xlane.f32.xlu0 %v3834
    %v3836 = vpop.xlane.xlu0 %3835
    %v3837 = vsel %vm165, %v3831, -inf
    %3838 = vmax.xlane.f32.xlu0 %v3837
    %v3839 = vpop.xlane.xlu0 %3838
    %v3840 = vsel %vm165, %v3832, -inf
    %3841 = vmax.xlane.f32.xlu0 %v3840
    %v3842 = vpop.xlane.xlu0 %3841
    %v3843 = vsel %vm165, %v3833, -inf
    %3844 = vmax.xlane.f32.xlu0 %v3843
    %v3845 = vpop.xlane.xlu0 %3844
    %v3846 = vsub.f32 %v3830, %v3836
    %v3847 = vsub.f32 %v3831, %v3839
    %v3848 = vsub.f32 %v3832, %v3842
    %v3849 = vsub.f32 %v3833, %v3845
    %v3850 = vmul.f32 %v3846, 1.442695
    %v3851 = vpow.pop %v3850
    %v3852 = vmul.f32 %v3847, 1.442695
    %v3853 = vpow.pop %v3852
    %v3854 = vmul.f32 %v3848, 1.442695
    %v3855 = vpow.pop %v3854
    %v3856 = vmul.f32 %v3849, 1.442695
    %v3857 = vpow.pop %v3856
    %v3858 = vsel %vm165, %v3851, 0.0
    %3859 = vadd.xlane.f32.xlu0 %v3858
    %v3860 = vpop.xlane.xlu0 %3859
    %v3861 = vsel %vm165, %v3853, 0.0
    %3862 = vadd.xlane.f32.xlu0 %v3861
    %v3863 = vpop.xlane.xlu0 %3862
    %v3864 = vsel %vm165, %v3855, 0.0
    %3865 = vadd.xlane.f32.xlu0 %v3864
    %v3866 = vpop.xlane.xlu0 %3865
    %v3867 = vsel %vm165, %v3857, 0.0
    %3868 = vadd.xlane.f32.xlu0 %v3867
    %v3869 = vpop.xlane.xlu0 %3868
    %v3870 = vrcp.pop %v3860
    %v3871 = vrcp.pop %v3863
    %v3872 = vrcp.pop %v3866
    %v3873 = vrcp.pop %v3869
    %v3874 = vmul.f32 %v3851, %v3870
    %v3875 = vmul.f32 %v3853, %v3871
    %v3876 = vmul.f32 %v3855, %v3872
    %v3877 = vmul.f32 %v3857, %v3873
    %v3878 = vpack.c.bf16 %v3875, %v3874
    %v3879 = vpack.c.bf16 %v3877, %v3876
    %3880 = vrot.lane.b32.xlu0 %v3371, 40
    %v3881 = vpop.permute.xlu0 %3880
    %3882 = vrot.lane.b32.xlu0 %v3372, 40
    %v3883 = vpop.permute.xlu0 %3882
    %v3887 = vsel %vm165, %v3878, 0
    %v3890 = vsel %vm165, %v3879, 0
    %3892 = vmatpush.bf16.msra.mxu0 0
    %3893 = vmatpush.bf16.msra.mxu0 0
    %3894 = vmatpush.bf16.msra.mxu0 0
    %3895 = vmatpush.bf16.msra.mxu0 0
    %3896 = vmatpush.bf16.msra.mxu0 0
    %3897 = vmatpush.bf16.msra.mxu0 0
    %3898 = vmatpush.bf16.msra.mxu0 %v3883
    %3899 = vmatpush.bf16.msra.mxu0 %v3881
    %3900 = vmatmul.bf16.gmra.mxu0 %v3887
    %v3901 = vpop.f32.mrf.mxu0
    %v3902 = vadd.f32 0.0, %v3901
    %v3903 = vpop.f32.mrf.mxu0
    %v3904 = vadd.f32 0.0, %v3903
    %3905 = vmatmul.bf16.gmra.mxu0 %v3890
    %v3906 = vpop.f32.mrf.mxu0
    %v3907 = vadd.f32 0.0, %v3906
    %v3908 = vpop.f32.mrf.mxu0
    %v3909 = vadd.f32 0.0, %v3908
    %3910 = vdwg.mxu0
    %3915 = vrot.lane.b32.xlu0 %v3902, 24
    %v3916 = vpop.permute.xlu0 %3915
    %3917 = vrot.lane.b32.xlu0 %v3904, 24
    %v3918 = vpop.permute.xlu0 %3917
    %3919 = vrot.lane.b32.xlu0 %v3907, 24
    %v3920 = vpop.permute.xlu0 %3919
    %3921 = vrot.lane.b32.xlu0 %v3909, 24
    %v3922 = vpop.permute.xlu0 %3921
    %3927 = vst.msk [vmem:[#allocation2 + $0x20] sm:$0xff] %vm1182, %v3916
    %3928 = vst.msk [vmem:[#allocation2 + $0x28] sm:$0xff] %vm1182, %v3918
    %3929 = vst.msk [vmem:[#allocation2 + $0x30] sm:$0xff] %vm1182, %v3920
    %3930 = vst.msk [vmem:[#allocation2 + $0x38] sm:$0xff] %vm1182, %v3922
    %v3931 = vld [vmem:[#allocation2] sm:$0xff]
    %v3932 = vld [vmem:[#allocation2 + $0x8] sm:$0xff]
    %v3933 = vld [vmem:[#allocation2 + $0x10] sm:$0xff]
    %v3934 = vld [vmem:[#allocation2 + $0x18] sm:$0xff]
    %v3935 = vld [vmem:[#allocation2 + $0x20] sm:$0xff]
    %v3936 = vld [vmem:[#allocation2 + $0x28] sm:$0xff]
    %v3937 = vld [vmem:[#allocation2 + $0x30] sm:$0xff]
    %v3938 = vld [vmem:[#allocation2 + $0x38] sm:$0xff]
    %v3939 = vpack.c.bf16 %v3932, %v3931
    %v3940 = vpack.c.bf16 %v3934, %v3933
    %v3941 = vpack.c.bf16 %v3936, %v3935
    %v3942 = vpack.c.bf16 %v3938, %v3937
    %v3944 = vperm.slane %v2530, 0
    %v3950 = vunpack.c.l.b16 %v2525
    %v3951 = vunpack.c.l.b16 %v2526
    %v3952 = vunpack.c.l.b16 %v2527
    %v3953 = vunpack.c.l.b16 %v2528
    %v3954 = vpack.c.b16 %v3951, %v3950
    %v3955 = vpack.c.b16 %v3953, %v3952
    %v3959 = vsel %vm165, %v3939, 0
    %v3962 = vsel %vm165, %v3940, 0
    %v3965 = vsel %vm165, %v3941, 0
    %v3968 = vsel %vm165, %v3942, 0
    %3970 = vmatpush.bf16.msra.mxu0 0
    %3971 = vmatpush.bf16.msra.mxu0 0
    %3972 = vmatpush.bf16.msra.mxu0 0
    %3973 = vmatpush.bf16.msra.mxu0 0
    %3974 = vmatpush.bf16.msra.mxu0 0
    %3975 = vmatpush.bf16.msra.mxu0 0
    %3976 = vmatpush.bf16.msra.mxu0 %v3955
    %3977 = vmatpush.bf16.msra.mxu0 %v3954
    %3978 = vmatmul.bf16.gmra.mxu0 %v3959
    %v3979 = vpop.f32.mrf.mxu0
    %v3980 = vadd.f32 %v3944, %v3979
    %v3981 = vpop.f32.mrf.mxu0
    %v3982 = vadd.f32 %v3944, %v3981
    %3983 = vmatmul.bf16.gmra.mxu0 %v3962
    %v3984 = vpop.f32.mrf.mxu0
    %v3985 = vadd.f32 %v3944, %v3984
    %v3986 = vpop.f32.mrf.mxu0
    %v3987 = vadd.f32 %v3944, %v3986
    %3988 = vmatmul.bf16.gmra.mxu0 %v3965
    %v3989 = vpop.f32.mrf.mxu0
    %v3990 = vadd.f32 %v3944, %v3989
    %v3991 = vpop.f32.mrf.mxu0
    %v3992 = vadd.f32 %v3944, %v3991
    %3993 = vmatmul.bf16.gmra.mxu0 %v3968
    %v3994 = vpop.f32.mrf.mxu0
    %v3995 = vadd.f32 %v3944, %v3994
    %v3996 = vpop.f32.mrf.mxu0
    %v3997 = vadd.f32 %v3944, %v3996
    %3998 = vdwg.mxu0
    %v3999 = vadd.f32 %v2505, %v3980
    %v4000 = vadd.f32 %v2506, %v3982
    %v4001 = vadd.f32 %v2507, %v3985
    %v4002 = vadd.f32 %v2508, %v3987
    %v4003 = vadd.f32 %v2509, %v3990
    %v4004 = vadd.f32 %v2510, %v3992
    %v4005 = vadd.f32 %v2511, %v3995
    %v4006 = vadd.f32 %v2512, %v3997
    %v4007 = vsel %vm165, %v3999, 0.0
    %4008 = vadd.xlane.f32.xlu0 %v4007
    %v4009 = vpop.xlane.xlu0 %4008
    %v4010 = vsel %vm165, %v4000, 0.0
    %4011 = vadd.xlane.f32.xlu0 %v4010
    %v4012 = vpop.xlane.xlu0 %4011
    %v4013 = vsel %vm165, %v4001, 0.0
    %4014 = vadd.xlane.f32.xlu0 %v4013
    %v4015 = vpop.xlane.xlu0 %4014
    %v4016 = vsel %vm165, %v4002, 0.0
    %4017 = vadd.xlane.f32.xlu0 %v4016
    %v4018 = vpop.xlane.xlu0 %4017
    %v4019 = vsel %vm165, %v4003, 0.0
    %4020 = vadd.xlane.f32.xlu0 %v4019
    %v4021 = vpop.xlane.xlu0 %4020
    %v4022 = vsel %vm165, %v4004, 0.0
    %4023 = vadd.xlane.f32.xlu0 %v4022
    %v4024 = vpop.xlane.xlu0 %4023
    %v4025 = vsel %vm165, %v4005, 0.0
    %4026 = vadd.xlane.f32.xlu0 %v4025
    %v4027 = vpop.xlane.xlu0 %4026
    %v4028 = vsel %vm165, %v4006, 0.0
    %4029 = vadd.xlane.f32.xlu0 %v4028
    %v4030 = vpop.xlane.xlu0 %4029
    %v4031 = vmul.f32 %v4009, %v388
    %v4032 = vmul.f32 %v4012, %v388
    %v4033 = vmul.f32 %v4015, %v388
    %v4034 = vmul.f32 %v4018, %v388
    %v4035 = vmul.f32 %v4021, %v388
    %v4036 = vmul.f32 %v4024, %v388
    %v4037 = vmul.f32 %v4027, %v388
    %v4038 = vmul.f32 %v4030, %v388
    %v4039 = vsub.f32 %v3999, %v4031
    %v4040 = vsub.f32 %v4000, %v4032
    %v4041 = vsub.f32 %v4001, %v4033
    %v4042 = vsub.f32 %v4002, %v4034
    %v4043 = vsub.f32 %v4003, %v4035
    %v4044 = vsub.f32 %v4004, %v4036
    %v4045 = vsub.f32 %v4005, %v4037
    %v4046 = vsub.f32 %v4006, %v4038
    %v4047 = vmul.f32 %v4039, %v4039
    %v4048 = vmul.f32 %v4040, %v4040
    %v4049 = vmul.f32 %v4041, %v4041
    %v4050 = vmul.f32 %v4042, %v4042
    %v4051 = vmul.f32 %v4043, %v4043
    %v4052 = vmul.f32 %v4044, %v4044
    %v4053 = vmul.f32 %v4045, %v4045
    %v4054 = vmul.f32 %v4046, %v4046
    %v4055 = vsel %vm165, %v4047, 0.0
    %4056 = vadd.xlane.f32.xlu0 %v4055
    %v4057 = vpop.xlane.xlu0 %4056
    %v4058 = vsel %vm165, %v4048, 0.0
    %4059 = vadd.xlane.f32.xlu0 %v4058
    %v4060 = vpop.xlane.xlu0 %4059
    %v4061 = vsel %vm165, %v4049, 0.0
    %4062 = vadd.xlane.f32.xlu0 %v4061
    %v4063 = vpop.xlane.xlu0 %4062
    %v4064 = vsel %vm165, %v4050, 0.0
    %4065 = vadd.xlane.f32.xlu0 %v4064
    %v4066 = vpop.xlane.xlu0 %4065
    %v4067 = vsel %vm165, %v4051, 0.0
    %4068 = vadd.xlane.f32.xlu0 %v4067
    %v4069 = vpop.xlane.xlu0 %4068
    %v4070 = vsel %vm165, %v4052, 0.0
    %4071 = vadd.xlane.f32.xlu0 %v4070
    %v4072 = vpop.xlane.xlu0 %4071
    %v4073 = vsel %vm165, %v4053, 0.0
    %4074 = vadd.xlane.f32.xlu0 %v4073
    %v4075 = vpop.xlane.xlu0 %4074
    %v4076 = vsel %vm165, %v4054, 0.0
    %4077 = vadd.xlane.f32.xlu0 %v4076
    %v4078 = vpop.xlane.xlu0 %4077
    %v4079 = vmul.f32 %v4057, %v388
    %v4080 = vmul.f32 %v4060, %v388
    %v4081 = vmul.f32 %v4063, %v388
    %v4082 = vmul.f32 %v4066, %v388
    %v4083 = vmul.f32 %v4069, %v388
    %v4084 = vmul.f32 %v4072, %v388
    %v4085 = vmul.f32 %v4075, %v388
    %v4086 = vmul.f32 %v4078, %v388
    %v4087 = vadd.f32 %v4079, 1e-06
    %v4088 = vadd.f32 %v4080, 1e-06
    %v4089 = vadd.f32 %v4081, 1e-06
    %v4090 = vadd.f32 %v4082, 1e-06
    %v4091 = vadd.f32 %v4083, 1e-06
    %v4092 = vadd.f32 %v4084, 1e-06
    %v4093 = vadd.f32 %v4085, 1e-06
    %v4094 = vadd.f32 %v4086, 1e-06
    %v4095 = vrsqrt.pop %v4087
    %v4096 = vmul.f32 %v4095, %v4087
    %v4097 = vmul.f32 %v4096, %v4095
    %v4098 = vmul.f32 0.5, %v4097
    %v4099 = vsub.f32 1.5, %v4098
    %v4100 = vmul.f32 %v4095, %v4099
    %vm4101 = vweird.f32 %v4087
    %vm4102 = vweird.f32 %v4095
    %vm4103 = vmor %vm4101, %vm4102
    %v4104 = vsel %vm4103, %v4095, %v4100
    %v4105 = vrsqrt.pop %v4088
    %v4106 = vmul.f32 %v4105, %v4088
    %v4107 = vmul.f32 %v4106, %v4105
    %v4108 = vmul.f32 0.5, %v4107
    %v4109 = vsub.f32 1.5, %v4108
    %v4110 = vmul.f32 %v4105, %v4109
    %vm4111 = vweird.f32 %v4088
    %vm4112 = vweird.f32 %v4105
    %vm4113 = vmor %vm4111, %vm4112
    %v4114 = vsel %vm4113, %v4105, %v4110
    %v4115 = vrsqrt.pop %v4089
    %v4116 = vmul.f32 %v4115, %v4089
    %v4117 = vmul.f32 %v4116, %v4115
    %v4118 = vmul.f32 0.5, %v4117
    %v4119 = vsub.f32 1.5, %v4118
    %v4120 = vmul.f32 %v4115, %v4119
    %vm4121 = vweird.f32 %v4089
    %vm4122 = vweird.f32 %v4115
    %vm4123 = vmor %vm4121, %vm4122
    %v4124 = vsel %vm4123, %v4115, %v4120
    %v4125 = vrsqrt.pop %v4090
    %v4126 = vmul.f32 %v4125, %v4090
    %v4127 = vmul.f32 %v4126, %v4125
    %v4128 = vmul.f32 0.5, %v4127
    %v4129 = vsub.f32 1.5, %v4128
    %v4130 = vmul.f32 %v4125, %v4129
    %vm4131 = vweird.f32 %v4090
    %vm4132 = vweird.f32 %v4125
    %vm4133 = vmor %vm4131, %vm4132
    %v4134 = vsel %vm4133, %v4125, %v4130
    %v4135 = vrsqrt.pop %v4091
    %v4136 = vmul.f32 %v4135, %v4091
    %v4137 = vmul.f32 %v4136, %v4135
    %v4138 = vmul.f32 0.5, %v4137
    %v4139 = vsub.f32 1.5, %v4138
    %v4140 = vmul.f32 %v4135, %v4139
    %vm4141 = vweird.f32 %v4091
    %vm4142 = vweird.f32 %v4135
    %vm4143 = vmor %vm4141, %vm4142
    %v4144 = vsel %vm4143, %v4135, %v4140
    %v4145 = vrsqrt.pop %v4092
    %v4146 = vmul.f32 %v4145, %v4092
    %v4147 = vmul.f32 %v4146, %v4145
    %v4148 = vmul.f32 0.5, %v4147
    %v4149 = vsub.f32 1.5, %v4148
    %v4150 = vmul.f32 %v4145, %v4149
    %vm4151 = vweird.f32 %v4092
    %vm4152 = vweird.f32 %v4145
    %vm4153 = vmor %vm4151, %vm4152
    %v4154 = vsel %vm4153, %v4145, %v4150
    %v4155 = vrsqrt.pop %v4093
    %v4156 = vmul.f32 %v4155, %v4093
    %v4157 = vmul.f32 %v4156, %v4155
    %v4158 = vmul.f32 0.5, %v4157
    %v4159 = vsub.f32 1.5, %v4158
    %v4160 = vmul.f32 %v4155, %v4159
    %vm4161 = vweird.f32 %v4093
    %vm4162 = vweird.f32 %v4155
    %vm4163 = vmor %vm4161, %vm4162
    %v4164 = vsel %vm4163, %v4155, %v4160
    %v4165 = vrsqrt.pop %v4094
    %v4166 = vmul.f32 %v4165, %v4094
    %v4167 = vmul.f32 %v4166, %v4165
    %v4168 = vmul.f32 0.5, %v4167
    %v4169 = vsub.f32 1.5, %v4168
    %v4170 = vmul.f32 %v4165, %v4169
    %vm4171 = vweird.f32 %v4094
    %vm4172 = vweird.f32 %v4165
    %vm4173 = vmor %vm4171, %vm4172
    %v4174 = vsel %vm4173, %v4165, %v4170
    %v4175 = vmul.f32 %v4039, %v4104
    %v4176 = vmul.f32 %v4040, %v4114
    %v4177 = vmul.f32 %v4041, %v4124
    %v4178 = vmul.f32 %v4042, %v4134
    %v4179 = vmul.f32 %v4043, %v4144
    %v4180 = vmul.f32 %v4044, %v4154
    %v4181 = vmul.f32 %v4045, %v4164
    %v4182 = vmul.f32 %v4046, %v4174
    %v4184 = vperm.slane %v2532, 0
    %v4186 = vmul.f32 %v4175, %v4184
    %v4187 = vmul.f32 %v4176, %v4184
    %v4188 = vmul.f32 %v4177, %v4184
    %v4189 = vmul.f32 %v4178, %v4184
    %v4190 = vmul.f32 %v4179, %v4184
    %v4191 = vmul.f32 %v4180, %v4184
    %v4192 = vmul.f32 %v4181, %v4184
    %v4193 = vmul.f32 %v4182, %v4184
    %v4195 = vperm.slane %v2534, 0
    %v4197 = vadd.f32 %v4186, %v4195
    %v4198 = vadd.f32 %v4187, %v4195
    %v4199 = vadd.f32 %v4188, %v4195
    %v4200 = vadd.f32 %v4189, %v4195
    %v4201 = vadd.f32 %v4190, %v4195
    %v4202 = vadd.f32 %v4191, %v4195
    %v4203 = vadd.f32 %v4192, %v4195
    %v4204 = vadd.f32 %v4193, %v4195
    %v4205 = vpack.c.bf16 %v4198, %v4197
    %v4206 = vpack.c.bf16 %v4200, %v4199
    %v4207 = vpack.c.bf16 %v4202, %v4201
    %v4208 = vpack.c.bf16 %v4204, %v4203
    %v4210 = vperm.slane %v2541, 0
    %v4216 = vunpack.c.l.b16 %v2536
    %v4217 = vunpack.c.l.b16 %v2537
    %v4218 = vunpack.c.l.b16 %v2538
    %v4219 = vunpack.c.l.b16 %v2539
    %v4220 = vpack.c.b16 %v4217, %v4216
    %v4221 = vpack.c.b16 %v4219, %v4218
    %v4225 = vsel %vm165, %v4205, 0
    %v4228 = vsel %vm165, %v4206, 0
    %v4231 = vsel %vm165, %v4207, 0
    %v4234 = vsel %vm165, %v4208, 0
    %4236 = vmatpush.bf16.msra.mxu0 0
    %4237 = vmatpush.bf16.msra.mxu0 0
    %4238 = vmatpush.bf16.msra.mxu0 0
    %4239 = vmatpush.bf16.msra.mxu0 0
    %4240 = vmatpush.bf16.msra.mxu0 0
    %4241 = vmatpush.bf16.msra.mxu0 0
    %4242 = vmatpush.bf16.msra.mxu0 %v4221
    %4243 = vmatpush.bf16.msra.mxu0 %v4220
    %4244 = vmatmul.bf16.gmra.mxu0 %v4225
    %v4245 = vpop.f32.mrf.mxu0
    %v4246 = vadd.f32 %v4210, %v4245
    %v4247 = vpop.f32.mrf.mxu0
    %v4248 = vadd.f32 %v4210, %v4247
    %4249 = vmatmul.bf16.gmra.mxu0 %v4228
    %v4250 = vpop.f32.mrf.mxu0
    %v4251 = vadd.f32 %v4210, %v4250
    %v4252 = vpop.f32.mrf.mxu0
    %v4253 = vadd.f32 %v4210, %v4252
    %4254 = vmatmul.bf16.gmra.mxu0 %v4231
    %v4255 = vpop.f32.mrf.mxu0
    %v4256 = vadd.f32 %v4210, %v4255
    %v4257 = vpop.f32.mrf.mxu0
    %v4258 = vadd.f32 %v4210, %v4257
    %4259 = vmatmul.bf16.gmra.mxu0 %v4234
    %v4260 = vpop.f32.mrf.mxu0
    %v4261 = vadd.f32 %v4210, %v4260
    %v4262 = vpop.f32.mrf.mxu0
    %v4263 = vadd.f32 %v4210, %v4262
    %4264 = vdwg.mxu0
    %v4265 = vmul.f32 %v4246, 0.5
    %v4266 = vmul.f32 %v4248, 0.5
    %v4267 = vmul.f32 %v4251, 0.5
    %v4268 = vmul.f32 %v4253, 0.5
    %v4269 = vmul.f32 %v4256, 0.5
    %v4270 = vmul.f32 %v4258, 0.5
    %v4271 = vmul.f32 %v4261, 0.5
    %v4272 = vmul.f32 %v4263, 0.5
    %v4273 = vmul.f32 %v4246, 0.70710677
    %v4274 = vmul.f32 %v4248, 0.70710677
    %v4275 = vmul.f32 %v4251, 0.70710677
    %v4276 = vmul.f32 %v4253, 0.70710677
    %v4277 = vmul.f32 %v4256, 0.70710677
    %v4278 = vmul.f32 %v4258, 0.70710677
    %v4279 = vmul.f32 %v4261, 0.70710677
    %v4280 = vmul.f32 %v4263, 0.70710677
    %v4281 = vmul.f32 %v4273, %v4273
    %v4282 = vmin.f32 16.0, %v4281
    %v4283 = vmul.f32 %v4282, 2.1237322e-06
    %v4284 = vadd.f32 %v4283, 0.00028619796
    %v4285 = vmul.f32 %v4282, %v4284
    %v4286 = vadd.f32 %v4285, 0.0036580483
    %v4287 = vmul.f32 %v4282, %v4286
    %v4288 = vadd.f32 %v4287, 0.05243302
    %v4289 = vmul.f32 %v4282, %v4288
    %v4290 = vadd.f32 %v4289, 0.18741608
    %v4291 = vmul.f32 %v4282, %v4290
    %v4292 = vadd.f32 %v4291, 1.1283791
    %v4293 = vmul.f32 %v4273, %v4292
    %v4294 = vmul.f32 %v4282, 3.8918573e-05
    %v4295 = vadd.f32 %v4294, 0.001143296
    %v4296 = vmul.f32 %v4282, %v4295
    %v4297 = vadd.f32 %v4296, 0.014752088
    %v4298 = vmul.f32 %v4282, %v4297
    %v4299 = vadd.f32 %v4298, 0.112945676
    %v4300 = vmul.f32 %v4282, %v4299
    %v4301 = vadd.f32 %v4300, 0.4994258
    %v4302 = vmul.f32 %v4282, %v4301
    %v4303 = vadd.f32 %v4302, 1.0
    %v4304 = vrcp.pop %v4303
    %v4305 = vmul.f32 %v4303, %v4304
    %v4306 = vsub.f32 1.0, %v4305
    %v4307 = vmul.f32 %v4304, %v4306
    %v4308 = vadd.f32 %v4304, %v4307
    %vm4309 = vweird.f32 %v4303
    %vm4310 = vweird.f32 %v4304
    %vm4311 = vmor %vm4309, %vm4310
    %v4312 = vsel %vm4311, %v4304, %v4308
    %v4313 = vand.u32 2147483647, %v4303
    %vm4314 = vcmp.eq.f32.partialorder %v4313, 8.507059e+37
    %v4315 = vand.u32 %v4303, 2147483648
    %v4316 = vor.u32 1.1754944e-38, %v4315
    %v4317 = vsel %vm4314, %v4316, %v4312
    %v4318 = vmul.f32 %v4293, %v4317
    %v4319 = vmin.f32 %v4318, 1.0
    %v4320 = vmax.f32 %v4319, -1.0
    %v4321 = vmul.f32 %v4274, %v4274
    %v4322 = vmin.f32 16.0, %v4321
    %v4323 = vmul.f32 %v4322, 2.1237322e-06
    %v4324 = vadd.f32 %v4323, 0.00028619796
    %v4325 = vmul.f32 %v4322, %v4324
    %v4326 = vadd.f32 %v4325, 0.0036580483
    %v4327 = vmul.f32 %v4322, %v4326
    %v4328 = vadd.f32 %v4327, 0.05243302
    %v4329 = vmul.f32 %v4322, %v4328
    %v4330 = vadd.f32 %v4329, 0.18741608
    %v4331 = vmul.f32 %v4322, %v4330
    %v4332 = vadd.f32 %v4331, 1.1283791
    %v4333 = vmul.f32 %v4274, %v4332
    %v4334 = vmul.f32 %v4322, 3.8918573e-05
    %v4335 = vadd.f32 %v4334, 0.001143296
    %v4336 = vmul.f32 %v4322, %v4335
    %v4337 = vadd.f32 %v4336, 0.014752088
    %v4338 = vmul.f32 %v4322, %v4337
    %v4339 = vadd.f32 %v4338, 0.112945676
    %v4340 = vmul.f32 %v4322, %v4339
    %v4341 = vadd.f32 %v4340, 0.4994258
    %v4342 = vmul.f32 %v4322, %v4341
    %v4343 = vadd.f32 %v4342, 1.0
    %v4344 = vrcp.pop %v4343
    %v4345 = vmul.f32 %v4343, %v4344
    %v4346 = vsub.f32 1.0, %v4345
    %v4347 = vmul.f32 %v4344, %v4346
    %v4348 = vadd.f32 %v4344, %v4347
    %vm4349 = vweird.f32 %v4343
    %vm4350 = vweird.f32 %v4344
    %vm4351 = vmor %vm4349, %vm4350
    %v4352 = vsel %vm4351, %v4344, %v4348
    %v4353 = vand.u32 2147483647, %v4343
    %vm4354 = vcmp.eq.f32.partialorder %v4353, 8.507059e+37
    %v4355 = vand.u32 %v4343, 2147483648
    %v4356 = vor.u32 1.1754944e-38, %v4355
    %v4357 = vsel %vm4354, %v4356, %v4352
    %v4358 = vmul.f32 %v4333, %v4357
    %v4359 = vmin.f32 %v4358, 1.0
    %v4360 = vmax.f32 %v4359, -1.0
    %v4361 = vmul.f32 %v4275, %v4275
    %v4362 = vmin.f32 16.0, %v4361
    %v4363 = vmul.f32 %v4362, 2.1237322e-06
    %v4364 = vadd.f32 %v4363, 0.00028619796
    %v4365 = vmul.f32 %v4362, %v4364
    %v4366 = vadd.f32 %v4365, 0.0036580483
    %v4367 = vmul.f32 %v4362, %v4366
    %v4368 = vadd.f32 %v4367, 0.05243302
    %v4369 = vmul.f32 %v4362, %v4368
    %v4370 = vadd.f32 %v4369, 0.18741608
    %v4371 = vmul.f32 %v4362, %v4370
    %v4372 = vadd.f32 %v4371, 1.1283791
    %v4373 = vmul.f32 %v4275, %v4372
    %v4374 = vmul.f32 %v4362, 3.8918573e-05
    %v4375 = vadd.f32 %v4374, 0.001143296
    %v4376 = vmul.f32 %v4362, %v4375
    %v4377 = vadd.f32 %v4376, 0.014752088
    %v4378 = vmul.f32 %v4362, %v4377
    %v4379 = vadd.f32 %v4378, 0.112945676
    %v4380 = vmul.f32 %v4362, %v4379
    %v4381 = vadd.f32 %v4380, 0.4994258
    %v4382 = vmul.f32 %v4362, %v4381
    %v4383 = vadd.f32 %v4382, 1.0
    %v4384 = vrcp.pop %v4383
    %v4385 = vmul.f32 %v4383, %v4384
    %v4386 = vsub.f32 1.0, %v4385
    %v4387 = vmul.f32 %v4384, %v4386
    %v4388 = vadd.f32 %v4384, %v4387
    %vm4389 = vweird.f32 %v4383
    %vm4390 = vweird.f32 %v4384
    %vm4391 = vmor %vm4389, %vm4390
    %v4392 = vsel %vm4391, %v4384, %v4388
    %v4393 = vand.u32 2147483647, %v4383
    %vm4394 = vcmp.eq.f32.partialorder %v4393, 8.507059e+37
    %v4395 = vand.u32 %v4383, 2147483648
    %v4396 = vor.u32 1.1754944e-38, %v4395
    %v4397 = vsel %vm4394, %v4396, %v4392
    %v4398 = vmul.f32 %v4373, %v4397
    %v4399 = vmin.f32 %v4398, 1.0
    %v4400 = vmax.f32 %v4399, -1.0
    %v4401 = vmul.f32 %v4276, %v4276
    %v4402 = vmin.f32 16.0, %v4401
    %v4403 = vmul.f32 %v4402, 2.1237322e-06
    %v4404 = vadd.f32 %v4403, 0.00028619796
    %v4405 = vmul.f32 %v4402, %v4404
    %v4406 = vadd.f32 %v4405, 0.0036580483
    %v4407 = vmul.f32 %v4402, %v4406
    %v4408 = vadd.f32 %v4407, 0.05243302
    %v4409 = vmul.f32 %v4402, %v4408
    %v4410 = vadd.f32 %v4409, 0.18741608
    %v4411 = vmul.f32 %v4402, %v4410
    %v4412 = vadd.f32 %v4411, 1.1283791
    %v4413 = vmul.f32 %v4276, %v4412
    %v4414 = vmul.f32 %v4402, 3.8918573e-05
    %v4415 = vadd.f32 %v4414, 0.001143296
    %v4416 = vmul.f32 %v4402, %v4415
    %v4417 = vadd.f32 %v4416, 0.014752088
    %v4418 = vmul.f32 %v4402, %v4417
    %v4419 = vadd.f32 %v4418, 0.112945676
    %v4420 = vmul.f32 %v4402, %v4419
    %v4421 = vadd.f32 %v4420, 0.4994258
    %v4422 = vmul.f32 %v4402, %v4421
    %v4423 = vadd.f32 %v4422, 1.0
    %v4424 = vrcp.pop %v4423
    %v4425 = vmul.f32 %v4423, %v4424
    %v4426 = vsub.f32 1.0, %v4425
    %v4427 = vmul.f32 %v4424, %v4426
    %v4428 = vadd.f32 %v4424, %v4427
    %vm4429 = vweird.f32 %v4423
    %vm4430 = vweird.f32 %v4424
    %vm4431 = vmor %vm4429, %vm4430
    %v4432 = vsel %vm4431, %v4424, %v4428
    %v4433 = vand.u32 2147483647, %v4423
    %vm4434 = vcmp.eq.f32.partialorder %v4433, 8.507059e+37
    %v4435 = vand.u32 %v4423, 2147483648
    %v4436 = vor.u32 1.1754944e-38, %v4435
    %v4437 = vsel %vm4434, %v4436, %v4432
    %v4438 = vmul.f32 %v4413, %v4437
    %v4439 = vmin.f32 %v4438, 1.0
    %v4440 = vmax.f32 %v4439, -1.0
    %v4441 = vmul.f32 %v4277, %v4277
    %v4442 = vmin.f32 16.0, %v4441
    %v4443 = vmul.f32 %v4442, 2.1237322e-06
    %v4444 = vadd.f32 %v4443, 0.00028619796
    %v4445 = vmul.f32 %v4442, %v4444
    %v4446 = vadd.f32 %v4445, 0.0036580483
    %v4447 = vmul.f32 %v4442, %v4446
    %v4448 = vadd.f32 %v4447, 0.05243302
    %v4449 = vmul.f32 %v4442, %v4448
    %v4450 = vadd.f32 %v4449, 0.18741608
    %v4451 = vmul.f32 %v4442, %v4450
    %v4452 = vadd.f32 %v4451, 1.1283791
    %v4453 = vmul.f32 %v4277, %v4452
    %v4454 = vmul.f32 %v4442, 3.8918573e-05
    %v4455 = vadd.f32 %v4454, 0.001143296
    %v4456 = vmul.f32 %v4442, %v4455
    %v4457 = vadd.f32 %v4456, 0.014752088
    %v4458 = vmul.f32 %v4442, %v4457
    %v4459 = vadd.f32 %v4458, 0.112945676
    %v4460 = vmul.f32 %v4442, %v4459
    %v4461 = vadd.f32 %v4460, 0.4994258
    %v4462 = vmul.f32 %v4442, %v4461
    %v4463 = vadd.f32 %v4462, 1.0
    %v4464 = vrcp.pop %v4463
    %v4465 = vmul.f32 %v4463, %v4464
    %v4466 = vsub.f32 1.0, %v4465
    %v4467 = vmul.f32 %v4464, %v4466
    %v4468 = vadd.f32 %v4464, %v4467
    %vm4469 = vweird.f32 %v4463
    %vm4470 = vweird.f32 %v4464
    %vm4471 = vmor %vm4469, %vm4470
    %v4472 = vsel %vm4471, %v4464, %v4468
    %v4473 = vand.u32 2147483647, %v4463
    %vm4474 = vcmp.eq.f32.partialorder %v4473, 8.507059e+37
    %v4475 = vand.u32 %v4463, 2147483648
    %v4476 = vor.u32 1.1754944e-38, %v4475
    %v4477 = vsel %vm4474, %v4476, %v4472
    %v4478 = vmul.f32 %v4453, %v4477
    %v4479 = vmin.f32 %v4478, 1.0
    %v4480 = vmax.f32 %v4479, -1.0
    %v4481 = vmul.f32 %v4278, %v4278
    %v4482 = vmin.f32 16.0, %v4481
    %v4483 = vmul.f32 %v4482, 2.1237322e-06
    %v4484 = vadd.f32 %v4483, 0.00028619796
    %v4485 = vmul.f32 %v4482, %v4484
    %v4486 = vadd.f32 %v4485, 0.0036580483
    %v4487 = vmul.f32 %v4482, %v4486
    %v4488 = vadd.f32 %v4487, 0.05243302
    %v4489 = vmul.f32 %v4482, %v4488
    %v4490 = vadd.f32 %v4489, 0.18741608
    %v4491 = vmul.f32 %v4482, %v4490
    %v4492 = vadd.f32 %v4491, 1.1283791
    %v4493 = vmul.f32 %v4278, %v4492
    %v4494 = vmul.f32 %v4482, 3.8918573e-05
    %v4495 = vadd.f32 %v4494, 0.001143296
    %v4496 = vmul.f32 %v4482, %v4495
    %v4497 = vadd.f32 %v4496, 0.014752088
    %v4498 = vmul.f32 %v4482, %v4497
    %v4499 = vadd.f32 %v4498, 0.112945676
    %v4500 = vmul.f32 %v4482, %v4499
    %v4501 = vadd.f32 %v4500, 0.4994258
    %v4502 = vmul.f32 %v4482, %v4501
    %v4503 = vadd.f32 %v4502, 1.0
    %v4504 = vrcp.pop %v4503
    %v4505 = vmul.f32 %v4503, %v4504
    %v4506 = vsub.f32 1.0, %v4505
    %v4507 = vmul.f32 %v4504, %v4506
    %v4508 = vadd.f32 %v4504, %v4507
    %vm4509 = vweird.f32 %v4503
    %vm4510 = vweird.f32 %v4504
    %vm4511 = vmor %vm4509, %vm4510
    %v4512 = vsel %vm4511, %v4504, %v4508
    %v4513 = vand.u32 2147483647, %v4503
    %vm4514 = vcmp.eq.f32.partialorder %v4513, 8.507059e+37
    %v4515 = vand.u32 %v4503, 2147483648
    %v4516 = vor.u32 1.1754944e-38, %v4515
    %v4517 = vsel %vm4514, %v4516, %v4512
    %v4518 = vmul.f32 %v4493, %v4517
    %v4519 = vmin.f32 %v4518, 1.0
    %v4520 = vmax.f32 %v4519, -1.0
    %v4521 = vmul.f32 %v4279, %v4279
    %v4522 = vmin.f32 16.0, %v4521
    %v4523 = vmul.f32 %v4522, 2.1237322e-06
    %v4524 = vadd.f32 %v4523, 0.00028619796
    %v4525 = vmul.f32 %v4522, %v4524
    %v4526 = vadd.f32 %v4525, 0.0036580483
    %v4527 = vmul.f32 %v4522, %v4526
    %v4528 = vadd.f32 %v4527, 0.05243302
    %v4529 = vmul.f32 %v4522, %v4528
    %v4530 = vadd.f32 %v4529, 0.18741608
    %v4531 = vmul.f32 %v4522, %v4530
    %v4532 = vadd.f32 %v4531, 1.1283791
    %v4533 = vmul.f32 %v4279, %v4532
    %v4534 = vmul.f32 %v4522, 3.8918573e-05
    %v4535 = vadd.f32 %v4534, 0.001143296
    %v4536 = vmul.f32 %v4522, %v4535
    %v4537 = vadd.f32 %v4536, 0.014752088
    %v4538 = vmul.f32 %v4522, %v4537
    %v4539 = vadd.f32 %v4538, 0.112945676
    %v4540 = vmul.f32 %v4522, %v4539
    %v4541 = vadd.f32 %v4540, 0.4994258
    %v4542 = vmul.f32 %v4522, %v4541
    %v4543 = vadd.f32 %v4542, 1.0
    %v4544 = vrcp.pop %v4543
    %v4545 = vmul.f32 %v4543, %v4544
    %v4546 = vsub.f32 1.0, %v4545
    %v4547 = vmul.f32 %v4544, %v4546
    %v4548 = vadd.f32 %v4544, %v4547
    %vm4549 = vweird.f32 %v4543
    %vm4550 = vweird.f32 %v4544
    %vm4551 = vmor %vm4549, %vm4550
    %v4552 = vsel %vm4551, %v4544, %v4548
    %v4553 = vand.u32 2147483647, %v4543
    %vm4554 = vcmp.eq.f32.partialorder %v4553, 8.507059e+37
    %v4555 = vand.u32 %v4543, 2147483648
    %v4556 = vor.u32 1.1754944e-38, %v4555
    %v4557 = vsel %vm4554, %v4556, %v4552
    %v4558 = vmul.f32 %v4533, %v4557
    %v4559 = vmin.f32 %v4558, 1.0
    %v4560 = vmax.f32 %v4559, -1.0
    %v4561 = vmul.f32 %v4280, %v4280
    %v4562 = vmin.f32 16.0, %v4561
    %v4563 = vmul.f32 %v4562, 2.1237322e-06
    %v4564 = vadd.f32 %v4563, 0.00028619796
    %v4565 = vmul.f32 %v4562, %v4564
    %v4566 = vadd.f32 %v4565, 0.0036580483
    %v4567 = vmul.f32 %v4562, %v4566
    %v4568 = vadd.f32 %v4567, 0.05243302
    %v4569 = vmul.f32 %v4562, %v4568
    %v4570 = vadd.f32 %v4569, 0.18741608
    %v4571 = vmul.f32 %v4562, %v4570
    %v4572 = vadd.f32 %v4571, 1.1283791
    %v4573 = vmul.f32 %v4280, %v4572
    %v4574 = vmul.f32 %v4562, 3.8918573e-05
    %v4575 = vadd.f32 %v4574, 0.001143296
    %v4576 = vmul.f32 %v4562, %v4575
    %v4577 = vadd.f32 %v4576, 0.014752088
    %v4578 = vmul.f32 %v4562, %v4577
    %v4579 = vadd.f32 %v4578, 0.112945676
    %v4580 = vmul.f32 %v4562, %v4579
    %v4581 = vadd.f32 %v4580, 0.4994258
    %v4582 = vmul.f32 %v4562, %v4581
    %v4583 = vadd.f32 %v4582, 1.0
    %v4584 = vrcp.pop %v4583
    %v4585 = vmul.f32 %v4583, %v4584
    %v4586 = vsub.f32 1.0, %v4585
    %v4587 = vmul.f32 %v4584, %v4586
    %v4588 = vadd.f32 %v4584, %v4587
    %vm4589 = vweird.f32 %v4583
    %vm4590 = vweird.f32 %v4584
    %vm4591 = vmor %vm4589, %vm4590
    %v4592 = vsel %vm4591, %v4584, %v4588
    %v4593 = vand.u32 2147483647, %v4583
    %vm4594 = vcmp.eq.f32.partialorder %v4593, 8.507059e+37
    %v4595 = vand.u32 %v4583, 2147483648
    %v4596 = vor.u32 1.1754944e-38, %v4595
    %v4597 = vsel %vm4594, %v4596, %v4592
    %v4598 = vmul.f32 %v4573, %v4597
    %v4599 = vmin.f32 %v4598, 1.0
    %v4600 = vmax.f32 %v4599, -1.0
    %v4601 = vadd.f32 %v4320, 1.0
    %v4602 = vadd.f32 %v4360, 1.0
    %v4603 = vadd.f32 %v4400, 1.0
    %v4604 = vadd.f32 %v4440, 1.0
    %v4605 = vadd.f32 %v4480, 1.0
    %v4606 = vadd.f32 %v4520, 1.0
    %v4607 = vadd.f32 %v4560, 1.0
    %v4608 = vadd.f32 %v4600, 1.0
    %v4609 = vmul.f32 %v4265, %v4601
    %v4610 = vmul.f32 %v4266, %v4602
    %v4611 = vmul.f32 %v4267, %v4603
    %v4612 = vmul.f32 %v4268, %v4604
    %v4613 = vmul.f32 %v4269, %v4605
    %v4614 = vmul.f32 %v4270, %v4606
    %v4615 = vmul.f32 %v4271, %v4607
    %v4616 = vmul.f32 %v4272, %v4608
    %v4617 = vpack.c.bf16 %v4610, %v4609
    %v4618 = vpack.c.bf16 %v4612, %v4611
    %v4619 = vpack.c.bf16 %v4614, %v4613
    %v4620 = vpack.c.bf16 %v4616, %v4615
    %v4622 = vperm.slane %v2552, 0
    %v4632 = vunpack.c.l.b16 %v2543
    %v4633 = vunpack.c.l.b16 %v2544
    %v4634 = vunpack.c.l.b16 %v2545
    %v4635 = vunpack.c.l.b16 %v2546
    %v4636 = vunpack.c.l.b16 %v2547
    %v4637 = vunpack.c.l.b16 %v2548
    %v4638 = vunpack.c.l.b16 %v2549
    %v4639 = vunpack.c.l.b16 %v2550
    %v4640 = vpack.c.b16 %v4633, %v4632
    %v4641 = vpack.c.b16 %v4635, %v4634
    %v4642 = vpack.c.b16 %v4637, %v4636
    %v4643 = vpack.c.b16 %v4639, %v4638
    %v4649 = vsel %vm127, %v4617, 0
    %v4652 = vsel %vm127, %v4618, 0
    %v4655 = vsel %vm127, %v4619, 0
    %v4658 = vsel %vm127, %v4620, 0
    %4660 = vmatpush.bf16.msra.mxu0 0
    %4661 = vmatpush.bf16.msra.mxu0 0
    %4662 = vmatpush.bf16.msra.mxu0 0
    %4663 = vmatpush.bf16.msra.mxu0 0
    %4664 = vmatpush.bf16.msra.mxu0 %v4643
    %4665 = vmatpush.bf16.msra.mxu0 %v4642
    %4666 = vmatpush.bf16.msra.mxu0 %v4641
    %4667 = vmatpush.bf16.msra.mxu0 %v4640
    %4668 = vmatmul.bf16.gmra.mxu0 %v4649
    %v4669 = vpop.f32.mrf.mxu0
    %v4670 = vadd.f32 %v4622, %v4669
    %v4671 = vpop.f32.mrf.mxu0
    %4672 = vmatmul.bf16.gmra.mxu0 %v4652
    %v4673 = vpop.f32.mrf.mxu0
    %v4674 = vpop.f32.mrf.mxu0
    %4675 = vmatmul.bf16.gmra.mxu0 %v4655
    %v4676 = vpop.f32.mrf.mxu0
    %v4677 = vadd.f32 %v4622, %v4676
    %v4678 = vpop.f32.mrf.mxu0
    %4679 = vmatmul.bf16.gmra.mxu0 %v4658
    %v4680 = vpop.f32.mrf.mxu0
    %v4681 = vpop.f32.mrf.mxu0
    %4682 = vdwg.mxu0
    %v4683 = vadd.f32 %v3999, %v4670
    %v4684 = vadd.f32 %v4003, %v4677
    %v4685 = vld [vmem:[%s22] sm:$0x1]
    %v4686 = vld [vmem:[%s23] sm:$0x1]
    %v4687 = vld [vmem:[%s24] sm:$0xf]
    %v4688 = vld [vmem:[%s24 + $0x4] sm:$0xf]
    %v4689 = vld [vmem:[%s24 + $0x8] sm:$0xf]
    %v4690 = vld [vmem:[%s24 + $0xc] sm:$0xf]
    %v4691 = vld [vmem:[%s25] sm:$0x1]
    %v4692 = vsel %vm241, %v4683, 0.0
    %4693 = vadd.xlane.f32.xlu0 %v4692
    %v4694 = vpop.xlane.xlu0 %4693
    %v4695 = vmul.f32 %v4694, %v388
    %v4696 = vsub.f32 %v4683, %v4695
    %v4697 = vmul.f32 %v4696, %v4696
    %v4698 = vsel %vm241, %v4697, 0.0
    %4699 = vadd.xlane.f32.xlu0 %v4698
    %v4700 = vpop.xlane.xlu0 %4699
    %v4701 = vmul.f32 %v4700, %v388
    %v4702 = vadd.f32 %v4701, 1e-06
    %v4703 = vrsqrt.pop %v4702
    %v4704 = vmul.f32 %v4703, %v4702
    %v4705 = vmul.f32 %v4704, %v4703
    %v4706 = vmul.f32 0.5, %v4705
    %v4707 = vsub.f32 1.5, %v4706
    %v4708 = vmul.f32 %v4703, %v4707
    %vm4709 = vweird.f32 %v4702
    %vm4710 = vweird.f32 %v4703
    %vm4711 = vmor %vm4709, %vm4710
    %v4712 = vsel %vm4711, %v4703, %v4708
    %v4713 = vmul.f32 %v4696, %v4712
    %v4714 = vmul.f32 %v4713, %v4685
    %v4715 = vadd.f32 %v4714, %v4686
    %v4716 = vpack.c.bf16 %v4715, %v4715
    %v4721 = vunpack.c.l.b16 %v4687
    %v4722 = vunpack.c.l.b16 %v4688
    %v4723 = vunpack.c.l.b16 %v4689
    %v4724 = vunpack.c.l.b16 %v4690
    %v4725 = vpack.c.b16 %v4722, %v4721
    %v4726 = vpack.c.b16 %v4724, %v4723
    %v4730 = vsel %vm165, %v4716, 0
    %4732 = vmatpush.bf16.msra.mxu0 0
    %4733 = vmatpush.bf16.msra.mxu0 0
    %4734 = vmatpush.bf16.msra.mxu0 0
    %4735 = vmatpush.bf16.msra.mxu0 0
    %4736 = vmatpush.bf16.msra.mxu0 0
    %4737 = vmatpush.bf16.msra.mxu0 0
    %4738 = vmatpush.bf16.msra.mxu0 %v4726
    %4739 = vmatpush.bf16.msra.mxu0 %v4725
    %4740 = vmatmul.bf16.gmra.mxu0 %v4730
    %v4741 = vpop.f32.mrf.mxu0
    %v4742 = vadd.f32 %v4691, %v4741
    %v4743 = vpop.f32.mrf.mxu0
    %4744 = vdwg.mxu0
    %vm4745 = vcmask 73728
    %4746 = vst.msk [vmem:[#allocation3] sm:$0x1] %vm4745, %v4742
    %v4747 = vsel %vm241, %v4684, 0.0
    %4748 = vadd.xlane.f32.xlu0 %v4747
    %v4749 = vpop.xlane.xlu0 %4748
    %v4750 = vmul.f32 %v4749, %v388
    %v4751 = vsub.f32 %v4684, %v4750
    %v4752 = vmul.f32 %v4751, %v4751
    %v4753 = vsel %vm241, %v4752, 0.0
    %4754 = vadd.xlane.f32.xlu0 %v4753
    %v4755 = vpop.xlane.xlu0 %4754
    %v4756 = vmul.f32 %v4755, %v388
    %v4757 = vadd.f32 %v4756, 1e-06
    %v4758 = vrsqrt.pop %v4757
    %v4759 = vmul.f32 %v4758, %v4757
    %v4760 = vmul.f32 %v4759, %v4758
    %v4761 = vmul.f32 0.5, %v4760
    %v4762 = vsub.f32 1.5, %v4761
    %v4763 = vmul.f32 %v4758, %v4762
    %vm4764 = vweird.f32 %v4757
    %vm4765 = vweird.f32 %v4758
    %vm4766 = vmor %vm4764, %vm4765
    %v4767 = vsel %vm4766, %v4758, %v4763
    %v4768 = vmul.f32 %v4751, %v4767
    %v4769 = vmul.f32 %v4768, %v4685
    %v4770 = vadd.f32 %v4769, %v4686
    %v4771 = vpack.c.bf16 %v4770, %v4770
    %v4773 = vsel %vm165, %v4771, 0
    %4775 = vmatpush.bf16.msra.mxu0 0
    %4776 = vmatpush.bf16.msra.mxu0 0
    %4777 = vmatpush.bf16.msra.mxu0 0
    %4778 = vmatpush.bf16.msra.mxu0 0
    %4779 = vmatpush.bf16.msra.mxu0 0
    %4780 = vmatpush.bf16.msra.mxu0 0
    %4781 = vmatpush.bf16.msra.mxu0 %v4726
    %4782 = vmatpush.bf16.msra.mxu0 %v4725
    %4783 = vmatmul.bf16.gmra.mxu0 %v4773
    %v4784 = vpop.f32.mrf.mxu0
    %v4785 = vadd.f32 %v4691, %v4784
    %v4786 = vpop.f32.mrf.mxu0
    %4787 = vdwg.mxu0
    %4788 = vst.msk [vmem:[#allocation3 + $0x1] sm:$0x1] %vm4745, %v4785
    // Predicated region
    $region106: #{vit_with_mac_forward.1} parent=1 // pred_check
      _
    $region107: #{vit_with_mac_forward.1} parent=1 // pred_check_branch
      %4790 = sbr.rel (0) target = $region109
    $region108: #{vit_with_mac_forward.1} parent=1 // pred_region
      %4792 = vsyncadd [#allocation4], 0
      %s4794 = sshll.u32 [#allocation3], 4
      %s4795 = int_to_ptr.vmem [resolvable:$true] %s4794
      %s4796 = sshll.u32 %s26, 4
      %s4797 = int_to_ptr.hbm [resolvable:$true] %s4796
      %4799 = dma.vmem_to_hbm [thread:$0]  %s4795, 32, %s4797, [#allocation4]
    $region109: #{vit_with_mac_forward.1} parent=1 // pred_fallthru
      _
    // Predicated region
    $region110: #{vit_with_mac_forward.1} parent=1 // pred_check
      _
    $region111: #{vit_with_mac_forward.1} parent=1 // pred_check_branch
      %4801 = sbr.rel (0) target = $region113
    $region112: #{vit_with_mac_forward.1} parent=1 // pred_region
      %4803 = dma.done [#allocation4], 32
    $region113: #{vit_with_mac_forward.1} parent=1 // pred_fallthru
      _
    %4804 = vsyncpa [#allocation4], 1

</llo_original>
